<compile_context>
chip_gen: v5e
topology: v5e:2x2
jax: 0.10.0
libtpu: 0.0.40
codegen_flags: <defaults>
</compile_context>

<pallas_src>
import jax
import jax.numpy as jnp
from jax.experimental import pallas as pl
from jax.experimental.pallas import tpu as pltpu

INPUT_DIM = 784
H1 = 512
H2 = 256
OUT = 1
LANE = 128               # lane width; w3 is zero-padded (256,1) -> (256,128)


def discriminator_kernel(x_ref, w1_ref, b1_ref, w2_ref, b2_ref, w3_ref, b3_ref, o_ref):
    # x_ref: (tb, 784) f32 tile of the batch; cast to bf16 in-kernel (no
    # separate XLA cast pass over HBM).
    x = x_ref[...].astype(jnp.bfloat16)

    # Layer 1: Linear(784 -> 512), bf16 MXU with f32 accumulation, LeakyReLU(0.2).
    h1 = jnp.dot(x, w1_ref[...], preferred_element_type=jnp.float32) + b1_ref[...]
    h1 = jnp.maximum(h1, 0.2 * h1)

    # Layer 2: Linear(512 -> 256) on the MXU + LeakyReLU(0.2).
    h2 = jnp.dot(h1.astype(jnp.bfloat16), w2_ref[...],
                 preferred_element_type=jnp.float32) + b2_ref[...]
    h2 = jnp.maximum(h2, 0.2 * h2)

    # Layer 3: Linear(256 -> 1) as an MXU dot against w3 zero-padded to
    # (256, 128): the MXU is idle at this point, and this keeps the cross-lane
    # reduction off the serial XLU path. Column 0 holds the real logit.
    h3 = jnp.dot(h2.astype(jnp.bfloat16), w3_ref[...],
                 preferred_element_type=jnp.float32)
    logit = h3[:, 0:1] + b3_ref[...]

    # Exact sigmoid: exp on the EUP, exact reciprocal (no approx error for a
    # downstream BCE/log loss).
    o_ref[...] = pl.reciprocal(1.0 + jnp.exp(-logit))


def prepare_params(params):
    """One-time conversion of the f32 (in,out)/(1,out) params into the kernel
    layout (bf16 weights, f32 biases, w3 zero-padded to (256, 128)).
    Call once after init / after each optimizer step — NOT per forward call."""
    w3 = params["w3"].reshape(H2, OUT).astype(jnp.bfloat16)
    w3p = jnp.pad(w3, ((0, 0), (0, LANE - OUT)))
    return {
        "w1": params["w1"].astype(jnp.bfloat16),          # (784, 512)
        "b1": params["b1"].reshape(1, H1).astype(jnp.float32),
        "w2": params["w2"].astype(jnp.bfloat16),           # (512, 256)
        "b2": params["b2"].reshape(1, H2).astype(jnp.float32),
        "w3": w3p,                                         # (256, 128) bf16
        "b3": params["b3"].reshape(1, OUT).astype(jnp.float32),
    }


def _choose_tb(B, tb_max=512, min_steps=4):
    """Batch tile: multiple of 128, aiming for >= min_steps grid steps
    (>= 2 per TensorCore on v7x) without padding small batches past the next
    128-row granule (keeps v5e's compute-bound case from doing 2.5x the rows)."""
    bp = ((B + 127) // 128) * 128
    tb = (bp // min_steps) // 128 * 128
    return max(128, min(tb_max, tb))


def discriminator_forward(img, prep, *, tb=None):
    """img: (B, 784) float32.  prep: output of prepare_params()."""
    B = img.shape[0]
    if tb is None:
        tb = _choose_tb(B)

    b_pad = (-B) % tb
    x = img if b_pad == 0 else jnp.pad(img, ((0, b_pad), (0, 0)))
    bp = B + b_pad
    grid = (bp // tb,)
    const = lambda i: (0, 0)   # weights/biases: same block every step -> stay resident

    out = pl.pallas_call(
        discriminator_kernel,
        out_shape=jax.ShapeDtypeStruct((bp, OUT), jnp.float32),
        grid_spec=pltpu.PrefetchScalarGridSpec(
            num_scalar_prefetch=0,
            grid=grid,
            in_specs=[
                pl.BlockSpec((tb, INPUT_DIM), lambda i: (i, 0)),   # x tile (f32)
                pl.BlockSpec((INPUT_DIM, H1), const),              # w1 bf16
                pl.BlockSpec((1, H1), const),                      # b1 f32
                pl.BlockSpec((H1, H2), const),                     # w2 bf16
                pl.BlockSpec((1, H2), const),                      # b2 f32
                pl.BlockSpec((H2, LANE), const),                   # w3 padded bf16
                pl.BlockSpec((1, OUT), const),                     # b3 f32
            ],
            out_specs=pl.BlockSpec((tb, OUT), lambda i: (i, 0)),
        ),
        compiler_params=pltpu.CompilerParams(
            dimension_semantics=("parallel",),
            # Resident footprint at tb=512: 2x f32 x-tiles (~3.2 MiB) +
            # double-buffered bf16 weights (~2.3 MiB) + f32 temporaries
            # (<2 MiB) << 32 MiB; safe on v5e/v6e/v7x and leaves scoped headroom.
            vmem_limit_bytes=32 * 1024 * 1024,
        ),
    )(x, prep["w1"], prep["b1"], prep["w2"], prep["b2"], prep["w3"], prep["b3"])

    return out[:B]


def init_params(key):
    """Deterministic init mimicking PyTorch nn.Linear default (U[-1/sqrt(fan_in), ...]).
    Weights are stored as (in_features, out_features)."""
    ks = jax.random.split(key, 6)

    def lin(kw, kb, fan_in, fan_out):
        bound = 1.0 / jnp.sqrt(fan_in)
        w = jax.random.uniform(kw, (fan_in, fan_out), jnp.float32, -bound, bound)
        b = jax.random.uniform(kb, (1, fan_out), jnp.float32, -bound, bound)
        return w, b

    w1, b1 = lin(ks[0], ks[1], INPUT_DIM, H1)
    w2, b2 = lin(ks[2], ks[3], H1, H2)
    w3, b3 = lin(ks[4], ks[5], H2, OUT)
    return {"w1": w1, "b1": b1, "w2": w2, "b2": b2, "w3": w3, "b3": b3}


def reference_forward(img, p):
    h1 = img @ p["w1"] + p["b1"]
    h1 = jnp.where(h1 > 0, h1, 0.2 * h1)
    h2 = h1 @ p["w2"] + p["b2"]
    h2 = jnp.where(h2 > 0, h2, 0.2 * h2)
    h3 = h2 @ p["w3"] + p["b3"]
    return jax.nn.sigmoid(h3)


if __name__ == "__main__":
    key = jax.random.PRNGKey(0)
    k_param, k_img = jax.random.split(key)

    params = init_params(k_param)
    prep = prepare_params(params)          # one-time weight prep (hoisted out of forward)

    # Primary check: batch of 512 flattened 28x28 images -> tb=128, 4 grid
    # steps (>=2 per TensorCore on v7x; exercises the pipeline).
    B = 512
    img = jax.random.normal(k_img, (B, INPUT_DIM), jnp.float32)
    out = jax.block_until_ready(discriminator_forward(img, prep))
    ref = reference_forward(img, params)
    assert out.shape == (B, OUT)
    # bf16 MXU operands / bf16 inter-layer activations -> loosened tolerance.
    assert jnp.allclose(out, ref, atol=2e-2, rtol=2e-2), "mismatch vs JAX reference (B=512)"

    # Ragged-batch check: tb shrinks to 128 so only 28 padding rows are computed.
    B2 = 100
    img2 = jax.random.normal(jax.random.PRNGKey(1), (B2, INPUT_DIM), jnp.float32)
    out2 = jax.block_until_ready(discriminator_forward(img2, prep))
    ref2 = reference_forward(img2, params)
    assert out2.shape == (B2, OUT)
    assert jnp.allclose(out2, ref2, atol=2e-2, rtol=2e-2), "mismatch vs JAX reference (B=100)"

    print("KERNEL_OK")
</pallas_src>

<mosaic_0001>
module attributes {stable_mosaic.version = 11 : i64} {
  func.func @discriminator_kernel(%arg0: i32, %arg1: memref<128x784xf32, #tpu.memory_space<vmem>>, %arg2: memref<784x512xbf16, #tpu.memory_space<vmem>>, %arg3: memref<1x512xf32, #tpu.memory_space<vmem>>, %arg4: memref<512x256xbf16, #tpu.memory_space<vmem>>, %arg5: memref<1x256xf32, #tpu.memory_space<vmem>>, %arg6: memref<256x128xbf16, #tpu.memory_space<vmem>>, %arg7: memref<1x1xf32, #tpu.memory_space<vmem>>, %arg8: memref<128x1xf32, #tpu.memory_space<vmem>>) attributes {dimension_semantics = [#tpu.dimension_semantics<parallel>], iteration_bounds = array<i64: 4>, scalar_prefetch = 0 : i64, scratch_operands = 0 : i64, tpu.core_type = #tpu.core_type<tc>, window_params = [{transform_indices = @transform_0, window_bounds = array<i64: 128, 784>}, {pipeline_mode = #tpu.pipeline_mode<synchronous>, transform_indices = @transform_1, window_bounds = array<i64: 784, 512>}, {pipeline_mode = #tpu.pipeline_mode<synchronous>, transform_indices = @transform_2, window_bounds = array<i64: 1, 512>}, {pipeline_mode = #tpu.pipeline_mode<synchronous>, transform_indices = @transform_3, window_bounds = array<i64: 512, 256>}, {pipeline_mode = #tpu.pipeline_mode<synchronous>, transform_indices = @transform_4, window_bounds = array<i64: 1, 256>}, {pipeline_mode = #tpu.pipeline_mode<synchronous>, transform_indices = @transform_5, window_bounds = array<i64: 256, 128>}, {pipeline_mode = #tpu.pipeline_mode<synchronous>, transform_indices = @transform_6, window_bounds = array<i64: 1, 1>}, {transform_indices = @transform_7, window_bounds = array<i64: 128, 1>}]} {
    %c0 = arith.constant 0 : index
    %c0_0 = arith.constant 0 : index
    %0 = vector.load %arg1[%c0, %c0_0] : memref<128x784xf32, #tpu.memory_space<vmem>>, vector<128x784xf32>
    %1 = arith.truncf %0 : vector<128x784xf32> to vector<128x784xbf16>
    %c0_1 = arith.constant 0 : index
    %c0_2 = arith.constant 0 : index
    %2 = vector.load %arg2[%c0_1, %c0_2] : memref<784x512xbf16, #tpu.memory_space<vmem>>, vector<784x512xbf16>
    %cst = arith.constant dense<0.000000e+00> : vector<128x512xf32>
    %3 = tpu.matmul %1, %2, %cst {dimension_numbers = #tpu.dot_dimension_numbers<[1], [0], [0], [1], [0, 0, 1, 1], [], []>} : vector<128x784xbf16>, vector<784x512xbf16>, vector<128x512xf32> -> vector<128x512xf32>
    %c0_3 = arith.constant 0 : index
    %c0_4 = arith.constant 0 : index
    %4 = vector.load %arg3[%c0_3, %c0_4] : memref<1x512xf32, #tpu.memory_space<vmem>>, vector<1x512xf32>
    %5 = vector.broadcast %4 : vector<1x512xf32> to vector<128x512xf32>
    %6 = arith.addf %3, %5 : vector<128x512xf32>
    %cst_5 = arith.constant 2.000000e-01 : f32
    %7 = vector.broadcast %cst_5 : f32 to vector<128x512xf32>
    %8 = arith.mulf %7, %6 : vector<128x512xf32>
    %9 = arith.maximumf %6, %8 : vector<128x512xf32>
    %10 = arith.truncf %9 : vector<128x512xf32> to vector<128x512xbf16>
    %c0_6 = arith.constant 0 : index
    %c0_7 = arith.constant 0 : index
    %11 = vector.load %arg4[%c0_6, %c0_7] : memref<512x256xbf16, #tpu.memory_space<vmem>>, vector<512x256xbf16>
    %cst_8 = arith.constant dense<0.000000e+00> : vector<128x256xf32>
    %12 = tpu.matmul %10, %11, %cst_8 {dimension_numbers = #tpu.dot_dimension_numbers<[1], [0], [0], [1], [0, 0, 1, 1], [], []>} : vector<128x512xbf16>, vector<512x256xbf16>, vector<128x256xf32> -> vector<128x256xf32>
    %c0_9 = arith.constant 0 : index
    %c0_10 = arith.constant 0 : index
    %13 = vector.load %arg5[%c0_9, %c0_10] : memref<1x256xf32, #tpu.memory_space<vmem>>, vector<1x256xf32>
    %14 = vector.broadcast %13 : vector<1x256xf32> to vector<128x256xf32>
    %15 = arith.addf %12, %14 : vector<128x256xf32>
    %cst_11 = arith.constant 2.000000e-01 : f32
    %16 = vector.broadcast %cst_11 : f32 to vector<128x256xf32>
    %17 = arith.mulf %16, %15 : vector<128x256xf32>
    %18 = arith.maximumf %15, %17 : vector<128x256xf32>
    %19 = arith.truncf %18 : vector<128x256xf32> to vector<128x256xbf16>
    %c0_12 = arith.constant 0 : index
    %c0_13 = arith.constant 0 : index
    %20 = vector.load %arg6[%c0_12, %c0_13] : memref<256x128xbf16, #tpu.memory_space<vmem>>, vector<256x128xbf16>
    %cst_14 = arith.constant dense<0.000000e+00> : vector<128x128xf32>
    %21 = tpu.matmul %19, %20, %cst_14 {dimension_numbers = #tpu.dot_dimension_numbers<[1], [0], [0], [1], [0, 0, 1, 1], [], []>} : vector<128x256xbf16>, vector<256x128xbf16>, vector<128x128xf32> -> vector<128x128xf32>
    %22 = vector.extract_strided_slice %21 {offsets = [0, 0], sizes = [128, 1], strides = [1, 1]} : vector<128x128xf32> to vector<128x1xf32>
    %c0_15 = arith.constant 0 : index
    %c0_16 = arith.constant 0 : index
    %23 = vector.load %arg7[%c0_15, %c0_16] : memref<1x1xf32, #tpu.memory_space<vmem>>, vector<1x1xf32>
    %24 = vector.broadcast %23 : vector<1x1xf32> to vector<128x1xf32>
    %25 = arith.addf %22, %24 : vector<128x1xf32>
    %cst_17 = arith.constant 0.000000e+00 : f32
    %26 = vector.broadcast %cst_17 : f32 to vector<128x1xf32>
    %27 = arith.subf %26, %25 : vector<128x1xf32>
    %28 = math.exp %27 : vector<128x1xf32>
    %cst_18 = arith.constant 1.000000e+00 : f32
    %29 = vector.broadcast %cst_18 : f32 to vector<128x1xf32>
    %30 = arith.addf %29, %28 : vector<128x1xf32>
    %31 = tpu.reciprocal %30 : vector<128x1xf32> -> vector<128x1xf32>
    %c0_19 = arith.constant 0 : index
    %c0_20 = arith.constant 0 : index
    %32 = vector.load %arg8[%c0_19, %c0_20] : memref<128x1xf32, #tpu.memory_space<vmem>>, vector<128x1xf32>
    tpu.vector_store %arg8[%c0_19, %c0_20], %31 {strides = array<i32>} : memref<128x1xf32, #tpu.memory_space<vmem>>, vector<128x1xf32>,
    return
  }
  func.func @transform_0(%arg0: i32) -> (i32, i32) {
    %c0_i32 = arith.constant 0 : i32
    %c0_i32_0 = arith.constant 0 : i32
    return %arg0, %c0_i32 : i32, i32
  }
  func.func @transform_1(%arg0: i32) -> (i32, i32) {
    %c0_i32 = arith.constant 0 : i32
    %c0_i32_0 = arith.constant 0 : i32
    %c0_i32_1 = arith.constant 0 : i32
    return %c0_i32, %c0_i32_0 : i32, i32
  }
  func.func @transform_2(%arg0: i32) -> (i32, i32) {
    %c0_i32 = arith.constant 0 : i32
    %c0_i32_0 = arith.constant 0 : i32
    %c0_i32_1 = arith.constant 0 : i32
    return %c0_i32, %c0_i32_0 : i32, i32
  }
  func.func @transform_3(%arg0: i32) -> (i32, i32) {
    %c0_i32 = arith.constant 0 : i32
    %c0_i32_0 = arith.constant 0 : i32
    %c0_i32_1 = arith.constant 0 : i32
    return %c0_i32, %c0_i32_0 : i32, i32
  }
  func.func @transform_4(%arg0: i32) -> (i32, i32) {
    %c0_i32 = arith.constant 0 : i32
    %c0_i32_0 = arith.constant 0 : i32
    %c0_i32_1 = arith.constant 0 : i32
    return %c0_i32, %c0_i32_0 : i32, i32
  }
  func.func @transform_5(%arg0: i32) -> (i32, i32) {
    %c0_i32 = arith.constant 0 : i32
    %c0_i32_0 = arith.constant 0 : i32
    %c0_i32_1 = arith.constant 0 : i32
    return %c0_i32, %c0_i32_0 : i32, i32
  }
  func.func @transform_6(%arg0: i32) -> (i32, i32) {
    %c0_i32 = arith.constant 0 : i32
    %c0_i32_0 = arith.constant 0 : i32
    %c0_i32_1 = arith.constant 0 : i32
    return %c0_i32, %c0_i32_0 : i32, i32
  }
  func.func @transform_7(%arg0: i32) -> (i32, i32) {
    %c0_i32 = arith.constant 0 : i32
    %c0_i32_0 = arith.constant 0 : i32
    return %arg0, %c0_i32 : i32, i32
  }
}

</mosaic_0001>

<llo_original>
// kernel: tpu_custom_call.1
$region0: #{tpu_custom_call.1}
  #allocation0 [shape = 'u32[]', space=smem, size = 0x4, offset = 0x4, fixed_abs, tag = 'smem constant byte address 0x4 - core index']
  #allocation1 [shape = 'u32[72,128]{1,0:T(1,128)}', space=vmem, size = 0x9000, scoped, tag = 'internal scratch']
  #allocation2 [shape = 'f32[1,1]{1,0:T(1,128)S(1)}', space=vmem, size = 0x200, scoped, tag = 'scoped memory for tpu_custom_call.1']
  %s0 = inlined_call_operand.vmem [shape: f32[512,784], index: 0, kind: input, shape index: {}]
  %s1 = inlined_call_operand.vmem [shape: bf16[784,512], index: 1, kind: input, shape index: {}]
  %s2 = inlined_call_operand.vmem [shape: f32[1,512], index: 2, kind: input, shape index: {}]
  %s3 = inlined_call_operand.vmem [shape: bf16[512,256], index: 3, kind: input, shape index: {}]
  %s4 = inlined_call_operand.vmem [shape: f32[1,256], index: 4, kind: input, shape index: {}]
  %s5 = inlined_call_operand.vmem [shape: bf16[256,128], index: 5, kind: input, shape index: {}]
  %s6 = inlined_call_operand.<no memory space> [shape: f32[1,1], index: 6, kind: input, shape index: {}]
  %s7 = inlined_call_operand.vmem [shape: f32[512,1], index: 7, kind: output, shape index: {}]
  %s8 = sld [smem:[#allocation0]]
  $region61: #{tpu_custom_call.1} parent=0
    _
  %s10 = ssub.s32 1, %s8
  %s11 = scalar_select 0, %s10, %s8
  %v12 = vstv %s6
  %13 = vst [vmem:[#allocation2] sm:$0x1] %v12
  loop: start=0, step=1, limit=6
  $region2: #{tpu_custom_call.1} parent=0 // loop_pre_header
    _
  $region3: #{tpu_custom_call.1} parent=0 // loop_header
    %s15 = sphi 0, %s19
    %p16 = scmp.ge.s32.totalorder %s15, 6
    %s25 = sphi 0, %s27
    %s28 = sphi 0, %s25
    %s29 = sphi 0, %s28
    %s45 = sphi 0, %s29
    %s49 = sphi 0, %s49
    %s51 = sphi 0, %s49
    %s52 = sphi 0, %s51
    %s66 = sphi 0, %s52
    %s70 = sphi 0, %s70
    %s72 = sphi 0, %s70
    %s73 = sphi 0, %s72
    %s87 = sphi 0, %s73
    %s91 = sphi 0, %s91
    %s93 = sphi 0, %s91
    %s94 = sphi 0, %s93
    %s108 = sphi 0, %s94
    %s112 = sphi 0, %s112
    %s114 = sphi 0, %s112
    %s115 = sphi 0, %s114
    %s129 = sphi 0, %s115
    %s133 = sphi 0, %s133
    %s135 = sphi 0, %s133
    %s136 = sphi 0, %s135
    %s150 = sphi 0, %s136
    %s154 = sphi 0, %s154
    %s156 = sphi 0, %s154
    %s157 = sphi 0, %s156
    %s171 = sphi 0, %s157
    %s177 = sphi 0, %s179
    %s180 = sphi 0, %s177
    %s181 = sphi 0, %s180
    %s197 = sphi 0, %s181
  $region4: #{tpu_custom_call.1} parent=0 // loop_header_branch
    %18 = sbr.rel (%p16) target = $region8
  $region5: #{tpu_custom_call.1} parent=0 // loop_body
    %s20 = ssub.s32 %s15, 1
    %s21 = ssub.s32 %s15, 2
    %s22 = sadd.s32 %s15, 1
    %s23 = ssub.s32 %s15, %s22
    %p24 = scmp.eq.s32.totalorder %s23, 0
    %s26 = sadd.s32 %s25, 1
    %s27 = scalar_select %p24, %s25, %s26
    %p30 = pneg %p24
    %p31 = scmp.eq.s32.totalorder %s15, 3
    %p32 = por %p30, %p31
    %p33 = scmp.ne.s32.totalorder %s25, %s28
    %p34 = scmp.eq.s32.totalorder %s15, 0
    %p35 = por %p33, %p34
    %p36 = scmp.ne.s32.totalorder %s25, %s28
    %p37 = scmp.eq.s32.totalorder %s20, 3
    %p38 = por %p36, %p37
    %p39 = scmp.ne.s32.totalorder %s28, %s29
    %p40 = scmp.eq.s32.totalorder %s20, 0
    %p41 = por %p39, %p40
    %p42 = scmp.ne.s32.totalorder %s28, %s29
    %p43 = scmp.eq.s32.totalorder %s21, 3
    %p44 = por %p42, %p43
    %p46 = scmp.ne.s32.totalorder %s29, %s45
    %p47 = scmp.eq.s32.totalorder %s21, 0
    %p48 = por %p46, %p47
    %s50 = sadd.s32 %s49, 1
    %p53 = scmp.eq.s32.totalorder %s15, 3
    %p54 = scmp.ne.s32.totalorder %s49, %s51
    %p55 = scmp.eq.s32.totalorder %s15, 0
    %p56 = por %p54, %p55
    %p57 = scmp.ne.s32.totalorder %s49, %s51
    %p58 = scmp.eq.s32.totalorder %s20, 3
    %p59 = por %p57, %p58
    %p60 = scmp.ne.s32.totalorder %s51, %s52
    %p61 = scmp.eq.s32.totalorder %s20, 0
    %p62 = por %p60, %p61
    %p63 = scmp.ne.s32.totalorder %s51, %s52
    %p64 = scmp.eq.s32.totalorder %s21, 3
    %p65 = por %p63, %p64
    %p67 = scmp.ne.s32.totalorder %s52, %s66
    %p68 = scmp.eq.s32.totalorder %s21, 0
    %p69 = por %p67, %p68
    %s71 = sadd.s32 %s70, 1
    %p74 = scmp.eq.s32.totalorder %s15, 3
    %p75 = scmp.ne.s32.totalorder %s70, %s72
    %p76 = scmp.eq.s32.totalorder %s15, 0
    %p77 = por %p75, %p76
    %p78 = scmp.ne.s32.totalorder %s70, %s72
    %p79 = scmp.eq.s32.totalorder %s20, 3
    %p80 = por %p78, %p79
    %p81 = scmp.ne.s32.totalorder %s72, %s73
    %p82 = scmp.eq.s32.totalorder %s20, 0
    %p83 = por %p81, %p82
    %p84 = scmp.ne.s32.totalorder %s72, %s73
    %p85 = scmp.eq.s32.totalorder %s21, 3
    %p86 = por %p84, %p85
    %p88 = scmp.ne.s32.totalorder %s73, %s87
    %p89 = scmp.eq.s32.totalorder %s21, 0
    %p90 = por %p88, %p89
    %s92 = sadd.s32 %s91, 1
    %p95 = scmp.eq.s32.totalorder %s15, 3
    %p96 = scmp.ne.s32.totalorder %s91, %s93
    %p97 = scmp.eq.s32.totalorder %s15, 0
    %p98 = por %p96, %p97
    %p99 = scmp.ne.s32.totalorder %s91, %s93
    %p100 = scmp.eq.s32.totalorder %s20, 3
    %p101 = por %p99, %p100
    %p102 = scmp.ne.s32.totalorder %s93, %s94
    %p103 = scmp.eq.s32.totalorder %s20, 0
    %p104 = por %p102, %p103
    %p105 = scmp.ne.s32.totalorder %s93, %s94
    %p106 = scmp.eq.s32.totalorder %s21, 3
    %p107 = por %p105, %p106
    %p109 = scmp.ne.s32.totalorder %s94, %s108
    %p110 = scmp.eq.s32.totalorder %s21, 0
    %p111 = por %p109, %p110
    %s113 = sadd.s32 %s112, 1
    %p116 = scmp.eq.s32.totalorder %s15, 3
    %p117 = scmp.ne.s32.totalorder %s112, %s114
    %p118 = scmp.eq.s32.totalorder %s15, 0
    %p119 = por %p117, %p118
    %p120 = scmp.ne.s32.totalorder %s112, %s114
    %p121 = scmp.eq.s32.totalorder %s20, 3
    %p122 = por %p120, %p121
    %p123 = scmp.ne.s32.totalorder %s114, %s115
    %p124 = scmp.eq.s32.totalorder %s20, 0
    %p125 = por %p123, %p124
    %p126 = scmp.ne.s32.totalorder %s114, %s115
    %p127 = scmp.eq.s32.totalorder %s21, 3
    %p128 = por %p126, %p127
    %p130 = scmp.ne.s32.totalorder %s115, %s129
    %p131 = scmp.eq.s32.totalorder %s21, 0
    %p132 = por %p130, %p131
    %s134 = sadd.s32 %s133, 1
    %p137 = scmp.eq.s32.totalorder %s15, 3
    %p138 = scmp.ne.s32.totalorder %s133, %s135
    %p139 = scmp.eq.s32.totalorder %s15, 0
    %p140 = por %p138, %p139
    %p141 = scmp.ne.s32.totalorder %s133, %s135
    %p142 = scmp.eq.s32.totalorder %s20, 3
    %p143 = por %p141, %p142
    %p144 = scmp.ne.s32.totalorder %s135, %s136
    %p145 = scmp.eq.s32.totalorder %s20, 0
    %p146 = por %p144, %p145
    %p147 = scmp.ne.s32.totalorder %s135, %s136
    %p148 = scmp.eq.s32.totalorder %s21, 3
    %p149 = por %p147, %p148
    %p151 = scmp.ne.s32.totalorder %s136, %s150
    %p152 = scmp.eq.s32.totalorder %s21, 0
    %p153 = por %p151, %p152
    %s155 = sadd.s32 %s154, 1
    %p158 = scmp.eq.s32.totalorder %s15, 3
    %p159 = scmp.ne.s32.totalorder %s154, %s156
    %p160 = scmp.eq.s32.totalorder %s15, 0
    %p161 = por %p159, %p160
    %p162 = scmp.ne.s32.totalorder %s154, %s156
    %p163 = scmp.eq.s32.totalorder %s20, 3
    %p164 = por %p162, %p163
    %p165 = scmp.ne.s32.totalorder %s156, %s157
    %p166 = scmp.eq.s32.totalorder %s20, 0
    %p167 = por %p165, %p166
    %p168 = scmp.ne.s32.totalorder %s156, %s157
    %p169 = scmp.eq.s32.totalorder %s21, 3
    %p170 = por %p168, %p169
    %p172 = scmp.ne.s32.totalorder %s157, %s171
    %p173 = scmp.eq.s32.totalorder %s21, 0
    %p174 = por %p172, %p173
    %s175 = ssub.s32 %s15, %s22
    %p176 = scmp.eq.s32.totalorder %s175, 0
    %s178 = sadd.s32 %s177, 1
    %s179 = scalar_select %p176, %s177, %s178
    %p182 = pneg %p176
    %p183 = scmp.eq.s32.totalorder %s15, 3
    %p184 = por %p182, %p183
    %p185 = scmp.ne.s32.totalorder %s177, %s180
    %p186 = scmp.eq.s32.totalorder %s15, 0
    %p187 = por %p185, %p186
    %p188 = scmp.ne.s32.totalorder %s177, %s180
    %p189 = scmp.eq.s32.totalorder %s20, 3
    %p190 = por %p188, %p189
    %p191 = scmp.ne.s32.totalorder %s180, %s181
    %p192 = scmp.eq.s32.totalorder %s20, 0
    %p193 = por %p191, %p192
    %p194 = scmp.ne.s32.totalorder %s180, %s181
    %p195 = scmp.eq.s32.totalorder %s21, 3
    %p196 = por %p194, %p195
    %p198 = scmp.ne.s32.totalorder %s181, %s197
    %p199 = scmp.eq.s32.totalorder %s21, 0
    %p200 = por %p198, %p199
    %p201 = scmp.le.s32.totalorder 1, %s15
    %p202 = scmp.lt.s32.totalorder %s15, 5
    %p203 = pnand %p201, %p202
    %p204 = pneg %p203
    // Predicated region
    $region9: #{tpu_custom_call.1} parent=5 // pred_check
      _
    $region10: #{tpu_custom_call.1} parent=5 // pred_check_branch
      %206 = sbr.rel (%p203) target = $region12
    $region11: #{tpu_custom_call.1} parent=5 // pred_region
      %s207 = ssub.s32 %s15, 1
      // Predicated region
      $region13: #{tpu_custom_call.1} parent=11 // pred_check
        %p208 = pneg %p62
      $region14: #{tpu_custom_call.1} parent=11 // pred_check_branch
        %210 = sbr.rel (%p208) target = $region16
      $region15: #{tpu_custom_call.1} parent=11 // pred_region
        _
      $region16: #{tpu_custom_call.1} parent=11 // pred_fallthru
        _
      // Predicated region
      $region17: #{tpu_custom_call.1} parent=11 // pred_check
        %p211 = pneg %p83
      $region18: #{tpu_custom_call.1} parent=11 // pred_check_branch
        %213 = sbr.rel (%p211) target = $region20
      $region19: #{tpu_custom_call.1} parent=11 // pred_region
        _
      $region20: #{tpu_custom_call.1} parent=11 // pred_fallthru
        _
      // Predicated region
      $region21: #{tpu_custom_call.1} parent=11 // pred_check
        %p214 = pneg %p104
      $region22: #{tpu_custom_call.1} parent=11 // pred_check_branch
        %216 = sbr.rel (%p214) target = $region24
      $region23: #{tpu_custom_call.1} parent=11 // pred_region
        _
      $region24: #{tpu_custom_call.1} parent=11 // pred_fallthru
        _
      // Predicated region
      $region25: #{tpu_custom_call.1} parent=11 // pred_check
        %p217 = pneg %p125
      $region26: #{tpu_custom_call.1} parent=11 // pred_check_branch
        %219 = sbr.rel (%p217) target = $region28
      $region27: #{tpu_custom_call.1} parent=11 // pred_region
        _
      $region28: #{tpu_custom_call.1} parent=11 // pred_fallthru
        _
      // Predicated region
      $region29: #{tpu_custom_call.1} parent=11 // pred_check
        %p220 = pneg %p146
      $region30: #{tpu_custom_call.1} parent=11 // pred_check_branch
        %222 = sbr.rel (%p220) target = $region32
      $region31: #{tpu_custom_call.1} parent=11 // pred_region
        _
      $region32: #{tpu_custom_call.1} parent=11 // pred_fallthru
        _
      // Predicated region
      $region33: #{tpu_custom_call.1} parent=11 // pred_check
        %p223 = pneg %p167
      $region34: #{tpu_custom_call.1} parent=11 // pred_check_branch
        %225 = sbr.rel (%p223) target = $region36
      $region35: #{tpu_custom_call.1} parent=11 // pred_region
        _
      $region36: #{tpu_custom_call.1} parent=11 // pred_fallthru
        _
    $region12: #{tpu_custom_call.1} parent=5 // pred_fallthru
      _
    %p226 = scmp.lt.s32.totalorder %s15, 4
    // Predicated region
    $region37: #{tpu_custom_call.1} parent=5 // pred_check
      %p227 = pneg %p226
    $region38: #{tpu_custom_call.1} parent=5 // pred_check_branch
      %229 = sbr.rel (%p227) target = $region40
    $region39: #{tpu_custom_call.1} parent=5 // pred_region
      // Predicated region
      $region41: #{tpu_custom_call.1} parent=39 // pred_check
        %p230 = pneg %p35
      $region42: #{tpu_custom_call.1} parent=39 // pred_check_branch
        %232 = sbr.rel (%p230) target = $region44
      $region43: #{tpu_custom_call.1} parent=39 // pred_region
        %s233 = smul.u32 16, %s15
        %p234 = scmp.lt.s32.totalorder %s233, 63
        %s235 = scalar_select %p234, %s233, 63
        %s236 = smul.addr %s235, 7
        %s237 = smul.addr %s236, 8
        %s238 = scalar_lea.vmem %s0, %s237
        %s239 = smul.u32 16, %s15
      $region44: #{tpu_custom_call.1} parent=39 // pred_fallthru
        _
    $region40: #{tpu_custom_call.1} parent=5 // pred_fallthru
      _
    %p240 = scmp.le.s32.totalorder 1, %s15
    %p241 = scmp.lt.s32.totalorder %s15, 5
    %p242 = pnand %p240, %p241
    %p243 = pneg %p242
    // Predicated region
    $region45: #{tpu_custom_call.1} parent=5 // pred_check
      _
    $region46: #{tpu_custom_call.1} parent=5 // pred_check_branch
      %245 = sbr.rel (%p242) target = $region48
    $region47: #{tpu_custom_call.1} parent=5 // pred_region
      %s246 = ssub.s32 %s15, 1
      %s247 = smul.u32 16, %s20
      %p248 = scmp.lt.s32.totalorder %s247, 63
      %s249 = scalar_select %p248, %s247, 63
      %s250 = smul.addr %s249, 7
      %s251 = smul.addr %s250, 8
      %s252 = scalar_lea.vmem %s0, %s251
      %p253 = pneg %p41
      %p254 = pneg %p38
      %p255 = pneg %p62
      %p256 = pneg %p59
      %p257 = pneg %p83
      %p258 = pneg %p80
      %p259 = pneg %p104
      %p260 = pneg %p101
      %p261 = pneg %p125
      %p262 = pneg %p122
      %p263 = pneg %p146
      %p264 = pneg %p143
      %p265 = pneg %p167
      %p266 = pneg %p164
      %p267 = pneg %p193
      %p268 = pneg %p190
      %s269 = smul.u32 16, %s20
      %p270 = scmp.lt.s32.totalorder %s269, 63
      %s271 = scalar_select %p270, %s269, 63
      %s272 = smul.addr %s271, 8
      %s273 = scalar_lea.vmem %s7, %s272
      %s274 = smul.u32 16, %s20
      %p275 = scmp.lt.s32.totalorder %s274, 63
      %s276 = scalar_select %p275, %s274, 63
      %s277 = smul.addr %s276, 7
      %s278 = smul.addr %s277, 8
      %s279 = scalar_lea.vmem %s0, %s278
      %s280 = smul.u32 16, %s20
      %s281 = smul.u32 16, %s20
      %p282 = scmp.lt.s32.totalorder %s281, 63
      %s283 = scalar_select %p282, %s281, 63
      %s284 = smul.addr %s283, 8
      %s285 = scalar_lea.vmem %s7, %s284
      %s286 = smul.u32 16, %s20
      %v288 = vld [vmem:[%s279] sm:$0xff]
      %v289 = vld [vmem:[%s279 + $0x8] sm:$0xff]
      %v290 = vld [vmem:[%s279 + $0x10] sm:$0xff]
      %v291 = vld [vmem:[%s279 + $0x18] sm:$0xff]
      %v292 = vld [vmem:[%s279 + $0x20] sm:$0xff]
      %v293 = vld [vmem:[%s279 + $0x28] sm:$0xff]
      %v294 = vld [vmem:[%s279 + $0x30] sm:$0xff]
      %v295 = vld [vmem:[%s279 + $0x38] sm:$0xff]
      %v296 = vld [vmem:[%s279 + $0x40] sm:$0xff]
      %v297 = vld [vmem:[%s279 + $0x48] sm:$0xff]
      %v298 = vld [vmem:[%s279 + $0x50] sm:$0xff]
      %v299 = vld [vmem:[%s279 + $0x58] sm:$0xff]
      %v300 = vld [vmem:[%s279 + $0x60] sm:$0xff]
      %v301 = vld [vmem:[%s279 + $0x68] sm:$0xff]
      %v302 = vld [vmem:[%s279 + $0x70] sm:$0xff]
      %v303 = vld [vmem:[%s279 + $0x78] sm:$0xff]
      %v304 = vld [vmem:[%s279 + $0x80] sm:$0xff]
      %v305 = vld [vmem:[%s279 + $0x88] sm:$0xff]
      %v306 = vld [vmem:[%s279 + $0x90] sm:$0xff]
      %v307 = vld [vmem:[%s279 + $0x98] sm:$0xff]
      %v308 = vld [vmem:[%s279 + $0xa0] sm:$0xff]
      %v309 = vld [vmem:[%s279 + $0xa8] sm:$0xff]
      %v310 = vld [vmem:[%s279 + $0xb0] sm:$0xff]
      %v311 = vld [vmem:[%s279 + $0xb8] sm:$0xff]
      %v312 = vld [vmem:[%s279 + $0xc0] sm:$0xff]
      %v313 = vld [vmem:[%s279 + $0xc8] sm:$0xff]
      %v314 = vld [vmem:[%s279 + $0xd0] sm:$0xff]
      %v315 = vld [vmem:[%s279 + $0xd8] sm:$0xff]
      %v316 = vld [vmem:[%s279 + $0xe0] sm:$0xff]
      %v317 = vld [vmem:[%s279 + $0xe8] sm:$0xff]
      %v318 = vld [vmem:[%s279 + $0xf0] sm:$0xff]
      %v319 = vld [vmem:[%s279 + $0xf8] sm:$0xff]
      %v320 = vld [vmem:[%s279 + $0x100] sm:$0xff]
      %v321 = vld [vmem:[%s279 + $0x108] sm:$0xff]
      %v322 = vld [vmem:[%s279 + $0x110] sm:$0xff]
      %v323 = vld [vmem:[%s279 + $0x118] sm:$0xff]
      %v324 = vld [vmem:[%s279 + $0x120] sm:$0xff]
      %v325 = vld [vmem:[%s279 + $0x128] sm:$0xff]
      %v326 = vld [vmem:[%s279 + $0x130] sm:$0xff]
      %v327 = vld [vmem:[%s279 + $0x138] sm:$0xff]
      %v328 = vld [vmem:[%s279 + $0x140] sm:$0xff]
      %v329 = vld [vmem:[%s279 + $0x148] sm:$0xff]
      %v330 = vld [vmem:[%s279 + $0x150] sm:$0xff]
      %v331 = vld [vmem:[%s279 + $0x158] sm:$0xff]
      %v332 = vld [vmem:[%s279 + $0x160] sm:$0xff]
      %v333 = vld [vmem:[%s279 + $0x168] sm:$0xff]
      %v334 = vld [vmem:[%s279 + $0x170] sm:$0xff]
      %v335 = vld [vmem:[%s279 + $0x178] sm:$0xff]
      %v336 = vld [vmem:[%s279 + $0x180] sm:$0xff]
      %v337 = vld [vmem:[%s279 + $0x188] sm:$0xff]
      %v338 = vld [vmem:[%s279 + $0x190] sm:$0xff]
      %v339 = vld [vmem:[%s279 + $0x198] sm:$0xff]
      %v340 = vld [vmem:[%s279 + $0x1a0] sm:$0xff]
      %v341 = vld [vmem:[%s279 + $0x1a8] sm:$0xff]
      %v342 = vld [vmem:[%s279 + $0x1b0] sm:$0xff]
      %v343 = vld [vmem:[%s279 + $0x1b8] sm:$0xff]
      %v344 = vld [vmem:[%s279 + $0x1c0] sm:$0xff]
      %v345 = vld [vmem:[%s279 + $0x1c8] sm:$0xff]
      %v346 = vld [vmem:[%s279 + $0x1d0] sm:$0xff]
      %v347 = vld [vmem:[%s279 + $0x1d8] sm:$0xff]
      %v348 = vld [vmem:[%s279 + $0x1e0] sm:$0xff]
      %v349 = vld [vmem:[%s279 + $0x1e8] sm:$0xff]
      %v350 = vld [vmem:[%s279 + $0x1f0] sm:$0xff]
      %v351 = vld [vmem:[%s279 + $0x1f8] sm:$0xff]
      %v352 = vld [vmem:[%s279 + $0x200] sm:$0xff]
      %v353 = vld [vmem:[%s279 + $0x208] sm:$0xff]
      %v354 = vld [vmem:[%s279 + $0x210] sm:$0xff]
      %v355 = vld [vmem:[%s279 + $0x218] sm:$0xff]
      %v356 = vld [vmem:[%s279 + $0x220] sm:$0xff]
      %v357 = vld [vmem:[%s279 + $0x228] sm:$0xff]
      %v358 = vld [vmem:[%s279 + $0x230] sm:$0xff]
      %v359 = vld [vmem:[%s279 + $0x238] sm:$0xff]
      %v360 = vld [vmem:[%s279 + $0x240] sm:$0xff]
      %v361 = vld [vmem:[%s279 + $0x248] sm:$0xff]
      %v362 = vld [vmem:[%s279 + $0x250] sm:$0xff]
      %v363 = vld [vmem:[%s279 + $0x258] sm:$0xff]
      %v364 = vld [vmem:[%s279 + $0x260] sm:$0xff]
      %v365 = vld [vmem:[%s279 + $0x268] sm:$0xff]
      %v366 = vld [vmem:[%s279 + $0x270] sm:$0xff]
      %v367 = vld [vmem:[%s279 + $0x278] sm:$0xff]
      %v368 = vld [vmem:[%s279 + $0x280] sm:$0xff]
      %v369 = vld [vmem:[%s279 + $0x288] sm:$0xff]
      %v370 = vld [vmem:[%s279 + $0x290] sm:$0xff]
      %v371 = vld [vmem:[%s279 + $0x298] sm:$0xff]
      %v372 = vld [vmem:[%s279 + $0x2a0] sm:$0xff]
      %v373 = vld [vmem:[%s279 + $0x2a8] sm:$0xff]
      %v374 = vld [vmem:[%s279 + $0x2b0] sm:$0xff]
      %v375 = vld [vmem:[%s279 + $0x2b8] sm:$0xff]
      %v376 = vld [vmem:[%s279 + $0x2c0] sm:$0xff]
      %v377 = vld [vmem:[%s279 + $0x2c8] sm:$0xff]
      %v378 = vld [vmem:[%s279 + $0x2d0] sm:$0xff]
      %v379 = vld [vmem:[%s279 + $0x2d8] sm:$0xff]
      %v380 = vld [vmem:[%s279 + $0x2e0] sm:$0xff]
      %v381 = vld [vmem:[%s279 + $0x2e8] sm:$0xff]
      %v382 = vld [vmem:[%s279 + $0x2f0] sm:$0xff]
      %v383 = vld [vmem:[%s279 + $0x2f8] sm:$0xff]
      %v384 = vld [vmem:[%s279 + $0x300] sm:$0xff]
      %v385 = vld [vmem:[%s279 + $0x308] sm:$0xff]
      %v386 = vld [vmem:[%s279 + $0x310] sm:$0xff]
      %v387 = vld [vmem:[%s279 + $0x318] sm:$0xff]
      %v388 = vld [vmem:[%s279 + $0x320] sm:$0xff]
      %v389 = vld [vmem:[%s279 + $0x328] sm:$0xff]
      %v390 = vld [vmem:[%s279 + $0x330] sm:$0xff]
      %v391 = vld [vmem:[%s279 + $0x338] sm:$0xff]
      %v392 = vld [vmem:[%s279 + $0x340] sm:$0xff]
      %v393 = vld [vmem:[%s279 + $0x348] sm:$0xff]
      %v394 = vld [vmem:[%s279 + $0x350] sm:$0xff]
      %v395 = vld [vmem:[%s279 + $0x358] sm:$0xff]
      %v396 = vld [vmem:[%s279 + $0x360] sm:$0xff]
      %v397 = vld [vmem:[%s279 + $0x368] sm:$0xff]
      %v398 = vld [vmem:[%s279 + $0x370] sm:$0xff]
      %v399 = vld [vmem:[%s279 + $0x378] sm:$0xff]
      %v400 = vpack.c.bf16 %v295, %v288
      %v401 = vpack.c.bf16 %v296, %v289
      %v402 = vpack.c.bf16 %v297, %v290
      %v403 = vpack.c.bf16 %v298, %v291
      %v404 = vpack.c.bf16 %v299, %v292
      %v405 = vpack.c.bf16 %v300, %v293
      %v406 = vpack.c.bf16 %v301, %v294
      %v407 = vpack.c.bf16 %v309, %v302
      %v408 = vpack.c.bf16 %v310, %v303
      %v409 = vpack.c.bf16 %v311, %v304
      %v410 = vpack.c.bf16 %v312, %v305
      %v411 = vpack.c.bf16 %v313, %v306
      %v412 = vpack.c.bf16 %v314, %v307
      %v413 = vpack.c.bf16 %v315, %v308
      %v414 = vpack.c.bf16 %v323, %v316
      %v415 = vpack.c.bf16 %v324, %v317
      %v416 = vpack.c.bf16 %v325, %v318
      %v417 = vpack.c.bf16 %v326, %v319
      %v418 = vpack.c.bf16 %v327, %v320
      %v419 = vpack.c.bf16 %v328, %v321
      %v420 = vpack.c.bf16 %v329, %v322
      %v421 = vpack.c.bf16 %v337, %v330
      %v422 = vpack.c.bf16 %v338, %v331
      %v423 = vpack.c.bf16 %v339, %v332
      %v424 = vpack.c.bf16 %v340, %v333
      %v425 = vpack.c.bf16 %v341, %v334
      %v426 = vpack.c.bf16 %v342, %v335
      %v427 = vpack.c.bf16 %v343, %v336
      %v428 = vpack.c.bf16 %v351, %v344
      %v429 = vpack.c.bf16 %v352, %v345
      %v430 = vpack.c.bf16 %v353, %v346
      %v431 = vpack.c.bf16 %v354, %v347
      %v432 = vpack.c.bf16 %v355, %v348
      %v433 = vpack.c.bf16 %v356, %v349
      %v434 = vpack.c.bf16 %v357, %v350
      %v435 = vpack.c.bf16 %v365, %v358
      %v436 = vpack.c.bf16 %v366, %v359
      %v437 = vpack.c.bf16 %v367, %v360
      %v438 = vpack.c.bf16 %v368, %v361
      %v439 = vpack.c.bf16 %v369, %v362
      %v440 = vpack.c.bf16 %v370, %v363
      %v441 = vpack.c.bf16 %v371, %v364
      %v442 = vpack.c.bf16 %v379, %v372
      %v443 = vpack.c.bf16 %v380, %v373
      %v444 = vpack.c.bf16 %v381, %v374
      %v445 = vpack.c.bf16 %v382, %v375
      %v446 = vpack.c.bf16 %v383, %v376
      %v447 = vpack.c.bf16 %v384, %v377
      %v448 = vpack.c.bf16 %v385, %v378
      %v449 = vpack.c.bf16 %v393, %v386
      %v450 = vpack.c.bf16 %v394, %v387
      %v451 = vpack.c.bf16 %v395, %v388
      %v452 = vpack.c.bf16 %v396, %v389
      %v453 = vpack.c.bf16 %v397, %v390
      %v454 = vpack.c.bf16 %v398, %v391
      %v455 = vpack.c.bf16 %v399, %v392
      %v456 = vld [vmem:[%s1] sm:$0xff]
      %v457 = vld [vmem:[%s1 + $0x8] sm:$0xff]
      %v458 = vld [vmem:[%s1 + $0x10] sm:$0xff]
      %v459 = vld [vmem:[%s1 + $0x18] sm:$0xff]
      %v460 = vld [vmem:[%s1 + $0x20] sm:$0xff]
      %v461 = vld [vmem:[%s1 + $0x28] sm:$0xff]
      %v462 = vld [vmem:[%s1 + $0x30] sm:$0xff]
      %v463 = vld [vmem:[%s1 + $0x38] sm:$0xff]
      %v464 = vld [vmem:[%s1 + $0x40] sm:$0xff]
      %v465 = vld [vmem:[%s1 + $0x48] sm:$0xff]
      %v466 = vld [vmem:[%s1 + $0x50] sm:$0xff]
      %v467 = vld [vmem:[%s1 + $0x58] sm:$0xff]
      %v468 = vld [vmem:[%s1 + $0x60] sm:$0xff]
      %v469 = vld [vmem:[%s1 + $0x68] sm:$0xff]
      %v470 = vld [vmem:[%s1 + $0x70] sm:$0xff]
      %v471 = vld [vmem:[%s1 + $0x78] sm:$0xff]
      %v472 = vld [vmem:[%s1 + $0x80] sm:$0xff]
      %v473 = vld [vmem:[%s1 + $0x88] sm:$0xff]
      %v474 = vld [vmem:[%s1 + $0x90] sm:$0xff]
      %v475 = vld [vmem:[%s1 + $0x98] sm:$0xff]
      %v476 = vld [vmem:[%s1 + $0xa0] sm:$0xff]
      %v477 = vld [vmem:[%s1 + $0xa8] sm:$0xff]
      %v478 = vld [vmem:[%s1 + $0xb0] sm:$0xff]
      %v479 = vld [vmem:[%s1 + $0xb8] sm:$0xff]
      %v480 = vld [vmem:[%s1 + $0xc0] sm:$0xff]
      %v481 = vld [vmem:[%s1 + $0xc8] sm:$0xff]
      %v482 = vld [vmem:[%s1 + $0xd0] sm:$0xff]
      %v483 = vld [vmem:[%s1 + $0xd8] sm:$0xff]
      %v484 = vld [vmem:[%s1 + $0xe0] sm:$0xff]
      %v485 = vld [vmem:[%s1 + $0xe8] sm:$0xff]
      %v486 = vld [vmem:[%s1 + $0xf0] sm:$0xff]
      %v487 = vld [vmem:[%s1 + $0xf8] sm:$0xff]
      %v488 = vld [vmem:[%s1 + $0x100] sm:$0xff]
      %v489 = vld [vmem:[%s1 + $0x108] sm:$0xff]
      %v490 = vld [vmem:[%s1 + $0x110] sm:$0xff]
      %v491 = vld [vmem:[%s1 + $0x118] sm:$0xff]
      %v492 = vld [vmem:[%s1 + $0x120] sm:$0xff]
      %v493 = vld [vmem:[%s1 + $0x128] sm:$0xff]
      %v494 = vld [vmem:[%s1 + $0x130] sm:$0xff]
      %v495 = vld [vmem:[%s1 + $0x138] sm:$0xff]
      %v496 = vld [vmem:[%s1 + $0x140] sm:$0xff]
      %v497 = vld [vmem:[%s1 + $0x148] sm:$0xff]
      %v498 = vld [vmem:[%s1 + $0x150] sm:$0xff]
      %v499 = vld [vmem:[%s1 + $0x158] sm:$0xff]
      %v500 = vld [vmem:[%s1 + $0x160] sm:$0xff]
      %v501 = vld [vmem:[%s1 + $0x168] sm:$0xff]
      %v502 = vld [vmem:[%s1 + $0x170] sm:$0xff]
      %v503 = vld [vmem:[%s1 + $0x178] sm:$0xff]
      %v504 = vld [vmem:[%s1 + $0x180] sm:$0xff]
      %v505 = vld [vmem:[%s1 + $0x188] sm:$0xff]
      %v506 = vld [vmem:[%s1 + $0x190] sm:$0xff]
      %v507 = vld [vmem:[%s1 + $0x198] sm:$0xff]
      %v508 = vld [vmem:[%s1 + $0x1a0] sm:$0xff]
      %v509 = vld [vmem:[%s1 + $0x1a8] sm:$0xff]
      %v510 = vld [vmem:[%s1 + $0x1b0] sm:$0xff]
      %v511 = vld [vmem:[%s1 + $0x1b8] sm:$0xff]
      %v512 = vld [vmem:[%s1 + $0x1c0] sm:$0xff]
      %v513 = vld [vmem:[%s1 + $0x1c8] sm:$0xff]
      %v514 = vld [vmem:[%s1 + $0x1d0] sm:$0xff]
      %v515 = vld [vmem:[%s1 + $0x1d8] sm:$0xff]
      %v516 = vld [vmem:[%s1 + $0x1e0] sm:$0xff]
      %v517 = vld [vmem:[%s1 + $0x1e8] sm:$0xff]
      %v518 = vld [vmem:[%s1 + $0x1f0] sm:$0xff]
      %v519 = vld [vmem:[%s1 + $0x1f8] sm:$0xff]
      %v520 = vld [vmem:[%s1 + $0x200] sm:$0xff]
      %v521 = vld [vmem:[%s1 + $0x208] sm:$0xff]
      %v522 = vld [vmem:[%s1 + $0x210] sm:$0xff]
      %v523 = vld [vmem:[%s1 + $0x218] sm:$0xff]
      %v524 = vld [vmem:[%s1 + $0x220] sm:$0xff]
      %v525 = vld [vmem:[%s1 + $0x228] sm:$0xff]
      %v526 = vld [vmem:[%s1 + $0x230] sm:$0xff]
      %v527 = vld [vmem:[%s1 + $0x238] sm:$0xff]
      %v528 = vld [vmem:[%s1 + $0x240] sm:$0xff]
      %v529 = vld [vmem:[%s1 + $0x248] sm:$0xff]
      %v530 = vld [vmem:[%s1 + $0x250] sm:$0xff]
      %v531 = vld [vmem:[%s1 + $0x258] sm:$0xff]
      %v532 = vld [vmem:[%s1 + $0x260] sm:$0xff]
      %v533 = vld [vmem:[%s1 + $0x268] sm:$0xff]
      %v534 = vld [vmem:[%s1 + $0x270] sm:$0xff]
      %v535 = vld [vmem:[%s1 + $0x278] sm:$0xff]
      %v536 = vld [vmem:[%s1 + $0x280] sm:$0xff]
      %v537 = vld [vmem:[%s1 + $0x288] sm:$0xff]
      %v538 = vld [vmem:[%s1 + $0x290] sm:$0xff]
      %v539 = vld [vmem:[%s1 + $0x298] sm:$0xff]
      %v540 = vld [vmem:[%s1 + $0x2a0] sm:$0xff]
      %v541 = vld [vmem:[%s1 + $0x2a8] sm:$0xff]
      %v542 = vld [vmem:[%s1 + $0x2b0] sm:$0xff]
      %v543 = vld [vmem:[%s1 + $0x2b8] sm:$0xff]
      %v544 = vld [vmem:[%s1 + $0x2c0] sm:$0xff]
      %v545 = vld [vmem:[%s1 + $0x2c8] sm:$0xff]
      %v546 = vld [vmem:[%s1 + $0x2d0] sm:$0xff]
      %v547 = vld [vmem:[%s1 + $0x2d8] sm:$0xff]
      %v548 = vld [vmem:[%s1 + $0x2e0] sm:$0xff]
      %v549 = vld [vmem:[%s1 + $0x2e8] sm:$0xff]
      %v550 = vld [vmem:[%s1 + $0x2f0] sm:$0xff]
      %v551 = vld [vmem:[%s1 + $0x2f8] sm:$0xff]
      %v552 = vld [vmem:[%s1 + $0x300] sm:$0xff]
      %v553 = vld [vmem:[%s1 + $0x308] sm:$0xff]
      %v554 = vld [vmem:[%s1 + $0x310] sm:$0xff]
      %v555 = vld [vmem:[%s1 + $0x318] sm:$0xff]
      %v556 = vld [vmem:[%s1 + $0x320] sm:$0xff]
      %v557 = vld [vmem:[%s1 + $0x328] sm:$0xff]
      %v558 = vld [vmem:[%s1 + $0x330] sm:$0xff]
      %v559 = vld [vmem:[%s1 + $0x338] sm:$0xff]
      %v560 = vld [vmem:[%s1 + $0x340] sm:$0xff]
      %v561 = vld [vmem:[%s1 + $0x348] sm:$0xff]
      %v562 = vld [vmem:[%s1 + $0x350] sm:$0xff]
      %v563 = vld [vmem:[%s1 + $0x358] sm:$0xff]
      %v564 = vld [vmem:[%s1 + $0x360] sm:$0xff]
      %v565 = vld [vmem:[%s1 + $0x368] sm:$0xff]
      %v566 = vld [vmem:[%s1 + $0x370] sm:$0xff]
      %v567 = vld [vmem:[%s1 + $0x378] sm:$0xff]
      %v568 = vld [vmem:[%s1 + $0x380] sm:$0xff]
      %v569 = vld [vmem:[%s1 + $0x388] sm:$0xff]
      %v570 = vld [vmem:[%s1 + $0x390] sm:$0xff]
      %v571 = vld [vmem:[%s1 + $0x398] sm:$0xff]
      %v572 = vld [vmem:[%s1 + $0x3a0] sm:$0xff]
      %v573 = vld [vmem:[%s1 + $0x3a8] sm:$0xff]
      %v574 = vld [vmem:[%s1 + $0x3b0] sm:$0xff]
      %v575 = vld [vmem:[%s1 + $0x3b8] sm:$0xff]
      %v576 = vld [vmem:[%s1 + $0x3c0] sm:$0xff]
      %v577 = vld [vmem:[%s1 + $0x3c8] sm:$0xff]
      %v578 = vld [vmem:[%s1 + $0x3d0] sm:$0xff]
      %v579 = vld [vmem:[%s1 + $0x3d8] sm:$0xff]
      %v580 = vld [vmem:[%s1 + $0x3e0] sm:$0xff]
      %v581 = vld [vmem:[%s1 + $0x3e8] sm:$0xff]
      %v582 = vld [vmem:[%s1 + $0x3f0] sm:$0xff]
      %v583 = vld [vmem:[%s1 + $0x3f8] sm:$0xff]
      %v584 = vld [vmem:[%s1 + $0x400] sm:$0xff]
      %v585 = vld [vmem:[%s1 + $0x408] sm:$0xff]
      %v586 = vld [vmem:[%s1 + $0x410] sm:$0xff]
      %v587 = vld [vmem:[%s1 + $0x418] sm:$0xff]
      %v588 = vld [vmem:[%s1 + $0x420] sm:$0xff]
      %v589 = vld [vmem:[%s1 + $0x428] sm:$0xff]
      %v590 = vld [vmem:[%s1 + $0x430] sm:$0xff]
      %v591 = vld [vmem:[%s1 + $0x438] sm:$0xff]
      %v592 = vld [vmem:[%s1 + $0x440] sm:$0xff]
      %v593 = vld [vmem:[%s1 + $0x448] sm:$0xff]
      %v594 = vld [vmem:[%s1 + $0x450] sm:$0xff]
      %v595 = vld [vmem:[%s1 + $0x458] sm:$0xff]
      %v596 = vld [vmem:[%s1 + $0x460] sm:$0xff]
      %v597 = vld [vmem:[%s1 + $0x468] sm:$0xff]
      %v598 = vld [vmem:[%s1 + $0x470] sm:$0xff]
      %v599 = vld [vmem:[%s1 + $0x478] sm:$0xff]
      %v600 = vld [vmem:[%s1 + $0x480] sm:$0xff]
      %v601 = vld [vmem:[%s1 + $0x488] sm:$0xff]
      %v602 = vld [vmem:[%s1 + $0x490] sm:$0xff]
      %v603 = vld [vmem:[%s1 + $0x498] sm:$0xff]
      %v604 = vld [vmem:[%s1 + $0x4a0] sm:$0xff]
      %v605 = vld [vmem:[%s1 + $0x4a8] sm:$0xff]
      %v606 = vld [vmem:[%s1 + $0x4b0] sm:$0xff]
      %v607 = vld [vmem:[%s1 + $0x4b8] sm:$0xff]
      %v608 = vld [vmem:[%s1 + $0x4c0] sm:$0xff]
      %v609 = vld [vmem:[%s1 + $0x4c8] sm:$0xff]
      %v610 = vld [vmem:[%s1 + $0x4d0] sm:$0xff]
      %v611 = vld [vmem:[%s1 + $0x4d8] sm:$0xff]
      %v612 = vld [vmem:[%s1 + $0x4e0] sm:$0xff]
      %v613 = vld [vmem:[%s1 + $0x4e8] sm:$0xff]
      %v614 = vld [vmem:[%s1 + $0x4f0] sm:$0xff]
      %v615 = vld [vmem:[%s1 + $0x4f8] sm:$0xff]
      %v616 = vld [vmem:[%s1 + $0x500] sm:$0xff]
      %v617 = vld [vmem:[%s1 + $0x508] sm:$0xff]
      %v618 = vld [vmem:[%s1 + $0x510] sm:$0xff]
      %v619 = vld [vmem:[%s1 + $0x518] sm:$0xff]
      %v620 = vld [vmem:[%s1 + $0x520] sm:$0xff]
      %v621 = vld [vmem:[%s1 + $0x528] sm:$0xff]
      %v622 = vld [vmem:[%s1 + $0x530] sm:$0xff]
      %v623 = vld [vmem:[%s1 + $0x538] sm:$0xff]
      %v624 = vld [vmem:[%s1 + $0x540] sm:$0xff]
      %v625 = vld [vmem:[%s1 + $0x548] sm:$0xff]
      %v626 = vld [vmem:[%s1 + $0x550] sm:$0xff]
      %v627 = vld [vmem:[%s1 + $0x558] sm:$0xff]
      %v628 = vld [vmem:[%s1 + $0x560] sm:$0xff]
      %v629 = vld [vmem:[%s1 + $0x568] sm:$0xff]
      %v630 = vld [vmem:[%s1 + $0x570] sm:$0xff]
      %v631 = vld [vmem:[%s1 + $0x578] sm:$0xff]
      %v632 = vld [vmem:[%s1 + $0x580] sm:$0xff]
      %v633 = vld [vmem:[%s1 + $0x588] sm:$0xff]
      %v634 = vld [vmem:[%s1 + $0x590] sm:$0xff]
      %v635 = vld [vmem:[%s1 + $0x598] sm:$0xff]
      %v636 = vld [vmem:[%s1 + $0x5a0] sm:$0xff]
      %v637 = vld [vmem:[%s1 + $0x5a8] sm:$0xff]
      %v638 = vld [vmem:[%s1 + $0x5b0] sm:$0xff]
      %v639 = vld [vmem:[%s1 + $0x5b8] sm:$0xff]
      %v640 = vld [vmem:[%s1 + $0x5c0] sm:$0xff]
      %v641 = vld [vmem:[%s1 + $0x5c8] sm:$0xff]
      %v642 = vld [vmem:[%s1 + $0x5d0] sm:$0xff]
      %v643 = vld [vmem:[%s1 + $0x5d8] sm:$0xff]
      %v644 = vld [vmem:[%s1 + $0x5e0] sm:$0xff]
      %v645 = vld [vmem:[%s1 + $0x5e8] sm:$0xff]
      %v646 = vld [vmem:[%s1 + $0x5f0] sm:$0xff]
      %v647 = vld [vmem:[%s1 + $0x5f8] sm:$0xff]
      %v648 = vld [vmem:[%s1 + $0x600] sm:$0xff]
      %v649 = vld [vmem:[%s1 + $0x608] sm:$0xff]
      %v650 = vld [vmem:[%s1 + $0x610] sm:$0xff]
      %v651 = vld [vmem:[%s1 + $0x618] sm:$0xff]
      %v652 = vld [vmem:[%s2] sm:$0xf]
      %v654 = vperm.slane %v652, 0
      %v655 = vperm.slane %v652, 1
      %v656 = vperm.slane %v652, 2
      %v657 = vperm.slane %v652, 3
      %v858 = vunpack.c.l.b16 %v456
      %v859 = vunpack.c.h.b16 %v456
      %v860 = vunpack.c.l.b16 %v457
      %v861 = vunpack.c.h.b16 %v457
      %v862 = vunpack.c.l.b16 %v458
      %v863 = vunpack.c.h.b16 %v458
      %v864 = vunpack.c.l.b16 %v459
      %v865 = vunpack.c.h.b16 %v459
      %v866 = vunpack.c.l.b16 %v460
      %v867 = vunpack.c.h.b16 %v460
      %v868 = vunpack.c.l.b16 %v461
      %v869 = vunpack.c.h.b16 %v461
      %v870 = vunpack.c.l.b16 %v462
      %v871 = vunpack.c.h.b16 %v462
      %v872 = vunpack.c.l.b16 %v463
      %v873 = vunpack.c.h.b16 %v463
      %v874 = vunpack.c.l.b16 %v464
      %v875 = vunpack.c.h.b16 %v464
      %v876 = vunpack.c.l.b16 %v465
      %v877 = vunpack.c.h.b16 %v465
      %v878 = vunpack.c.l.b16 %v466
      %v879 = vunpack.c.h.b16 %v466
      %v880 = vunpack.c.l.b16 %v467
      %v881 = vunpack.c.h.b16 %v467
      %v882 = vunpack.c.l.b16 %v468
      %v883 = vunpack.c.h.b16 %v468
      %v884 = vunpack.c.l.b16 %v469
      %v885 = vunpack.c.h.b16 %v469
      %v886 = vunpack.c.l.b16 %v470
      %v887 = vunpack.c.h.b16 %v470
      %v888 = vunpack.c.l.b16 %v471
      %v889 = vunpack.c.h.b16 %v471
      %v890 = vunpack.c.l.b16 %v472
      %v891 = vunpack.c.h.b16 %v472
      %v892 = vunpack.c.l.b16 %v473
      %v893 = vunpack.c.h.b16 %v473
      %v894 = vunpack.c.l.b16 %v474
      %v895 = vunpack.c.h.b16 %v474
      %v896 = vunpack.c.l.b16 %v475
      %v897 = vunpack.c.h.b16 %v475
      %v898 = vunpack.c.l.b16 %v476
      %v899 = vunpack.c.h.b16 %v476
      %v900 = vunpack.c.l.b16 %v477
      %v901 = vunpack.c.h.b16 %v477
      %v902 = vunpack.c.l.b16 %v478
      %v903 = vunpack.c.h.b16 %v478
      %v904 = vunpack.c.l.b16 %v479
      %v905 = vunpack.c.h.b16 %v479
      %v906 = vunpack.c.l.b16 %v480
      %v907 = vunpack.c.h.b16 %v480
      %v908 = vunpack.c.l.b16 %v481
      %v909 = vunpack.c.h.b16 %v481
      %v910 = vunpack.c.l.b16 %v482
      %v911 = vunpack.c.h.b16 %v482
      %v912 = vunpack.c.l.b16 %v483
      %v913 = vunpack.c.h.b16 %v483
      %v914 = vunpack.c.l.b16 %v484
      %v915 = vunpack.c.h.b16 %v484
      %v916 = vunpack.c.l.b16 %v485
      %v917 = vunpack.c.h.b16 %v485
      %v918 = vunpack.c.l.b16 %v486
      %v919 = vunpack.c.h.b16 %v486
      %v920 = vunpack.c.l.b16 %v487
      %v921 = vunpack.c.h.b16 %v487
      %v922 = vunpack.c.l.b16 %v488
      %v923 = vunpack.c.h.b16 %v488
      %v924 = vunpack.c.l.b16 %v489
      %v925 = vunpack.c.h.b16 %v489
      %v926 = vunpack.c.l.b16 %v490
      %v927 = vunpack.c.h.b16 %v490
      %v928 = vunpack.c.l.b16 %v491
      %v929 = vunpack.c.h.b16 %v491
      %v930 = vunpack.c.l.b16 %v492
      %v931 = vunpack.c.h.b16 %v492
      %v932 = vunpack.c.l.b16 %v493
      %v933 = vunpack.c.h.b16 %v493
      %v934 = vunpack.c.l.b16 %v494
      %v935 = vunpack.c.h.b16 %v494
      %v936 = vunpack.c.l.b16 %v495
      %v937 = vunpack.c.h.b16 %v495
      %v938 = vunpack.c.l.b16 %v496
      %v939 = vunpack.c.h.b16 %v496
      %v940 = vunpack.c.l.b16 %v497
      %v941 = vunpack.c.h.b16 %v497
      %v942 = vunpack.c.l.b16 %v498
      %v943 = vunpack.c.h.b16 %v498
      %v944 = vunpack.c.l.b16 %v499
      %v945 = vunpack.c.h.b16 %v499
      %v946 = vunpack.c.l.b16 %v500
      %v947 = vunpack.c.h.b16 %v500
      %v948 = vunpack.c.l.b16 %v501
      %v949 = vunpack.c.h.b16 %v501
      %v950 = vunpack.c.l.b16 %v502
      %v951 = vunpack.c.h.b16 %v502
      %v952 = vunpack.c.l.b16 %v503
      %v953 = vunpack.c.h.b16 %v503
      %v954 = vunpack.c.l.b16 %v504
      %v955 = vunpack.c.h.b16 %v504
      %v956 = vunpack.c.l.b16 %v505
      %v957 = vunpack.c.h.b16 %v505
      %v958 = vunpack.c.l.b16 %v506
      %v959 = vunpack.c.h.b16 %v506
      %v960 = vunpack.c.l.b16 %v507
      %v961 = vunpack.c.h.b16 %v507
      %v962 = vunpack.c.l.b16 %v508
      %v963 = vunpack.c.h.b16 %v508
      %v964 = vunpack.c.l.b16 %v509
      %v965 = vunpack.c.h.b16 %v509
      %v966 = vunpack.c.l.b16 %v510
      %v967 = vunpack.c.h.b16 %v510
      %v968 = vunpack.c.l.b16 %v511
      %v969 = vunpack.c.h.b16 %v511
      %v970 = vunpack.c.l.b16 %v512
      %v971 = vunpack.c.h.b16 %v512
      %v972 = vunpack.c.l.b16 %v513
      %v973 = vunpack.c.h.b16 %v513
      %v974 = vunpack.c.l.b16 %v514
      %v975 = vunpack.c.h.b16 %v514
      %v976 = vunpack.c.l.b16 %v515
      %v977 = vunpack.c.h.b16 %v515
      %v978 = vunpack.c.l.b16 %v516
      %v979 = vunpack.c.h.b16 %v516
      %v980 = vunpack.c.l.b16 %v517
      %v981 = vunpack.c.h.b16 %v517
      %v982 = vunpack.c.l.b16 %v518
      %v983 = vunpack.c.h.b16 %v518
      %v984 = vunpack.c.l.b16 %v519
      %v985 = vunpack.c.h.b16 %v519
      %v986 = vunpack.c.l.b16 %v520
      %v987 = vunpack.c.h.b16 %v520
      %v988 = vunpack.c.l.b16 %v521
      %v989 = vunpack.c.h.b16 %v521
      %v990 = vunpack.c.l.b16 %v522
      %v991 = vunpack.c.h.b16 %v522
      %v992 = vunpack.c.l.b16 %v523
      %v993 = vunpack.c.h.b16 %v523
      %v994 = vunpack.c.l.b16 %v524
      %v995 = vunpack.c.h.b16 %v524
      %v996 = vunpack.c.l.b16 %v525
      %v997 = vunpack.c.h.b16 %v525
      %v998 = vunpack.c.l.b16 %v526
      %v999 = vunpack.c.h.b16 %v526
      %v1000 = vunpack.c.l.b16 %v527
      %v1001 = vunpack.c.h.b16 %v527
      %v1002 = vunpack.c.l.b16 %v528
      %v1003 = vunpack.c.h.b16 %v528
      %v1004 = vunpack.c.l.b16 %v529
      %v1005 = vunpack.c.h.b16 %v529
      %v1006 = vunpack.c.l.b16 %v530
      %v1007 = vunpack.c.h.b16 %v530
      %v1008 = vunpack.c.l.b16 %v531
      %v1009 = vunpack.c.h.b16 %v531
      %v1010 = vunpack.c.l.b16 %v532
      %v1011 = vunpack.c.h.b16 %v532
      %v1012 = vunpack.c.l.b16 %v533
      %v1013 = vunpack.c.h.b16 %v533
      %v1014 = vunpack.c.l.b16 %v534
      %v1015 = vunpack.c.h.b16 %v534
      %v1016 = vunpack.c.l.b16 %v535
      %v1017 = vunpack.c.h.b16 %v535
      %v1018 = vunpack.c.l.b16 %v536
      %v1019 = vunpack.c.h.b16 %v536
      %v1020 = vunpack.c.l.b16 %v537
      %v1021 = vunpack.c.h.b16 %v537
      %v1022 = vunpack.c.l.b16 %v538
      %v1023 = vunpack.c.h.b16 %v538
      %v1024 = vunpack.c.l.b16 %v539
      %v1025 = vunpack.c.h.b16 %v539
      %v1026 = vunpack.c.l.b16 %v540
      %v1027 = vunpack.c.h.b16 %v540
      %v1028 = vunpack.c.l.b16 %v541
      %v1029 = vunpack.c.h.b16 %v541
      %v1030 = vunpack.c.l.b16 %v542
      %v1031 = vunpack.c.h.b16 %v542
      %v1032 = vunpack.c.l.b16 %v543
      %v1033 = vunpack.c.h.b16 %v543
      %v1034 = vunpack.c.l.b16 %v544
      %v1035 = vunpack.c.h.b16 %v544
      %v1036 = vunpack.c.l.b16 %v545
      %v1037 = vunpack.c.h.b16 %v545
      %v1038 = vunpack.c.l.b16 %v546
      %v1039 = vunpack.c.h.b16 %v546
      %v1040 = vunpack.c.l.b16 %v547
      %v1041 = vunpack.c.h.b16 %v547
      %v1042 = vunpack.c.l.b16 %v548
      %v1043 = vunpack.c.h.b16 %v548
      %v1044 = vunpack.c.l.b16 %v549
      %v1045 = vunpack.c.h.b16 %v549
      %v1046 = vunpack.c.l.b16 %v550
      %v1047 = vunpack.c.h.b16 %v550
      %v1048 = vunpack.c.l.b16 %v551
      %v1049 = vunpack.c.h.b16 %v551
      %v1050 = vunpack.c.l.b16 %v552
      %v1051 = vunpack.c.h.b16 %v552
      %v1052 = vunpack.c.l.b16 %v553
      %v1053 = vunpack.c.h.b16 %v553
      %v1054 = vunpack.c.l.b16 %v554
      %v1055 = vunpack.c.h.b16 %v554
      %v1056 = vunpack.c.l.b16 %v555
      %v1057 = vunpack.c.h.b16 %v555
      %v1058 = vunpack.c.l.b16 %v556
      %v1059 = vunpack.c.h.b16 %v556
      %v1060 = vunpack.c.l.b16 %v557
      %v1061 = vunpack.c.h.b16 %v557
      %v1062 = vunpack.c.l.b16 %v558
      %v1063 = vunpack.c.h.b16 %v558
      %v1064 = vunpack.c.l.b16 %v559
      %v1065 = vunpack.c.h.b16 %v559
      %v1066 = vunpack.c.l.b16 %v560
      %v1067 = vunpack.c.h.b16 %v560
      %v1068 = vunpack.c.l.b16 %v561
      %v1069 = vunpack.c.h.b16 %v561
      %v1070 = vunpack.c.l.b16 %v562
      %v1071 = vunpack.c.h.b16 %v562
      %v1072 = vunpack.c.l.b16 %v563
      %v1073 = vunpack.c.h.b16 %v563
      %v1074 = vunpack.c.l.b16 %v564
      %v1075 = vunpack.c.h.b16 %v564
      %v1076 = vunpack.c.l.b16 %v565
      %v1077 = vunpack.c.h.b16 %v565
      %v1078 = vunpack.c.l.b16 %v566
      %v1079 = vunpack.c.h.b16 %v566
      %v1080 = vunpack.c.l.b16 %v567
      %v1081 = vunpack.c.h.b16 %v567
      %v1082 = vunpack.c.l.b16 %v568
      %v1083 = vunpack.c.h.b16 %v568
      %v1084 = vunpack.c.l.b16 %v569
      %v1085 = vunpack.c.h.b16 %v569
      %v1086 = vunpack.c.l.b16 %v570
      %v1087 = vunpack.c.h.b16 %v570
      %v1088 = vunpack.c.l.b16 %v571
      %v1089 = vunpack.c.h.b16 %v571
      %v1090 = vunpack.c.l.b16 %v572
      %v1091 = vunpack.c.h.b16 %v572
      %v1092 = vunpack.c.l.b16 %v573
      %v1093 = vunpack.c.h.b16 %v573
      %v1094 = vunpack.c.l.b16 %v574
      %v1095 = vunpack.c.h.b16 %v574
      %v1096 = vunpack.c.l.b16 %v575
      %v1097 = vunpack.c.h.b16 %v575
      %v1098 = vunpack.c.l.b16 %v576
      %v1099 = vunpack.c.h.b16 %v576
      %v1100 = vunpack.c.l.b16 %v577
      %v1101 = vunpack.c.h.b16 %v577
      %v1102 = vunpack.c.l.b16 %v578
      %v1103 = vunpack.c.h.b16 %v578
      %v1104 = vunpack.c.l.b16 %v579
      %v1105 = vunpack.c.h.b16 %v579
      %v1106 = vunpack.c.l.b16 %v580
      %v1107 = vunpack.c.h.b16 %v580
      %v1108 = vunpack.c.l.b16 %v581
      %v1109 = vunpack.c.h.b16 %v581
      %v1110 = vunpack.c.l.b16 %v582
      %v1111 = vunpack.c.h.b16 %v582
      %v1112 = vunpack.c.l.b16 %v583
      %v1113 = vunpack.c.h.b16 %v583
      %v1114 = vunpack.c.l.b16 %v584
      %v1115 = vunpack.c.h.b16 %v584
      %v1116 = vunpack.c.l.b16 %v585
      %v1117 = vunpack.c.h.b16 %v585
      %v1118 = vunpack.c.l.b16 %v586
      %v1119 = vunpack.c.h.b16 %v586
      %v1120 = vunpack.c.l.b16 %v587
      %v1121 = vunpack.c.h.b16 %v587
      %v1122 = vunpack.c.l.b16 %v588
      %v1123 = vunpack.c.h.b16 %v588
      %v1124 = vunpack.c.l.b16 %v589
      %v1125 = vunpack.c.h.b16 %v589
      %v1126 = vunpack.c.l.b16 %v590
      %v1127 = vunpack.c.h.b16 %v590
      %v1128 = vunpack.c.l.b16 %v591
      %v1129 = vunpack.c.h.b16 %v591
      %v1130 = vunpack.c.l.b16 %v592
      %v1131 = vunpack.c.h.b16 %v592
      %v1132 = vunpack.c.l.b16 %v593
      %v1133 = vunpack.c.h.b16 %v593
      %v1134 = vunpack.c.l.b16 %v594
      %v1135 = vunpack.c.h.b16 %v594
      %v1136 = vunpack.c.l.b16 %v595
      %v1137 = vunpack.c.h.b16 %v595
      %v1138 = vunpack.c.l.b16 %v596
      %v1139 = vunpack.c.h.b16 %v596
      %v1140 = vunpack.c.l.b16 %v597
      %v1141 = vunpack.c.h.b16 %v597
      %v1142 = vunpack.c.l.b16 %v598
      %v1143 = vunpack.c.h.b16 %v598
      %v1144 = vunpack.c.l.b16 %v599
      %v1145 = vunpack.c.h.b16 %v599
      %v1146 = vunpack.c.l.b16 %v600
      %v1147 = vunpack.c.h.b16 %v600
      %v1148 = vunpack.c.l.b16 %v601
      %v1149 = vunpack.c.h.b16 %v601
      %v1150 = vunpack.c.l.b16 %v602
      %v1151 = vunpack.c.h.b16 %v602
      %v1152 = vunpack.c.l.b16 %v603
      %v1153 = vunpack.c.h.b16 %v603
      %v1154 = vunpack.c.l.b16 %v604
      %v1155 = vunpack.c.h.b16 %v604
      %v1156 = vunpack.c.l.b16 %v605
      %v1157 = vunpack.c.h.b16 %v605
      %v1158 = vunpack.c.l.b16 %v606
      %v1159 = vunpack.c.h.b16 %v606
      %v1160 = vunpack.c.l.b16 %v607
      %v1161 = vunpack.c.h.b16 %v607
      %v1162 = vunpack.c.l.b16 %v608
      %v1163 = vunpack.c.h.b16 %v608
      %v1164 = vunpack.c.l.b16 %v609
      %v1165 = vunpack.c.h.b16 %v609
      %v1166 = vunpack.c.l.b16 %v610
      %v1167 = vunpack.c.h.b16 %v610
      %v1168 = vunpack.c.l.b16 %v611
      %v1169 = vunpack.c.h.b16 %v611
      %v1170 = vunpack.c.l.b16 %v612
      %v1171 = vunpack.c.h.b16 %v612
      %v1172 = vunpack.c.l.b16 %v613
      %v1173 = vunpack.c.h.b16 %v613
      %v1174 = vunpack.c.l.b16 %v614
      %v1175 = vunpack.c.h.b16 %v614
      %v1176 = vunpack.c.l.b16 %v615
      %v1177 = vunpack.c.h.b16 %v615
      %v1178 = vunpack.c.l.b16 %v616
      %v1179 = vunpack.c.h.b16 %v616
      %v1180 = vunpack.c.l.b16 %v617
      %v1181 = vunpack.c.h.b16 %v617
      %v1182 = vunpack.c.l.b16 %v618
      %v1183 = vunpack.c.h.b16 %v618
      %v1184 = vunpack.c.l.b16 %v619
      %v1185 = vunpack.c.h.b16 %v619
      %v1186 = vunpack.c.l.b16 %v620
      %v1187 = vunpack.c.h.b16 %v620
      %v1188 = vunpack.c.l.b16 %v621
      %v1189 = vunpack.c.h.b16 %v621
      %v1190 = vunpack.c.l.b16 %v622
      %v1191 = vunpack.c.h.b16 %v622
      %v1192 = vunpack.c.l.b16 %v623
      %v1193 = vunpack.c.h.b16 %v623
      %v1194 = vunpack.c.l.b16 %v624
      %v1195 = vunpack.c.h.b16 %v624
      %v1196 = vunpack.c.l.b16 %v625
      %v1197 = vunpack.c.h.b16 %v625
      %v1198 = vunpack.c.l.b16 %v626
      %v1199 = vunpack.c.h.b16 %v626
      %v1200 = vunpack.c.l.b16 %v627
      %v1201 = vunpack.c.h.b16 %v627
      %v1202 = vunpack.c.l.b16 %v628
      %v1203 = vunpack.c.h.b16 %v628
      %v1204 = vunpack.c.l.b16 %v629
      %v1205 = vunpack.c.h.b16 %v629
      %v1206 = vunpack.c.l.b16 %v630
      %v1207 = vunpack.c.h.b16 %v630
      %v1208 = vunpack.c.l.b16 %v631
      %v1209 = vunpack.c.h.b16 %v631
      %v1210 = vunpack.c.l.b16 %v632
      %v1211 = vunpack.c.h.b16 %v632
      %v1212 = vunpack.c.l.b16 %v633
      %v1213 = vunpack.c.h.b16 %v633
      %v1214 = vunpack.c.l.b16 %v634
      %v1215 = vunpack.c.h.b16 %v634
      %v1216 = vunpack.c.l.b16 %v635
      %v1217 = vunpack.c.h.b16 %v635
      %v1218 = vunpack.c.l.b16 %v636
      %v1219 = vunpack.c.h.b16 %v636
      %v1220 = vunpack.c.l.b16 %v637
      %v1221 = vunpack.c.h.b16 %v637
      %v1222 = vunpack.c.l.b16 %v638
      %v1223 = vunpack.c.h.b16 %v638
      %v1224 = vunpack.c.l.b16 %v639
      %v1225 = vunpack.c.h.b16 %v639
      %v1226 = vunpack.c.l.b16 %v640
      %v1227 = vunpack.c.h.b16 %v640
      %v1228 = vunpack.c.l.b16 %v641
      %v1229 = vunpack.c.h.b16 %v641
      %v1230 = vunpack.c.l.b16 %v642
      %v1231 = vunpack.c.h.b16 %v642
      %v1232 = vunpack.c.l.b16 %v643
      %v1233 = vunpack.c.h.b16 %v643
      %v1234 = vunpack.c.l.b16 %v644
      %v1235 = vunpack.c.h.b16 %v644
      %v1236 = vunpack.c.l.b16 %v645
      %v1237 = vunpack.c.h.b16 %v645
      %v1238 = vunpack.c.l.b16 %v646
      %v1239 = vunpack.c.h.b16 %v646
      %v1240 = vunpack.c.l.b16 %v647
      %v1241 = vunpack.c.h.b16 %v647
      %v1242 = vunpack.c.l.b16 %v648
      %v1243 = vunpack.c.h.b16 %v648
      %v1244 = vunpack.c.l.b16 %v649
      %v1245 = vunpack.c.h.b16 %v649
      %v1246 = vunpack.c.l.b16 %v650
      %v1247 = vunpack.c.h.b16 %v650
      %v1248 = vunpack.c.l.b16 %v651
      %v1249 = vunpack.c.h.b16 %v651
      %v1250 = vpack.c.b16 %v862, %v858
      %v1251 = vpack.c.b16 %v863, %v859
      %v1252 = vpack.c.b16 %v864, %v860
      %v1253 = vpack.c.b16 %v865, %v861
      %v1254 = vpack.c.b16 %v870, %v866
      %v1255 = vpack.c.b16 %v871, %v867
      %v1256 = vpack.c.b16 %v872, %v868
      %v1257 = vpack.c.b16 %v873, %v869
      %v1258 = vpack.c.b16 %v878, %v874
      %v1259 = vpack.c.b16 %v879, %v875
      %v1260 = vpack.c.b16 %v880, %v876
      %v1261 = vpack.c.b16 %v881, %v877
      %v1262 = vpack.c.b16 %v886, %v882
      %v1263 = vpack.c.b16 %v887, %v883
      %v1264 = vpack.c.b16 %v888, %v884
      %v1265 = vpack.c.b16 %v889, %v885
      %v1266 = vpack.c.b16 %v894, %v890
      %v1267 = vpack.c.b16 %v895, %v891
      %v1268 = vpack.c.b16 %v896, %v892
      %v1269 = vpack.c.b16 %v897, %v893
      %v1270 = vpack.c.b16 %v902, %v898
      %v1271 = vpack.c.b16 %v903, %v899
      %v1272 = vpack.c.b16 %v904, %v900
      %v1273 = vpack.c.b16 %v905, %v901
      %v1274 = vpack.c.b16 %v910, %v906
      %v1275 = vpack.c.b16 %v911, %v907
      %v1276 = vpack.c.b16 %v912, %v908
      %v1277 = vpack.c.b16 %v913, %v909
      %v1278 = vpack.c.b16 %v918, %v914
      %v1279 = vpack.c.b16 %v919, %v915
      %v1280 = vpack.c.b16 %v920, %v916
      %v1281 = vpack.c.b16 %v921, %v917
      %v1282 = vpack.c.b16 %v926, %v922
      %v1283 = vpack.c.b16 %v927, %v923
      %v1284 = vpack.c.b16 %v928, %v924
      %v1285 = vpack.c.b16 %v929, %v925
      %v1286 = vpack.c.b16 %v934, %v930
      %v1287 = vpack.c.b16 %v935, %v931
      %v1288 = vpack.c.b16 %v936, %v932
      %v1289 = vpack.c.b16 %v937, %v933
      %v1290 = vpack.c.b16 %v942, %v938
      %v1291 = vpack.c.b16 %v943, %v939
      %v1292 = vpack.c.b16 %v944, %v940
      %v1293 = vpack.c.b16 %v945, %v941
      %v1294 = vpack.c.b16 %v950, %v946
      %v1295 = vpack.c.b16 %v951, %v947
      %v1296 = vpack.c.b16 %v952, %v948
      %v1297 = vpack.c.b16 %v953, %v949
      %v1298 = vpack.c.b16 %v958, %v954
      %v1299 = vpack.c.b16 %v959, %v955
      %v1300 = vpack.c.b16 %v960, %v956
      %v1301 = vpack.c.b16 %v961, %v957
      %v1302 = vpack.c.b16 %v966, %v962
      %v1303 = vpack.c.b16 %v967, %v963
      %v1304 = vpack.c.b16 %v968, %v964
      %v1305 = vpack.c.b16 %v969, %v965
      %v1306 = vpack.c.b16 %v974, %v970
      %v1307 = vpack.c.b16 %v975, %v971
      %v1308 = vpack.c.b16 %v976, %v972
      %v1309 = vpack.c.b16 %v977, %v973
      %v1310 = vpack.c.b16 %v982, %v978
      %v1311 = vpack.c.b16 %v983, %v979
      %v1312 = vpack.c.b16 %v984, %v980
      %v1313 = vpack.c.b16 %v985, %v981
      %v1314 = vpack.c.b16 %v990, %v986
      %v1315 = vpack.c.b16 %v991, %v987
      %v1316 = vpack.c.b16 %v992, %v988
      %v1317 = vpack.c.b16 %v993, %v989
      %v1318 = vpack.c.b16 %v998, %v994
      %v1319 = vpack.c.b16 %v999, %v995
      %v1320 = vpack.c.b16 %v1000, %v996
      %v1321 = vpack.c.b16 %v1001, %v997
      %v1322 = vpack.c.b16 %v1006, %v1002
      %v1323 = vpack.c.b16 %v1007, %v1003
      %v1324 = vpack.c.b16 %v1008, %v1004
      %v1325 = vpack.c.b16 %v1009, %v1005
      %v1326 = vpack.c.b16 %v1014, %v1010
      %v1327 = vpack.c.b16 %v1015, %v1011
      %v1328 = vpack.c.b16 %v1016, %v1012
      %v1329 = vpack.c.b16 %v1017, %v1013
      %v1330 = vpack.c.b16 %v1022, %v1018
      %v1331 = vpack.c.b16 %v1023, %v1019
      %v1332 = vpack.c.b16 %v1024, %v1020
      %v1333 = vpack.c.b16 %v1025, %v1021
      %v1334 = vpack.c.b16 %v1030, %v1026
      %v1335 = vpack.c.b16 %v1031, %v1027
      %v1336 = vpack.c.b16 %v1032, %v1028
      %v1337 = vpack.c.b16 %v1033, %v1029
      %v1338 = vpack.c.b16 %v1038, %v1034
      %v1339 = vpack.c.b16 %v1039, %v1035
      %v1340 = vpack.c.b16 %v1040, %v1036
      %v1341 = vpack.c.b16 %v1041, %v1037
      %v1342 = vpack.c.b16 %v1046, %v1042
      %v1343 = vpack.c.b16 %v1047, %v1043
      %v1344 = vpack.c.b16 %v1048, %v1044
      %v1345 = vpack.c.b16 %v1049, %v1045
      %v1346 = vpack.c.b16 %v1054, %v1050
      %v1347 = vpack.c.b16 %v1055, %v1051
      %v1348 = vpack.c.b16 %v1056, %v1052
      %v1349 = vpack.c.b16 %v1057, %v1053
      %v1350 = vpack.c.b16 %v1062, %v1058
      %v1351 = vpack.c.b16 %v1063, %v1059
      %v1352 = vpack.c.b16 %v1064, %v1060
      %v1353 = vpack.c.b16 %v1065, %v1061
      %v1354 = vpack.c.b16 %v1070, %v1066
      %v1355 = vpack.c.b16 %v1071, %v1067
      %v1356 = vpack.c.b16 %v1072, %v1068
      %v1357 = vpack.c.b16 %v1073, %v1069
      %v1358 = vpack.c.b16 %v1078, %v1074
      %v1359 = vpack.c.b16 %v1079, %v1075
      %v1360 = vpack.c.b16 %v1080, %v1076
      %v1361 = vpack.c.b16 %v1081, %v1077
      %v1362 = vpack.c.b16 %v1086, %v1082
      %v1363 = vpack.c.b16 %v1087, %v1083
      %v1364 = vpack.c.b16 %v1088, %v1084
      %v1365 = vpack.c.b16 %v1089, %v1085
      %v1366 = vpack.c.b16 %v1094, %v1090
      %v1367 = vpack.c.b16 %v1095, %v1091
      %v1368 = vpack.c.b16 %v1096, %v1092
      %v1369 = vpack.c.b16 %v1097, %v1093
      %v1370 = vpack.c.b16 %v1102, %v1098
      %v1371 = vpack.c.b16 %v1103, %v1099
      %v1372 = vpack.c.b16 %v1104, %v1100
      %v1373 = vpack.c.b16 %v1105, %v1101
      %v1374 = vpack.c.b16 %v1110, %v1106
      %v1375 = vpack.c.b16 %v1111, %v1107
      %v1376 = vpack.c.b16 %v1112, %v1108
      %v1377 = vpack.c.b16 %v1113, %v1109
      %v1378 = vpack.c.b16 %v1118, %v1114
      %v1379 = vpack.c.b16 %v1119, %v1115
      %v1380 = vpack.c.b16 %v1120, %v1116
      %v1381 = vpack.c.b16 %v1121, %v1117
      %v1382 = vpack.c.b16 %v1126, %v1122
      %v1383 = vpack.c.b16 %v1127, %v1123
      %v1384 = vpack.c.b16 %v1128, %v1124
      %v1385 = vpack.c.b16 %v1129, %v1125
      %v1386 = vpack.c.b16 %v1134, %v1130
      %v1387 = vpack.c.b16 %v1135, %v1131
      %v1388 = vpack.c.b16 %v1136, %v1132
      %v1389 = vpack.c.b16 %v1137, %v1133
      %v1390 = vpack.c.b16 %v1142, %v1138
      %v1391 = vpack.c.b16 %v1143, %v1139
      %v1392 = vpack.c.b16 %v1144, %v1140
      %v1393 = vpack.c.b16 %v1145, %v1141
      %v1394 = vpack.c.b16 %v1150, %v1146
      %v1395 = vpack.c.b16 %v1151, %v1147
      %v1396 = vpack.c.b16 %v1152, %v1148
      %v1397 = vpack.c.b16 %v1153, %v1149
      %v1398 = vpack.c.b16 %v1158, %v1154
      %v1399 = vpack.c.b16 %v1159, %v1155
      %v1400 = vpack.c.b16 %v1160, %v1156
      %v1401 = vpack.c.b16 %v1161, %v1157
      %v1402 = vpack.c.b16 %v1166, %v1162
      %v1403 = vpack.c.b16 %v1167, %v1163
      %v1404 = vpack.c.b16 %v1168, %v1164
      %v1405 = vpack.c.b16 %v1169, %v1165
      %v1406 = vpack.c.b16 %v1174, %v1170
      %v1407 = vpack.c.b16 %v1175, %v1171
      %v1408 = vpack.c.b16 %v1176, %v1172
      %v1409 = vpack.c.b16 %v1177, %v1173
      %v1410 = vpack.c.b16 %v1182, %v1178
      %v1411 = vpack.c.b16 %v1183, %v1179
      %v1412 = vpack.c.b16 %v1184, %v1180
      %v1413 = vpack.c.b16 %v1185, %v1181
      %v1414 = vpack.c.b16 %v1190, %v1186
      %v1415 = vpack.c.b16 %v1191, %v1187
      %v1416 = vpack.c.b16 %v1192, %v1188
      %v1417 = vpack.c.b16 %v1193, %v1189
      %v1418 = vpack.c.b16 %v1198, %v1194
      %v1419 = vpack.c.b16 %v1199, %v1195
      %v1420 = vpack.c.b16 %v1200, %v1196
      %v1421 = vpack.c.b16 %v1201, %v1197
      %v1422 = vpack.c.b16 %v1206, %v1202
      %v1423 = vpack.c.b16 %v1207, %v1203
      %v1424 = vpack.c.b16 %v1208, %v1204
      %v1425 = vpack.c.b16 %v1209, %v1205
      %v1426 = vpack.c.b16 %v1214, %v1210
      %v1427 = vpack.c.b16 %v1215, %v1211
      %v1428 = vpack.c.b16 %v1216, %v1212
      %v1429 = vpack.c.b16 %v1217, %v1213
      %v1430 = vpack.c.b16 %v1222, %v1218
      %v1431 = vpack.c.b16 %v1223, %v1219
      %v1432 = vpack.c.b16 %v1224, %v1220
      %v1433 = vpack.c.b16 %v1225, %v1221
      %v1434 = vpack.c.b16 %v1230, %v1226
      %v1435 = vpack.c.b16 %v1231, %v1227
      %v1436 = vpack.c.b16 %v1232, %v1228
      %v1437 = vpack.c.b16 %v1233, %v1229
      %v1438 = vpack.c.b16 %v1238, %v1234
      %v1439 = vpack.c.b16 %v1239, %v1235
      %v1440 = vpack.c.b16 %v1240, %v1236
      %v1441 = vpack.c.b16 %v1241, %v1237
      %v1442 = vpack.c.b16 %v1246, %v1242
      %v1443 = vpack.c.b16 %v1247, %v1243
      %v1444 = vpack.c.b16 %v1248, %v1244
      %v1445 = vpack.c.b16 %v1249, %v1245
      %vm1642 = vcmask 130048
      %v1644 = vsel %vm1642, %v406, 0
      %v1647 = vsel %vm1642, %v413, 0
      %v1650 = vsel %vm1642, %v420, 0
      %v1653 = vsel %vm1642, %v427, 0
      %v1656 = vsel %vm1642, %v434, 0
      %v1659 = vsel %vm1642, %v441, 0
      %v1662 = vsel %vm1642, %v448, 0
      %v1665 = vsel %vm1642, %v455, 0
      %1667 = vmatpush.bf16.msra.mxu0 %v1278
      %1668 = vmatpush.bf16.msra.mxu0 %v1274
      %1669 = vmatpush.bf16.msra.mxu0 %v1270
      %1670 = vmatpush.bf16.msra.mxu0 %v1266
      %1671 = vmatpush.bf16.msra.mxu0 %v1262
      %1672 = vmatpush.bf16.msra.mxu0 %v1258
      %1673 = vmatpush.bf16.msra.mxu0 %v1254
      %1674 = vmatpush.bf16.msra.mxu0 %v1250
      %1675 = vmatmul.bf16.gmra.mxu0 %v400
      %v1676 = vpop.f32.mrf.mxu0
      %v1677 = vadd.f32 %v654, %v1676
      %v1678 = vpop.f32.mrf.mxu0
      %v1679 = vadd.f32 %v654, %v1678
      %1680 = vmatmul.bf16.gmra.mxu0 %v407
      %v1681 = vpop.f32.mrf.mxu0
      %v1682 = vadd.f32 %v654, %v1681
      %v1683 = vpop.f32.mrf.mxu0
      %v1684 = vadd.f32 %v654, %v1683
      %1685 = vmatmul.bf16.gmra.mxu0 %v414
      %v1686 = vpop.f32.mrf.mxu0
      %v1687 = vadd.f32 %v654, %v1686
      %v1688 = vpop.f32.mrf.mxu0
      %v1689 = vadd.f32 %v654, %v1688
      %1690 = vmatmul.bf16.gmra.mxu0 %v421
      %v1691 = vpop.f32.mrf.mxu0
      %v1692 = vadd.f32 %v654, %v1691
      %v1693 = vpop.f32.mrf.mxu0
      %v1694 = vadd.f32 %v654, %v1693
      %1695 = vmatmul.bf16.gmra.mxu0 %v428
      %v1696 = vpop.f32.mrf.mxu0
      %v1697 = vadd.f32 %v654, %v1696
      %v1698 = vpop.f32.mrf.mxu0
      %v1699 = vadd.f32 %v654, %v1698
      %1700 = vmatmul.bf16.gmra.mxu0 %v435
      %v1701 = vpop.f32.mrf.mxu0
      %v1702 = vadd.f32 %v654, %v1701
      %v1703 = vpop.f32.mrf.mxu0
      %v1704 = vadd.f32 %v654, %v1703
      %1705 = vmatmul.bf16.gmra.mxu0 %v442
      %v1706 = vpop.f32.mrf.mxu0
      %v1707 = vadd.f32 %v654, %v1706
      %v1708 = vpop.f32.mrf.mxu0
      %v1709 = vadd.f32 %v654, %v1708
      %1710 = vmatmul.bf16.gmra.mxu0 %v449
      %v1711 = vpop.f32.mrf.mxu0
      %v1712 = vadd.f32 %v654, %v1711
      %v1713 = vpop.f32.mrf.mxu0
      %v1714 = vadd.f32 %v654, %v1713
      %1715 = vdwg.mxu0
      %1716 = vmatpush.bf16.msra.mxu0 %v1310
      %1717 = vmatpush.bf16.msra.mxu0 %v1306
      %1718 = vmatpush.bf16.msra.mxu0 %v1302
      %1719 = vmatpush.bf16.msra.mxu0 %v1298
      %1720 = vmatpush.bf16.msra.mxu0 %v1294
      %1721 = vmatpush.bf16.msra.mxu0 %v1290
      %1722 = vmatpush.bf16.msra.mxu0 %v1286
      %1723 = vmatpush.bf16.msra.mxu0 %v1282
      %1724 = vmatmul.bf16.gmra.mxu0 %v401
      %v1725 = vpop.f32.mrf.mxu0
      %v1726 = vadd.f32 %v1677, %v1725
      %v1727 = vpop.f32.mrf.mxu0
      %v1728 = vadd.f32 %v1679, %v1727
      %1729 = vmatmul.bf16.gmra.mxu0 %v408
      %v1730 = vpop.f32.mrf.mxu0
      %v1731 = vadd.f32 %v1682, %v1730
      %v1732 = vpop.f32.mrf.mxu0
      %v1733 = vadd.f32 %v1684, %v1732
      %1734 = vmatmul.bf16.gmra.mxu0 %v415
      %v1735 = vpop.f32.mrf.mxu0
      %v1736 = vadd.f32 %v1687, %v1735
      %v1737 = vpop.f32.mrf.mxu0
      %v1738 = vadd.f32 %v1689, %v1737
      %1739 = vmatmul.bf16.gmra.mxu0 %v422
      %v1740 = vpop.f32.mrf.mxu0
      %v1741 = vadd.f32 %v1692, %v1740
      %v1742 = vpop.f32.mrf.mxu0
      %v1743 = vadd.f32 %v1694, %v1742
      %1744 = vmatmul.bf16.gmra.mxu0 %v429
      %v1745 = vpop.f32.mrf.mxu0
      %v1746 = vadd.f32 %v1697, %v1745
      %v1747 = vpop.f32.mrf.mxu0
      %v1748 = vadd.f32 %v1699, %v1747
      %1749 = vmatmul.bf16.gmra.mxu0 %v436
      %v1750 = vpop.f32.mrf.mxu0
      %v1751 = vadd.f32 %v1702, %v1750
      %v1752 = vpop.f32.mrf.mxu0
      %v1753 = vadd.f32 %v1704, %v1752
      %1754 = vmatmul.bf16.gmra.mxu0 %v443
      %v1755 = vpop.f32.mrf.mxu0
      %v1756 = vadd.f32 %v1707, %v1755
      %v1757 = vpop.f32.mrf.mxu0
      %v1758 = vadd.f32 %v1709, %v1757
      %1759 = vmatmul.bf16.gmra.mxu0 %v450
      %v1760 = vpop.f32.mrf.mxu0
      %v1761 = vadd.f32 %v1712, %v1760
      %v1762 = vpop.f32.mrf.mxu0
      %v1763 = vadd.f32 %v1714, %v1762
      %1764 = vdwg.mxu0
      %1765 = vmatpush.bf16.msra.mxu0 %v1342
      %1766 = vmatpush.bf16.msra.mxu0 %v1338
      %1767 = vmatpush.bf16.msra.mxu0 %v1334
      %1768 = vmatpush.bf16.msra.mxu0 %v1330
      %1769 = vmatpush.bf16.msra.mxu0 %v1326
      %1770 = vmatpush.bf16.msra.mxu0 %v1322
      %1771 = vmatpush.bf16.msra.mxu0 %v1318
      %1772 = vmatpush.bf16.msra.mxu0 %v1314
      %1773 = vmatmul.bf16.gmra.mxu0 %v402
      %v1774 = vpop.f32.mrf.mxu0
      %v1775 = vadd.f32 %v1726, %v1774
      %v1776 = vpop.f32.mrf.mxu0
      %v1777 = vadd.f32 %v1728, %v1776
      %1778 = vmatmul.bf16.gmra.mxu0 %v409
      %v1779 = vpop.f32.mrf.mxu0
      %v1780 = vadd.f32 %v1731, %v1779
      %v1781 = vpop.f32.mrf.mxu0
      %v1782 = vadd.f32 %v1733, %v1781
      %1783 = vmatmul.bf16.gmra.mxu0 %v416
      %v1784 = vpop.f32.mrf.mxu0
      %v1785 = vadd.f32 %v1736, %v1784
      %v1786 = vpop.f32.mrf.mxu0
      %v1787 = vadd.f32 %v1738, %v1786
      %1788 = vmatmul.bf16.gmra.mxu0 %v423
      %v1789 = vpop.f32.mrf.mxu0
      %v1790 = vadd.f32 %v1741, %v1789
      %v1791 = vpop.f32.mrf.mxu0
      %v1792 = vadd.f32 %v1743, %v1791
      %1793 = vmatmul.bf16.gmra.mxu0 %v430
      %v1794 = vpop.f32.mrf.mxu0
      %v1795 = vadd.f32 %v1746, %v1794
      %v1796 = vpop.f32.mrf.mxu0
      %v1797 = vadd.f32 %v1748, %v1796
      %1798 = vmatmul.bf16.gmra.mxu0 %v437
      %v1799 = vpop.f32.mrf.mxu0
      %v1800 = vadd.f32 %v1751, %v1799
      %v1801 = vpop.f32.mrf.mxu0
      %v1802 = vadd.f32 %v1753, %v1801
      %1803 = vmatmul.bf16.gmra.mxu0 %v444
      %v1804 = vpop.f32.mrf.mxu0
      %v1805 = vadd.f32 %v1756, %v1804
      %v1806 = vpop.f32.mrf.mxu0
      %v1807 = vadd.f32 %v1758, %v1806
      %1808 = vmatmul.bf16.gmra.mxu0 %v451
      %v1809 = vpop.f32.mrf.mxu0
      %v1810 = vadd.f32 %v1761, %v1809
      %v1811 = vpop.f32.mrf.mxu0
      %v1812 = vadd.f32 %v1763, %v1811
      %1813 = vdwg.mxu0
      %1814 = vmatpush.bf16.msra.mxu0 %v1374
      %1815 = vmatpush.bf16.msra.mxu0 %v1370
      %1816 = vmatpush.bf16.msra.mxu0 %v1366
      %1817 = vmatpush.bf16.msra.mxu0 %v1362
      %1818 = vmatpush.bf16.msra.mxu0 %v1358
      %1819 = vmatpush.bf16.msra.mxu0 %v1354
      %1820 = vmatpush.bf16.msra.mxu0 %v1350
      %1821 = vmatpush.bf16.msra.mxu0 %v1346
      %1822 = vmatmul.bf16.gmra.mxu0 %v403
      %v1823 = vpop.f32.mrf.mxu0
      %v1824 = vadd.f32 %v1775, %v1823
      %v1825 = vpop.f32.mrf.mxu0
      %v1826 = vadd.f32 %v1777, %v1825
      %1827 = vmatmul.bf16.gmra.mxu0 %v410
      %v1828 = vpop.f32.mrf.mxu0
      %v1829 = vadd.f32 %v1780, %v1828
      %v1830 = vpop.f32.mrf.mxu0
      %v1831 = vadd.f32 %v1782, %v1830
      %1832 = vmatmul.bf16.gmra.mxu0 %v417
      %v1833 = vpop.f32.mrf.mxu0
      %v1834 = vadd.f32 %v1785, %v1833
      %v1835 = vpop.f32.mrf.mxu0
      %v1836 = vadd.f32 %v1787, %v1835
      %1837 = vmatmul.bf16.gmra.mxu0 %v424
      %v1838 = vpop.f32.mrf.mxu0
      %v1839 = vadd.f32 %v1790, %v1838
      %v1840 = vpop.f32.mrf.mxu0
      %v1841 = vadd.f32 %v1792, %v1840
      %1842 = vmatmul.bf16.gmra.mxu0 %v431
      %v1843 = vpop.f32.mrf.mxu0
      %v1844 = vadd.f32 %v1795, %v1843
      %v1845 = vpop.f32.mrf.mxu0
      %v1846 = vadd.f32 %v1797, %v1845
      %1847 = vmatmul.bf16.gmra.mxu0 %v438
      %v1848 = vpop.f32.mrf.mxu0
      %v1849 = vadd.f32 %v1800, %v1848
      %v1850 = vpop.f32.mrf.mxu0
      %v1851 = vadd.f32 %v1802, %v1850
      %1852 = vmatmul.bf16.gmra.mxu0 %v445
      %v1853 = vpop.f32.mrf.mxu0
      %v1854 = vadd.f32 %v1805, %v1853
      %v1855 = vpop.f32.mrf.mxu0
      %v1856 = vadd.f32 %v1807, %v1855
      %1857 = vmatmul.bf16.gmra.mxu0 %v452
      %v1858 = vpop.f32.mrf.mxu0
      %v1859 = vadd.f32 %v1810, %v1858
      %v1860 = vpop.f32.mrf.mxu0
      %v1861 = vadd.f32 %v1812, %v1860
      %1862 = vdwg.mxu0
      %1863 = vmatpush.bf16.msra.mxu0 %v1406
      %1864 = vmatpush.bf16.msra.mxu0 %v1402
      %1865 = vmatpush.bf16.msra.mxu0 %v1398
      %1866 = vmatpush.bf16.msra.mxu0 %v1394
      %1867 = vmatpush.bf16.msra.mxu0 %v1390
      %1868 = vmatpush.bf16.msra.mxu0 %v1386
      %1869 = vmatpush.bf16.msra.mxu0 %v1382
      %1870 = vmatpush.bf16.msra.mxu0 %v1378
      %1871 = vmatmul.bf16.gmra.mxu0 %v404
      %v1872 = vpop.f32.mrf.mxu0
      %v1873 = vadd.f32 %v1824, %v1872
      %v1874 = vpop.f32.mrf.mxu0
      %v1875 = vadd.f32 %v1826, %v1874
      %1876 = vmatmul.bf16.gmra.mxu0 %v411
      %v1877 = vpop.f32.mrf.mxu0
      %v1878 = vadd.f32 %v1829, %v1877
      %v1879 = vpop.f32.mrf.mxu0
      %v1880 = vadd.f32 %v1831, %v1879
      %1881 = vmatmul.bf16.gmra.mxu0 %v418
      %v1882 = vpop.f32.mrf.mxu0
      %v1883 = vadd.f32 %v1834, %v1882
      %v1884 = vpop.f32.mrf.mxu0
      %v1885 = vadd.f32 %v1836, %v1884
      %1886 = vmatmul.bf16.gmra.mxu0 %v425
      %v1887 = vpop.f32.mrf.mxu0
      %v1888 = vadd.f32 %v1839, %v1887
      %v1889 = vpop.f32.mrf.mxu0
      %v1890 = vadd.f32 %v1841, %v1889
      %1891 = vmatmul.bf16.gmra.mxu0 %v432
      %v1892 = vpop.f32.mrf.mxu0
      %v1893 = vadd.f32 %v1844, %v1892
      %v1894 = vpop.f32.mrf.mxu0
      %v1895 = vadd.f32 %v1846, %v1894
      %1896 = vmatmul.bf16.gmra.mxu0 %v439
      %v1897 = vpop.f32.mrf.mxu0
      %v1898 = vadd.f32 %v1849, %v1897
      %v1899 = vpop.f32.mrf.mxu0
      %v1900 = vadd.f32 %v1851, %v1899
      %1901 = vmatmul.bf16.gmra.mxu0 %v446
      %v1902 = vpop.f32.mrf.mxu0
      %v1903 = vadd.f32 %v1854, %v1902
      %v1904 = vpop.f32.mrf.mxu0
      %v1905 = vadd.f32 %v1856, %v1904
      %1906 = vmatmul.bf16.gmra.mxu0 %v453
      %v1907 = vpop.f32.mrf.mxu0
      %v1908 = vadd.f32 %v1859, %v1907
      %v1909 = vpop.f32.mrf.mxu0
      %v1910 = vadd.f32 %v1861, %v1909
      %1911 = vdwg.mxu0
      %1912 = vmatpush.bf16.msra.mxu0 %v1438
      %1913 = vmatpush.bf16.msra.mxu0 %v1434
      %1914 = vmatpush.bf16.msra.mxu0 %v1430
      %1915 = vmatpush.bf16.msra.mxu0 %v1426
      %1916 = vmatpush.bf16.msra.mxu0 %v1422
      %1917 = vmatpush.bf16.msra.mxu0 %v1418
      %1918 = vmatpush.bf16.msra.mxu0 %v1414
      %1919 = vmatpush.bf16.msra.mxu0 %v1410
      %1920 = vmatmul.bf16.gmra.mxu0 %v405
      %v1921 = vpop.f32.mrf.mxu0
      %v1922 = vadd.f32 %v1873, %v1921
      %v1923 = vpop.f32.mrf.mxu0
      %v1924 = vadd.f32 %v1875, %v1923
      %1925 = vmatmul.bf16.gmra.mxu0 %v412
      %v1926 = vpop.f32.mrf.mxu0
      %v1927 = vadd.f32 %v1878, %v1926
      %v1928 = vpop.f32.mrf.mxu0
      %v1929 = vadd.f32 %v1880, %v1928
      %1930 = vmatmul.bf16.gmra.mxu0 %v419
      %v1931 = vpop.f32.mrf.mxu0
      %v1932 = vadd.f32 %v1883, %v1931
      %v1933 = vpop.f32.mrf.mxu0
      %v1934 = vadd.f32 %v1885, %v1933
      %1935 = vmatmul.bf16.gmra.mxu0 %v426
      %v1936 = vpop.f32.mrf.mxu0
      %v1937 = vadd.f32 %v1888, %v1936
      %v1938 = vpop.f32.mrf.mxu0
      %v1939 = vadd.f32 %v1890, %v1938
      %1940 = vmatmul.bf16.gmra.mxu0 %v433
      %v1941 = vpop.f32.mrf.mxu0
      %v1942 = vadd.f32 %v1893, %v1941
      %v1943 = vpop.f32.mrf.mxu0
      %v1944 = vadd.f32 %v1895, %v1943
      %1945 = vmatmul.bf16.gmra.mxu0 %v440
      %v1946 = vpop.f32.mrf.mxu0
      %v1947 = vadd.f32 %v1898, %v1946
      %v1948 = vpop.f32.mrf.mxu0
      %v1949 = vadd.f32 %v1900, %v1948
      %1950 = vmatmul.bf16.gmra.mxu0 %v447
      %v1951 = vpop.f32.mrf.mxu0
      %v1952 = vadd.f32 %v1903, %v1951
      %v1953 = vpop.f32.mrf.mxu0
      %v1954 = vadd.f32 %v1905, %v1953
      %1955 = vmatmul.bf16.gmra.mxu0 %v454
      %v1956 = vpop.f32.mrf.mxu0
      %v1957 = vadd.f32 %v1908, %v1956
      %v1958 = vpop.f32.mrf.mxu0
      %v1959 = vadd.f32 %v1910, %v1958
      %1960 = vdwg.mxu0
      %1961 = vmatpush.bf16.msra.mxu0 0
      %1962 = vmatpush.bf16.msra.mxu0 0
      %1963 = vmatpush.bf16.msra.mxu0 0
      %1964 = vmatpush.bf16.msra.mxu0 0
      %1965 = vmatpush.bf16.msra.mxu0 0
      %1966 = vmatpush.bf16.msra.mxu0 0
      %1967 = vmatpush.bf16.msra.mxu0 0
      %1968 = vmatpush.bf16.msra.mxu0 %v1442
      %1969 = vmatmul.bf16.gmra.mxu0 %v1644
      %v1970 = vpop.f32.mrf.mxu0
      %v1971 = vadd.f32 %v1922, %v1970
      %v1972 = vpop.f32.mrf.mxu0
      %v1973 = vadd.f32 %v1924, %v1972
      %1974 = vmatmul.bf16.gmra.mxu0 %v1647
      %v1975 = vpop.f32.mrf.mxu0
      %v1976 = vadd.f32 %v1927, %v1975
      %v1977 = vpop.f32.mrf.mxu0
      %v1978 = vadd.f32 %v1929, %v1977
      %1979 = vmatmul.bf16.gmra.mxu0 %v1650
      %v1980 = vpop.f32.mrf.mxu0
      %v1981 = vadd.f32 %v1932, %v1980
      %v1982 = vpop.f32.mrf.mxu0
      %v1983 = vadd.f32 %v1934, %v1982
      %1984 = vmatmul.bf16.gmra.mxu0 %v1653
      %v1985 = vpop.f32.mrf.mxu0
      %v1986 = vadd.f32 %v1937, %v1985
      %v1987 = vpop.f32.mrf.mxu0
      %v1988 = vadd.f32 %v1939, %v1987
      %1989 = vmatmul.bf16.gmra.mxu0 %v1656
      %v1990 = vpop.f32.mrf.mxu0
      %v1991 = vadd.f32 %v1942, %v1990
      %v1992 = vpop.f32.mrf.mxu0
      %v1993 = vadd.f32 %v1944, %v1992
      %1994 = vmatmul.bf16.gmra.mxu0 %v1659
      %v1995 = vpop.f32.mrf.mxu0
      %v1996 = vadd.f32 %v1947, %v1995
      %v1997 = vpop.f32.mrf.mxu0
      %v1998 = vadd.f32 %v1949, %v1997
      %1999 = vmatmul.bf16.gmra.mxu0 %v1662
      %v2000 = vpop.f32.mrf.mxu0
      %v2001 = vadd.f32 %v1952, %v2000
      %v2002 = vpop.f32.mrf.mxu0
      %v2003 = vadd.f32 %v1954, %v2002
      %2004 = vmatmul.bf16.gmra.mxu0 %v1665
      %v2005 = vpop.f32.mrf.mxu0
      %v2006 = vadd.f32 %v1957, %v2005
      %v2007 = vpop.f32.mrf.mxu0
      %v2008 = vadd.f32 %v1959, %v2007
      %2009 = vdwg.mxu0
      %2010 = vmatpush.bf16.msra.mxu0 %v1279
      %2011 = vmatpush.bf16.msra.mxu0 %v1275
      %2012 = vmatpush.bf16.msra.mxu0 %v1271
      %2013 = vmatpush.bf16.msra.mxu0 %v1267
      %2014 = vmatpush.bf16.msra.mxu0 %v1263
      %2015 = vmatpush.bf16.msra.mxu0 %v1259
      %2016 = vmatpush.bf16.msra.mxu0 %v1255
      %2017 = vmatpush.bf16.msra.mxu0 %v1251
      %2018 = vmatmul.bf16.gmra.mxu0 %v400
      %v2019 = vpop.f32.mrf.mxu0
      %v2020 = vadd.f32 %v655, %v2019
      %v2021 = vpop.f32.mrf.mxu0
      %v2022 = vadd.f32 %v655, %v2021
      %2023 = vmatmul.bf16.gmra.mxu0 %v407
      %v2024 = vpop.f32.mrf.mxu0
      %v2025 = vadd.f32 %v655, %v2024
      %v2026 = vpop.f32.mrf.mxu0
      %v2027 = vadd.f32 %v655, %v2026
      %2028 = vmatmul.bf16.gmra.mxu0 %v414
      %v2029 = vpop.f32.mrf.mxu0
      %v2030 = vadd.f32 %v655, %v2029
      %v2031 = vpop.f32.mrf.mxu0
      %v2032 = vadd.f32 %v655, %v2031
      %2033 = vmatmul.bf16.gmra.mxu0 %v421
      %v2034 = vpop.f32.mrf.mxu0
      %v2035 = vadd.f32 %v655, %v2034
      %v2036 = vpop.f32.mrf.mxu0
      %v2037 = vadd.f32 %v655, %v2036
      %2038 = vmatmul.bf16.gmra.mxu0 %v428
      %v2039 = vpop.f32.mrf.mxu0
      %v2040 = vadd.f32 %v655, %v2039
      %v2041 = vpop.f32.mrf.mxu0
      %v2042 = vadd.f32 %v655, %v2041
      %2043 = vmatmul.bf16.gmra.mxu0 %v435
      %v2044 = vpop.f32.mrf.mxu0
      %v2045 = vadd.f32 %v655, %v2044
      %v2046 = vpop.f32.mrf.mxu0
      %v2047 = vadd.f32 %v655, %v2046
      %2048 = vmatmul.bf16.gmra.mxu0 %v442
      %v2049 = vpop.f32.mrf.mxu0
      %v2050 = vadd.f32 %v655, %v2049
      %v2051 = vpop.f32.mrf.mxu0
      %v2052 = vadd.f32 %v655, %v2051
      %2053 = vmatmul.bf16.gmra.mxu0 %v449
      %v2054 = vpop.f32.mrf.mxu0
      %v2055 = vadd.f32 %v655, %v2054
      %v2056 = vpop.f32.mrf.mxu0
      %v2057 = vadd.f32 %v655, %v2056
      %2058 = vdwg.mxu0
      %2059 = vmatpush.bf16.msra.mxu0 %v1311
      %2060 = vmatpush.bf16.msra.mxu0 %v1307
      %2061 = vmatpush.bf16.msra.mxu0 %v1303
      %2062 = vmatpush.bf16.msra.mxu0 %v1299
      %2063 = vmatpush.bf16.msra.mxu0 %v1295
      %2064 = vmatpush.bf16.msra.mxu0 %v1291
      %2065 = vmatpush.bf16.msra.mxu0 %v1287
      %2066 = vmatpush.bf16.msra.mxu0 %v1283
      %2067 = vmatmul.bf16.gmra.mxu0 %v401
      %v2068 = vpop.f32.mrf.mxu0
      %v2069 = vadd.f32 %v2020, %v2068
      %v2070 = vpop.f32.mrf.mxu0
      %v2071 = vadd.f32 %v2022, %v2070
      %2072 = vmatmul.bf16.gmra.mxu0 %v408
      %v2073 = vpop.f32.mrf.mxu0
      %v2074 = vadd.f32 %v2025, %v2073
      %v2075 = vpop.f32.mrf.mxu0
      %v2076 = vadd.f32 %v2027, %v2075
      %2077 = vmatmul.bf16.gmra.mxu0 %v415
      %v2078 = vpop.f32.mrf.mxu0
      %v2079 = vadd.f32 %v2030, %v2078
      %v2080 = vpop.f32.mrf.mxu0
      %v2081 = vadd.f32 %v2032, %v2080
      %2082 = vmatmul.bf16.gmra.mxu0 %v422
      %v2083 = vpop.f32.mrf.mxu0
      %v2084 = vadd.f32 %v2035, %v2083
      %v2085 = vpop.f32.mrf.mxu0
      %v2086 = vadd.f32 %v2037, %v2085
      %2087 = vmatmul.bf16.gmra.mxu0 %v429
      %v2088 = vpop.f32.mrf.mxu0
      %v2089 = vadd.f32 %v2040, %v2088
      %v2090 = vpop.f32.mrf.mxu0
      %v2091 = vadd.f32 %v2042, %v2090
      %2092 = vmatmul.bf16.gmra.mxu0 %v436
      %v2093 = vpop.f32.mrf.mxu0
      %v2094 = vadd.f32 %v2045, %v2093
      %v2095 = vpop.f32.mrf.mxu0
      %v2096 = vadd.f32 %v2047, %v2095
      %2097 = vmatmul.bf16.gmra.mxu0 %v443
      %v2098 = vpop.f32.mrf.mxu0
      %v2099 = vadd.f32 %v2050, %v2098
      %v2100 = vpop.f32.mrf.mxu0
      %v2101 = vadd.f32 %v2052, %v2100
      %2102 = vmatmul.bf16.gmra.mxu0 %v450
      %v2103 = vpop.f32.mrf.mxu0
      %v2104 = vadd.f32 %v2055, %v2103
      %v2105 = vpop.f32.mrf.mxu0
      %v2106 = vadd.f32 %v2057, %v2105
      %2107 = vdwg.mxu0
      %2108 = vmatpush.bf16.msra.mxu0 %v1343
      %2109 = vmatpush.bf16.msra.mxu0 %v1339
      %2110 = vmatpush.bf16.msra.mxu0 %v1335
      %2111 = vmatpush.bf16.msra.mxu0 %v1331
      %2112 = vmatpush.bf16.msra.mxu0 %v1327
      %2113 = vmatpush.bf16.msra.mxu0 %v1323
      %2114 = vmatpush.bf16.msra.mxu0 %v1319
      %2115 = vmatpush.bf16.msra.mxu0 %v1315
      %2116 = vmatmul.bf16.gmra.mxu0 %v402
      %v2117 = vpop.f32.mrf.mxu0
      %v2118 = vadd.f32 %v2069, %v2117
      %v2119 = vpop.f32.mrf.mxu0
      %v2120 = vadd.f32 %v2071, %v2119
      %2121 = vmatmul.bf16.gmra.mxu0 %v409
      %v2122 = vpop.f32.mrf.mxu0
      %v2123 = vadd.f32 %v2074, %v2122
      %v2124 = vpop.f32.mrf.mxu0
      %v2125 = vadd.f32 %v2076, %v2124
      %2126 = vmatmul.bf16.gmra.mxu0 %v416
      %v2127 = vpop.f32.mrf.mxu0
      %v2128 = vadd.f32 %v2079, %v2127
      %v2129 = vpop.f32.mrf.mxu0
      %v2130 = vadd.f32 %v2081, %v2129
      %2131 = vmatmul.bf16.gmra.mxu0 %v423
      %v2132 = vpop.f32.mrf.mxu0
      %v2133 = vadd.f32 %v2084, %v2132
      %v2134 = vpop.f32.mrf.mxu0
      %v2135 = vadd.f32 %v2086, %v2134
      %2136 = vmatmul.bf16.gmra.mxu0 %v430
      %v2137 = vpop.f32.mrf.mxu0
      %v2138 = vadd.f32 %v2089, %v2137
      %v2139 = vpop.f32.mrf.mxu0
      %v2140 = vadd.f32 %v2091, %v2139
      %2141 = vmatmul.bf16.gmra.mxu0 %v437
      %v2142 = vpop.f32.mrf.mxu0
      %v2143 = vadd.f32 %v2094, %v2142
      %v2144 = vpop.f32.mrf.mxu0
      %v2145 = vadd.f32 %v2096, %v2144
      %2146 = vmatmul.bf16.gmra.mxu0 %v444
      %v2147 = vpop.f32.mrf.mxu0
      %v2148 = vadd.f32 %v2099, %v2147
      %v2149 = vpop.f32.mrf.mxu0
      %v2150 = vadd.f32 %v2101, %v2149
      %2151 = vmatmul.bf16.gmra.mxu0 %v451
      %v2152 = vpop.f32.mrf.mxu0
      %v2153 = vadd.f32 %v2104, %v2152
      %v2154 = vpop.f32.mrf.mxu0
      %v2155 = vadd.f32 %v2106, %v2154
      %2156 = vdwg.mxu0
      %2157 = vmatpush.bf16.msra.mxu0 %v1375
      %2158 = vmatpush.bf16.msra.mxu0 %v1371
      %2159 = vmatpush.bf16.msra.mxu0 %v1367
      %2160 = vmatpush.bf16.msra.mxu0 %v1363
      %2161 = vmatpush.bf16.msra.mxu0 %v1359
      %2162 = vmatpush.bf16.msra.mxu0 %v1355
      %2163 = vmatpush.bf16.msra.mxu0 %v1351
      %2164 = vmatpush.bf16.msra.mxu0 %v1347
      %2165 = vmatmul.bf16.gmra.mxu0 %v403
      %v2166 = vpop.f32.mrf.mxu0
      %v2167 = vadd.f32 %v2118, %v2166
      %v2168 = vpop.f32.mrf.mxu0
      %v2169 = vadd.f32 %v2120, %v2168
      %2170 = vmatmul.bf16.gmra.mxu0 %v410
      %v2171 = vpop.f32.mrf.mxu0
      %v2172 = vadd.f32 %v2123, %v2171
      %v2173 = vpop.f32.mrf.mxu0
      %v2174 = vadd.f32 %v2125, %v2173
      %2175 = vmatmul.bf16.gmra.mxu0 %v417
      %v2176 = vpop.f32.mrf.mxu0
      %v2177 = vadd.f32 %v2128, %v2176
      %v2178 = vpop.f32.mrf.mxu0
      %v2179 = vadd.f32 %v2130, %v2178
      %2180 = vmatmul.bf16.gmra.mxu0 %v424
      %v2181 = vpop.f32.mrf.mxu0
      %v2182 = vadd.f32 %v2133, %v2181
      %v2183 = vpop.f32.mrf.mxu0
      %v2184 = vadd.f32 %v2135, %v2183
      %2185 = vmatmul.bf16.gmra.mxu0 %v431
      %v2186 = vpop.f32.mrf.mxu0
      %v2187 = vadd.f32 %v2138, %v2186
      %v2188 = vpop.f32.mrf.mxu0
      %v2189 = vadd.f32 %v2140, %v2188
      %2190 = vmatmul.bf16.gmra.mxu0 %v438
      %v2191 = vpop.f32.mrf.mxu0
      %v2192 = vadd.f32 %v2143, %v2191
      %v2193 = vpop.f32.mrf.mxu0
      %v2194 = vadd.f32 %v2145, %v2193
      %2195 = vmatmul.bf16.gmra.mxu0 %v445
      %v2196 = vpop.f32.mrf.mxu0
      %v2197 = vadd.f32 %v2148, %v2196
      %v2198 = vpop.f32.mrf.mxu0
      %v2199 = vadd.f32 %v2150, %v2198
      %2200 = vmatmul.bf16.gmra.mxu0 %v452
      %v2201 = vpop.f32.mrf.mxu0
      %v2202 = vadd.f32 %v2153, %v2201
      %v2203 = vpop.f32.mrf.mxu0
      %v2204 = vadd.f32 %v2155, %v2203
      %2205 = vdwg.mxu0
      %2206 = vmatpush.bf16.msra.mxu0 %v1407
      %2207 = vmatpush.bf16.msra.mxu0 %v1403
      %2208 = vmatpush.bf16.msra.mxu0 %v1399
      %2209 = vmatpush.bf16.msra.mxu0 %v1395
      %2210 = vmatpush.bf16.msra.mxu0 %v1391
      %2211 = vmatpush.bf16.msra.mxu0 %v1387
      %2212 = vmatpush.bf16.msra.mxu0 %v1383
      %2213 = vmatpush.bf16.msra.mxu0 %v1379
      %2214 = vmatmul.bf16.gmra.mxu0 %v404
      %v2215 = vpop.f32.mrf.mxu0
      %v2216 = vadd.f32 %v2167, %v2215
      %v2217 = vpop.f32.mrf.mxu0
      %v2218 = vadd.f32 %v2169, %v2217
      %2219 = vmatmul.bf16.gmra.mxu0 %v411
      %v2220 = vpop.f32.mrf.mxu0
      %v2221 = vadd.f32 %v2172, %v2220
      %v2222 = vpop.f32.mrf.mxu0
      %v2223 = vadd.f32 %v2174, %v2222
      %2224 = vmatmul.bf16.gmra.mxu0 %v418
      %v2225 = vpop.f32.mrf.mxu0
      %v2226 = vadd.f32 %v2177, %v2225
      %v2227 = vpop.f32.mrf.mxu0
      %v2228 = vadd.f32 %v2179, %v2227
      %2229 = vmatmul.bf16.gmra.mxu0 %v425
      %v2230 = vpop.f32.mrf.mxu0
      %v2231 = vadd.f32 %v2182, %v2230
      %v2232 = vpop.f32.mrf.mxu0
      %v2233 = vadd.f32 %v2184, %v2232
      %2234 = vmatmul.bf16.gmra.mxu0 %v432
      %v2235 = vpop.f32.mrf.mxu0
      %v2236 = vadd.f32 %v2187, %v2235
      %v2237 = vpop.f32.mrf.mxu0
      %v2238 = vadd.f32 %v2189, %v2237
      %2239 = vmatmul.bf16.gmra.mxu0 %v439
      %v2240 = vpop.f32.mrf.mxu0
      %v2241 = vadd.f32 %v2192, %v2240
      %v2242 = vpop.f32.mrf.mxu0
      %v2243 = vadd.f32 %v2194, %v2242
      %2244 = vmatmul.bf16.gmra.mxu0 %v446
      %v2245 = vpop.f32.mrf.mxu0
      %v2246 = vadd.f32 %v2197, %v2245
      %v2247 = vpop.f32.mrf.mxu0
      %v2248 = vadd.f32 %v2199, %v2247
      %2249 = vmatmul.bf16.gmra.mxu0 %v453
      %v2250 = vpop.f32.mrf.mxu0
      %v2251 = vadd.f32 %v2202, %v2250
      %v2252 = vpop.f32.mrf.mxu0
      %v2253 = vadd.f32 %v2204, %v2252
      %2254 = vdwg.mxu0
      %2255 = vmatpush.bf16.msra.mxu0 %v1439
      %2256 = vmatpush.bf16.msra.mxu0 %v1435
      %2257 = vmatpush.bf16.msra.mxu0 %v1431
      %2258 = vmatpush.bf16.msra.mxu0 %v1427
      %2259 = vmatpush.bf16.msra.mxu0 %v1423
      %2260 = vmatpush.bf16.msra.mxu0 %v1419
      %2261 = vmatpush.bf16.msra.mxu0 %v1415
      %2262 = vmatpush.bf16.msra.mxu0 %v1411
      %2263 = vmatmul.bf16.gmra.mxu0 %v405
      %v2264 = vpop.f32.mrf.mxu0
      %v2265 = vadd.f32 %v2216, %v2264
      %v2266 = vpop.f32.mrf.mxu0
      %v2267 = vadd.f32 %v2218, %v2266
      %2268 = vmatmul.bf16.gmra.mxu0 %v412
      %v2269 = vpop.f32.mrf.mxu0
      %v2270 = vadd.f32 %v2221, %v2269
      %v2271 = vpop.f32.mrf.mxu0
      %v2272 = vadd.f32 %v2223, %v2271
      %2273 = vmatmul.bf16.gmra.mxu0 %v419
      %v2274 = vpop.f32.mrf.mxu0
      %v2275 = vadd.f32 %v2226, %v2274
      %v2276 = vpop.f32.mrf.mxu0
      %v2277 = vadd.f32 %v2228, %v2276
      %2278 = vmatmul.bf16.gmra.mxu0 %v426
      %v2279 = vpop.f32.mrf.mxu0
      %v2280 = vadd.f32 %v2231, %v2279
      %v2281 = vpop.f32.mrf.mxu0
      %v2282 = vadd.f32 %v2233, %v2281
      %2283 = vmatmul.bf16.gmra.mxu0 %v433
      %v2284 = vpop.f32.mrf.mxu0
      %v2285 = vadd.f32 %v2236, %v2284
      %v2286 = vpop.f32.mrf.mxu0
      %v2287 = vadd.f32 %v2238, %v2286
      %2288 = vmatmul.bf16.gmra.mxu0 %v440
      %v2289 = vpop.f32.mrf.mxu0
      %v2290 = vadd.f32 %v2241, %v2289
      %v2291 = vpop.f32.mrf.mxu0
      %v2292 = vadd.f32 %v2243, %v2291
      %2293 = vmatmul.bf16.gmra.mxu0 %v447
      %v2294 = vpop.f32.mrf.mxu0
      %v2295 = vadd.f32 %v2246, %v2294
      %v2296 = vpop.f32.mrf.mxu0
      %v2297 = vadd.f32 %v2248, %v2296
      %2298 = vmatmul.bf16.gmra.mxu0 %v454
      %v2299 = vpop.f32.mrf.mxu0
      %v2300 = vadd.f32 %v2251, %v2299
      %v2301 = vpop.f32.mrf.mxu0
      %v2302 = vadd.f32 %v2253, %v2301
      %2303 = vdwg.mxu0
      %2304 = vmatpush.bf16.msra.mxu0 0
      %2305 = vmatpush.bf16.msra.mxu0 0
      %2306 = vmatpush.bf16.msra.mxu0 0
      %2307 = vmatpush.bf16.msra.mxu0 0
      %2308 = vmatpush.bf16.msra.mxu0 0
      %2309 = vmatpush.bf16.msra.mxu0 0
      %2310 = vmatpush.bf16.msra.mxu0 0
      %2311 = vmatpush.bf16.msra.mxu0 %v1443
      %2312 = vmatmul.bf16.gmra.mxu0 %v1644
      %v2313 = vpop.f32.mrf.mxu0
      %v2314 = vadd.f32 %v2265, %v2313
      %v2315 = vpop.f32.mrf.mxu0
      %v2316 = vadd.f32 %v2267, %v2315
      %2317 = vmatmul.bf16.gmra.mxu0 %v1647
      %v2318 = vpop.f32.mrf.mxu0
      %v2319 = vadd.f32 %v2270, %v2318
      %v2320 = vpop.f32.mrf.mxu0
      %v2321 = vadd.f32 %v2272, %v2320
      %2322 = vmatmul.bf16.gmra.mxu0 %v1650
      %v2323 = vpop.f32.mrf.mxu0
      %v2324 = vadd.f32 %v2275, %v2323
      %v2325 = vpop.f32.mrf.mxu0
      %v2326 = vadd.f32 %v2277, %v2325
      %2327 = vmatmul.bf16.gmra.mxu0 %v1653
      %v2328 = vpop.f32.mrf.mxu0
      %v2329 = vadd.f32 %v2280, %v2328
      %v2330 = vpop.f32.mrf.mxu0
      %v2331 = vadd.f32 %v2282, %v2330
      %2332 = vmatmul.bf16.gmra.mxu0 %v1656
      %v2333 = vpop.f32.mrf.mxu0
      %v2334 = vadd.f32 %v2285, %v2333
      %v2335 = vpop.f32.mrf.mxu0
      %v2336 = vadd.f32 %v2287, %v2335
      %2337 = vmatmul.bf16.gmra.mxu0 %v1659
      %v2338 = vpop.f32.mrf.mxu0
      %v2339 = vadd.f32 %v2290, %v2338
      %v2340 = vpop.f32.mrf.mxu0
      %v2341 = vadd.f32 %v2292, %v2340
      %2342 = vmatmul.bf16.gmra.mxu0 %v1662
      %v2343 = vpop.f32.mrf.mxu0
      %v2344 = vadd.f32 %v2295, %v2343
      %v2345 = vpop.f32.mrf.mxu0
      %v2346 = vadd.f32 %v2297, %v2345
      %2347 = vmatmul.bf16.gmra.mxu0 %v1665
      %v2348 = vpop.f32.mrf.mxu0
      %v2349 = vadd.f32 %v2300, %v2348
      %v2350 = vpop.f32.mrf.mxu0
      %v2351 = vadd.f32 %v2302, %v2350
      %2352 = vdwg.mxu0
      %2353 = vmatpush.bf16.msra.mxu0 %v1280
      %2354 = vmatpush.bf16.msra.mxu0 %v1276
      %2355 = vmatpush.bf16.msra.mxu0 %v1272
      %2356 = vmatpush.bf16.msra.mxu0 %v1268
      %2357 = vmatpush.bf16.msra.mxu0 %v1264
      %2358 = vmatpush.bf16.msra.mxu0 %v1260
      %2359 = vmatpush.bf16.msra.mxu0 %v1256
      %2360 = vmatpush.bf16.msra.mxu0 %v1252
      %2361 = vmatmul.bf16.gmra.mxu0 %v400
      %v2362 = vpop.f32.mrf.mxu0
      %v2363 = vadd.f32 %v656, %v2362
      %v2364 = vpop.f32.mrf.mxu0
      %v2365 = vadd.f32 %v656, %v2364
      %2366 = vmatmul.bf16.gmra.mxu0 %v407
      %v2367 = vpop.f32.mrf.mxu0
      %v2368 = vadd.f32 %v656, %v2367
      %v2369 = vpop.f32.mrf.mxu0
      %v2370 = vadd.f32 %v656, %v2369
      %2371 = vmatmul.bf16.gmra.mxu0 %v414
      %v2372 = vpop.f32.mrf.mxu0
      %v2373 = vadd.f32 %v656, %v2372
      %v2374 = vpop.f32.mrf.mxu0
      %v2375 = vadd.f32 %v656, %v2374
      %2376 = vmatmul.bf16.gmra.mxu0 %v421
      %v2377 = vpop.f32.mrf.mxu0
      %v2378 = vadd.f32 %v656, %v2377
      %v2379 = vpop.f32.mrf.mxu0
      %v2380 = vadd.f32 %v656, %v2379
      %2381 = vmatmul.bf16.gmra.mxu0 %v428
      %v2382 = vpop.f32.mrf.mxu0
      %v2383 = vadd.f32 %v656, %v2382
      %v2384 = vpop.f32.mrf.mxu0
      %v2385 = vadd.f32 %v656, %v2384
      %2386 = vmatmul.bf16.gmra.mxu0 %v435
      %v2387 = vpop.f32.mrf.mxu0
      %v2388 = vadd.f32 %v656, %v2387
      %v2389 = vpop.f32.mrf.mxu0
      %v2390 = vadd.f32 %v656, %v2389
      %2391 = vmatmul.bf16.gmra.mxu0 %v442
      %v2392 = vpop.f32.mrf.mxu0
      %v2393 = vadd.f32 %v656, %v2392
      %v2394 = vpop.f32.mrf.mxu0
      %v2395 = vadd.f32 %v656, %v2394
      %2396 = vmatmul.bf16.gmra.mxu0 %v449
      %v2397 = vpop.f32.mrf.mxu0
      %v2398 = vadd.f32 %v656, %v2397
      %v2399 = vpop.f32.mrf.mxu0
      %v2400 = vadd.f32 %v656, %v2399
      %2401 = vdwg.mxu0
      %2402 = vmatpush.bf16.msra.mxu0 %v1312
      %2403 = vmatpush.bf16.msra.mxu0 %v1308
      %2404 = vmatpush.bf16.msra.mxu0 %v1304
      %2405 = vmatpush.bf16.msra.mxu0 %v1300
      %2406 = vmatpush.bf16.msra.mxu0 %v1296
      %2407 = vmatpush.bf16.msra.mxu0 %v1292
      %2408 = vmatpush.bf16.msra.mxu0 %v1288
      %2409 = vmatpush.bf16.msra.mxu0 %v1284
      %2410 = vmatmul.bf16.gmra.mxu0 %v401
      %v2411 = vpop.f32.mrf.mxu0
      %v2412 = vadd.f32 %v2363, %v2411
      %v2413 = vpop.f32.mrf.mxu0
      %v2414 = vadd.f32 %v2365, %v2413
      %2415 = vmatmul.bf16.gmra.mxu0 %v408
      %v2416 = vpop.f32.mrf.mxu0
      %v2417 = vadd.f32 %v2368, %v2416
      %v2418 = vpop.f32.mrf.mxu0
      %v2419 = vadd.f32 %v2370, %v2418
      %2420 = vmatmul.bf16.gmra.mxu0 %v415
      %v2421 = vpop.f32.mrf.mxu0
      %v2422 = vadd.f32 %v2373, %v2421
      %v2423 = vpop.f32.mrf.mxu0
      %v2424 = vadd.f32 %v2375, %v2423
      %2425 = vmatmul.bf16.gmra.mxu0 %v422
      %v2426 = vpop.f32.mrf.mxu0
      %v2427 = vadd.f32 %v2378, %v2426
      %v2428 = vpop.f32.mrf.mxu0
      %v2429 = vadd.f32 %v2380, %v2428
      %2430 = vmatmul.bf16.gmra.mxu0 %v429
      %v2431 = vpop.f32.mrf.mxu0
      %v2432 = vadd.f32 %v2383, %v2431
      %v2433 = vpop.f32.mrf.mxu0
      %v2434 = vadd.f32 %v2385, %v2433
      %2435 = vmatmul.bf16.gmra.mxu0 %v436
      %v2436 = vpop.f32.mrf.mxu0
      %v2437 = vadd.f32 %v2388, %v2436
      %v2438 = vpop.f32.mrf.mxu0
      %v2439 = vadd.f32 %v2390, %v2438
      %2440 = vmatmul.bf16.gmra.mxu0 %v443
      %v2441 = vpop.f32.mrf.mxu0
      %v2442 = vadd.f32 %v2393, %v2441
      %v2443 = vpop.f32.mrf.mxu0
      %v2444 = vadd.f32 %v2395, %v2443
      %2445 = vmatmul.bf16.gmra.mxu0 %v450
      %v2446 = vpop.f32.mrf.mxu0
      %v2447 = vadd.f32 %v2398, %v2446
      %v2448 = vpop.f32.mrf.mxu0
      %v2449 = vadd.f32 %v2400, %v2448
      %2450 = vdwg.mxu0
      %2451 = vmatpush.bf16.msra.mxu0 %v1344
      %2452 = vmatpush.bf16.msra.mxu0 %v1340
      %2453 = vmatpush.bf16.msra.mxu0 %v1336
      %2454 = vmatpush.bf16.msra.mxu0 %v1332
      %2455 = vmatpush.bf16.msra.mxu0 %v1328
      %2456 = vmatpush.bf16.msra.mxu0 %v1324
      %2457 = vmatpush.bf16.msra.mxu0 %v1320
      %2458 = vmatpush.bf16.msra.mxu0 %v1316
      %2459 = vmatmul.bf16.gmra.mxu0 %v402
      %v2460 = vpop.f32.mrf.mxu0
      %v2461 = vadd.f32 %v2412, %v2460
      %v2462 = vpop.f32.mrf.mxu0
      %v2463 = vadd.f32 %v2414, %v2462
      %2464 = vmatmul.bf16.gmra.mxu0 %v409
      %v2465 = vpop.f32.mrf.mxu0
      %v2466 = vadd.f32 %v2417, %v2465
      %v2467 = vpop.f32.mrf.mxu0
      %v2468 = vadd.f32 %v2419, %v2467
      %2469 = vmatmul.bf16.gmra.mxu0 %v416
      %v2470 = vpop.f32.mrf.mxu0
      %v2471 = vadd.f32 %v2422, %v2470
      %v2472 = vpop.f32.mrf.mxu0
      %v2473 = vadd.f32 %v2424, %v2472
      %2474 = vmatmul.bf16.gmra.mxu0 %v423
      %v2475 = vpop.f32.mrf.mxu0
      %v2476 = vadd.f32 %v2427, %v2475
      %v2477 = vpop.f32.mrf.mxu0
      %v2478 = vadd.f32 %v2429, %v2477
      %2479 = vmatmul.bf16.gmra.mxu0 %v430
      %v2480 = vpop.f32.mrf.mxu0
      %v2481 = vadd.f32 %v2432, %v2480
      %v2482 = vpop.f32.mrf.mxu0
      %v2483 = vadd.f32 %v2434, %v2482
      %2484 = vmatmul.bf16.gmra.mxu0 %v437
      %v2485 = vpop.f32.mrf.mxu0
      %v2486 = vadd.f32 %v2437, %v2485
      %v2487 = vpop.f32.mrf.mxu0
      %v2488 = vadd.f32 %v2439, %v2487
      %2489 = vmatmul.bf16.gmra.mxu0 %v444
      %v2490 = vpop.f32.mrf.mxu0
      %v2491 = vadd.f32 %v2442, %v2490
      %v2492 = vpop.f32.mrf.mxu0
      %v2493 = vadd.f32 %v2444, %v2492
      %2494 = vmatmul.bf16.gmra.mxu0 %v451
      %v2495 = vpop.f32.mrf.mxu0
      %v2496 = vadd.f32 %v2447, %v2495
      %v2497 = vpop.f32.mrf.mxu0
      %v2498 = vadd.f32 %v2449, %v2497
      %2499 = vdwg.mxu0
      %2500 = vmatpush.bf16.msra.mxu0 %v1376
      %2501 = vmatpush.bf16.msra.mxu0 %v1372
      %2502 = vmatpush.bf16.msra.mxu0 %v1368
      %2503 = vmatpush.bf16.msra.mxu0 %v1364
      %2504 = vmatpush.bf16.msra.mxu0 %v1360
      %2505 = vmatpush.bf16.msra.mxu0 %v1356
      %2506 = vmatpush.bf16.msra.mxu0 %v1352
      %2507 = vmatpush.bf16.msra.mxu0 %v1348
      %2508 = vmatmul.bf16.gmra.mxu0 %v403
      %v2509 = vpop.f32.mrf.mxu0
      %v2510 = vadd.f32 %v2461, %v2509
      %v2511 = vpop.f32.mrf.mxu0
      %v2512 = vadd.f32 %v2463, %v2511
      %2513 = vmatmul.bf16.gmra.mxu0 %v410
      %v2514 = vpop.f32.mrf.mxu0
      %v2515 = vadd.f32 %v2466, %v2514
      %v2516 = vpop.f32.mrf.mxu0
      %v2517 = vadd.f32 %v2468, %v2516
      %2518 = vmatmul.bf16.gmra.mxu0 %v417
      %v2519 = vpop.f32.mrf.mxu0
      %v2520 = vadd.f32 %v2471, %v2519
      %v2521 = vpop.f32.mrf.mxu0
      %v2522 = vadd.f32 %v2473, %v2521
      %2523 = vmatmul.bf16.gmra.mxu0 %v424
      %v2524 = vpop.f32.mrf.mxu0
      %v2525 = vadd.f32 %v2476, %v2524
      %v2526 = vpop.f32.mrf.mxu0
      %v2527 = vadd.f32 %v2478, %v2526
      %2528 = vmatmul.bf16.gmra.mxu0 %v431
      %v2529 = vpop.f32.mrf.mxu0
      %v2530 = vadd.f32 %v2481, %v2529
      %v2531 = vpop.f32.mrf.mxu0
      %v2532 = vadd.f32 %v2483, %v2531
      %2533 = vmatmul.bf16.gmra.mxu0 %v438
      %v2534 = vpop.f32.mrf.mxu0
      %v2535 = vadd.f32 %v2486, %v2534
      %v2536 = vpop.f32.mrf.mxu0
      %v2537 = vadd.f32 %v2488, %v2536
      %2538 = vmatmul.bf16.gmra.mxu0 %v445
      %v2539 = vpop.f32.mrf.mxu0
      %v2540 = vadd.f32 %v2491, %v2539
      %v2541 = vpop.f32.mrf.mxu0
      %v2542 = vadd.f32 %v2493, %v2541
      %2543 = vmatmul.bf16.gmra.mxu0 %v452
      %v2544 = vpop.f32.mrf.mxu0
      %v2545 = vadd.f32 %v2496, %v2544
      %v2546 = vpop.f32.mrf.mxu0
      %v2547 = vadd.f32 %v2498, %v2546
      %2548 = vdwg.mxu0
      %2549 = vmatpush.bf16.msra.mxu0 %v1408
      %2550 = vmatpush.bf16.msra.mxu0 %v1404
      %2551 = vmatpush.bf16.msra.mxu0 %v1400
      %2552 = vmatpush.bf16.msra.mxu0 %v1396
      %2553 = vmatpush.bf16.msra.mxu0 %v1392
      %2554 = vmatpush.bf16.msra.mxu0 %v1388
      %2555 = vmatpush.bf16.msra.mxu0 %v1384
      %2556 = vmatpush.bf16.msra.mxu0 %v1380
      %2557 = vmatmul.bf16.gmra.mxu0 %v404
      %v2558 = vpop.f32.mrf.mxu0
      %v2559 = vadd.f32 %v2510, %v2558
      %v2560 = vpop.f32.mrf.mxu0
      %v2561 = vadd.f32 %v2512, %v2560
      %2562 = vmatmul.bf16.gmra.mxu0 %v411
      %v2563 = vpop.f32.mrf.mxu0
      %v2564 = vadd.f32 %v2515, %v2563
      %v2565 = vpop.f32.mrf.mxu0
      %v2566 = vadd.f32 %v2517, %v2565
      %2567 = vmatmul.bf16.gmra.mxu0 %v418
      %v2568 = vpop.f32.mrf.mxu0
      %v2569 = vadd.f32 %v2520, %v2568
      %v2570 = vpop.f32.mrf.mxu0
      %v2571 = vadd.f32 %v2522, %v2570
      %2572 = vmatmul.bf16.gmra.mxu0 %v425
      %v2573 = vpop.f32.mrf.mxu0
      %v2574 = vadd.f32 %v2525, %v2573
      %v2575 = vpop.f32.mrf.mxu0
      %v2576 = vadd.f32 %v2527, %v2575
      %2577 = vmatmul.bf16.gmra.mxu0 %v432
      %v2578 = vpop.f32.mrf.mxu0
      %v2579 = vadd.f32 %v2530, %v2578
      %v2580 = vpop.f32.mrf.mxu0
      %v2581 = vadd.f32 %v2532, %v2580
      %2582 = vmatmul.bf16.gmra.mxu0 %v439
      %v2583 = vpop.f32.mrf.mxu0
      %v2584 = vadd.f32 %v2535, %v2583
      %v2585 = vpop.f32.mrf.mxu0
      %v2586 = vadd.f32 %v2537, %v2585
      %2587 = vmatmul.bf16.gmra.mxu0 %v446
      %v2588 = vpop.f32.mrf.mxu0
      %v2589 = vadd.f32 %v2540, %v2588
      %v2590 = vpop.f32.mrf.mxu0
      %v2591 = vadd.f32 %v2542, %v2590
      %2592 = vmatmul.bf16.gmra.mxu0 %v453
      %v2593 = vpop.f32.mrf.mxu0
      %v2594 = vadd.f32 %v2545, %v2593
      %v2595 = vpop.f32.mrf.mxu0
      %v2596 = vadd.f32 %v2547, %v2595
      %2597 = vdwg.mxu0
      %2598 = vmatpush.bf16.msra.mxu0 %v1440
      %2599 = vmatpush.bf16.msra.mxu0 %v1436
      %2600 = vmatpush.bf16.msra.mxu0 %v1432
      %2601 = vmatpush.bf16.msra.mxu0 %v1428
      %2602 = vmatpush.bf16.msra.mxu0 %v1424
      %2603 = vmatpush.bf16.msra.mxu0 %v1420
      %2604 = vmatpush.bf16.msra.mxu0 %v1416
      %2605 = vmatpush.bf16.msra.mxu0 %v1412
      %2606 = vmatmul.bf16.gmra.mxu0 %v405
      %v2607 = vpop.f32.mrf.mxu0
      %v2608 = vadd.f32 %v2559, %v2607
      %v2609 = vpop.f32.mrf.mxu0
      %v2610 = vadd.f32 %v2561, %v2609
      %2611 = vmatmul.bf16.gmra.mxu0 %v412
      %v2612 = vpop.f32.mrf.mxu0
      %v2613 = vadd.f32 %v2564, %v2612
      %v2614 = vpop.f32.mrf.mxu0
      %v2615 = vadd.f32 %v2566, %v2614
      %2616 = vmatmul.bf16.gmra.mxu0 %v419
      %v2617 = vpop.f32.mrf.mxu0
      %v2618 = vadd.f32 %v2569, %v2617
      %v2619 = vpop.f32.mrf.mxu0
      %v2620 = vadd.f32 %v2571, %v2619
      %2621 = vmatmul.bf16.gmra.mxu0 %v426
      %v2622 = vpop.f32.mrf.mxu0
      %v2623 = vadd.f32 %v2574, %v2622
      %v2624 = vpop.f32.mrf.mxu0
      %v2625 = vadd.f32 %v2576, %v2624
      %2626 = vmatmul.bf16.gmra.mxu0 %v433
      %v2627 = vpop.f32.mrf.mxu0
      %v2628 = vadd.f32 %v2579, %v2627
      %v2629 = vpop.f32.mrf.mxu0
      %v2630 = vadd.f32 %v2581, %v2629
      %2631 = vmatmul.bf16.gmra.mxu0 %v440
      %v2632 = vpop.f32.mrf.mxu0
      %v2633 = vadd.f32 %v2584, %v2632
      %v2634 = vpop.f32.mrf.mxu0
      %v2635 = vadd.f32 %v2586, %v2634
      %2636 = vmatmul.bf16.gmra.mxu0 %v447
      %v2637 = vpop.f32.mrf.mxu0
      %v2638 = vadd.f32 %v2589, %v2637
      %v2639 = vpop.f32.mrf.mxu0
      %v2640 = vadd.f32 %v2591, %v2639
      %2641 = vmatmul.bf16.gmra.mxu0 %v454
      %v2642 = vpop.f32.mrf.mxu0
      %v2643 = vadd.f32 %v2594, %v2642
      %v2644 = vpop.f32.mrf.mxu0
      %v2645 = vadd.f32 %v2596, %v2644
      %2646 = vdwg.mxu0
      %2647 = vmatpush.bf16.msra.mxu0 0
      %2648 = vmatpush.bf16.msra.mxu0 0
      %2649 = vmatpush.bf16.msra.mxu0 0
      %2650 = vmatpush.bf16.msra.mxu0 0
      %2651 = vmatpush.bf16.msra.mxu0 0
      %2652 = vmatpush.bf16.msra.mxu0 0
      %2653 = vmatpush.bf16.msra.mxu0 0
      %2654 = vmatpush.bf16.msra.mxu0 %v1444
      %2655 = vmatmul.bf16.gmra.mxu0 %v1644
      %v2656 = vpop.f32.mrf.mxu0
      %v2657 = vadd.f32 %v2608, %v2656
      %v2658 = vpop.f32.mrf.mxu0
      %v2659 = vadd.f32 %v2610, %v2658
      %2660 = vmatmul.bf16.gmra.mxu0 %v1647
      %v2661 = vpop.f32.mrf.mxu0
      %v2662 = vadd.f32 %v2613, %v2661
      %v2663 = vpop.f32.mrf.mxu0
      %v2664 = vadd.f32 %v2615, %v2663
      %2665 = vmatmul.bf16.gmra.mxu0 %v1650
      %v2666 = vpop.f32.mrf.mxu0
      %v2667 = vadd.f32 %v2618, %v2666
      %v2668 = vpop.f32.mrf.mxu0
      %v2669 = vadd.f32 %v2620, %v2668
      %2670 = vmatmul.bf16.gmra.mxu0 %v1653
      %v2671 = vpop.f32.mrf.mxu0
      %v2672 = vadd.f32 %v2623, %v2671
      %v2673 = vpop.f32.mrf.mxu0
      %v2674 = vadd.f32 %v2625, %v2673
      %2675 = vmatmul.bf16.gmra.mxu0 %v1656
      %v2676 = vpop.f32.mrf.mxu0
      %v2677 = vadd.f32 %v2628, %v2676
      %v2678 = vpop.f32.mrf.mxu0
      %v2679 = vadd.f32 %v2630, %v2678
      %2680 = vmatmul.bf16.gmra.mxu0 %v1659
      %v2681 = vpop.f32.mrf.mxu0
      %v2682 = vadd.f32 %v2633, %v2681
      %v2683 = vpop.f32.mrf.mxu0
      %v2684 = vadd.f32 %v2635, %v2683
      %2685 = vmatmul.bf16.gmra.mxu0 %v1662
      %v2686 = vpop.f32.mrf.mxu0
      %v2687 = vadd.f32 %v2638, %v2686
      %v2688 = vpop.f32.mrf.mxu0
      %v2689 = vadd.f32 %v2640, %v2688
      %2690 = vmatmul.bf16.gmra.mxu0 %v1665
      %v2691 = vpop.f32.mrf.mxu0
      %v2692 = vadd.f32 %v2643, %v2691
      %v2693 = vpop.f32.mrf.mxu0
      %v2694 = vadd.f32 %v2645, %v2693
      %2695 = vdwg.mxu0
      %2696 = vmatpush.bf16.msra.mxu0 %v1281
      %2697 = vmatpush.bf16.msra.mxu0 %v1277
      %2698 = vmatpush.bf16.msra.mxu0 %v1273
      %2699 = vmatpush.bf16.msra.mxu0 %v1269
      %2700 = vmatpush.bf16.msra.mxu0 %v1265
      %2701 = vmatpush.bf16.msra.mxu0 %v1261
      %2702 = vmatpush.bf16.msra.mxu0 %v1257
      %2703 = vmatpush.bf16.msra.mxu0 %v1253
      %2704 = vmatmul.bf16.gmra.mxu0 %v400
      %v2705 = vpop.f32.mrf.mxu0
      %v2706 = vadd.f32 %v657, %v2705
      %v2707 = vpop.f32.mrf.mxu0
      %v2708 = vadd.f32 %v657, %v2707
      %2709 = vmatmul.bf16.gmra.mxu0 %v407
      %v2710 = vpop.f32.mrf.mxu0
      %v2711 = vadd.f32 %v657, %v2710
      %v2712 = vpop.f32.mrf.mxu0
      %v2713 = vadd.f32 %v657, %v2712
      %2714 = vmatmul.bf16.gmra.mxu0 %v414
      %v2715 = vpop.f32.mrf.mxu0
      %v2716 = vadd.f32 %v657, %v2715
      %v2717 = vpop.f32.mrf.mxu0
      %v2718 = vadd.f32 %v657, %v2717
      %2719 = vmatmul.bf16.gmra.mxu0 %v421
      %v2720 = vpop.f32.mrf.mxu0
      %v2721 = vadd.f32 %v657, %v2720
      %v2722 = vpop.f32.mrf.mxu0
      %v2723 = vadd.f32 %v657, %v2722
      %2724 = vmatmul.bf16.gmra.mxu0 %v428
      %v2725 = vpop.f32.mrf.mxu0
      %v2726 = vadd.f32 %v657, %v2725
      %v2727 = vpop.f32.mrf.mxu0
      %v2728 = vadd.f32 %v657, %v2727
      %2729 = vmatmul.bf16.gmra.mxu0 %v435
      %v2730 = vpop.f32.mrf.mxu0
      %v2731 = vadd.f32 %v657, %v2730
      %v2732 = vpop.f32.mrf.mxu0
      %v2733 = vadd.f32 %v657, %v2732
      %2734 = vmatmul.bf16.gmra.mxu0 %v442
      %v2735 = vpop.f32.mrf.mxu0
      %v2736 = vadd.f32 %v657, %v2735
      %v2737 = vpop.f32.mrf.mxu0
      %v2738 = vadd.f32 %v657, %v2737
      %2739 = vmatmul.bf16.gmra.mxu0 %v449
      %v2740 = vpop.f32.mrf.mxu0
      %v2741 = vadd.f32 %v657, %v2740
      %v2742 = vpop.f32.mrf.mxu0
      %v2743 = vadd.f32 %v657, %v2742
      %2744 = vdwg.mxu0
      %2745 = vmatpush.bf16.msra.mxu0 %v1313
      %2746 = vmatpush.bf16.msra.mxu0 %v1309
      %2747 = vmatpush.bf16.msra.mxu0 %v1305
      %2748 = vmatpush.bf16.msra.mxu0 %v1301
      %2749 = vmatpush.bf16.msra.mxu0 %v1297
      %2750 = vmatpush.bf16.msra.mxu0 %v1293
      %2751 = vmatpush.bf16.msra.mxu0 %v1289
      %2752 = vmatpush.bf16.msra.mxu0 %v1285
      %2753 = vmatmul.bf16.gmra.mxu0 %v401
      %v2754 = vpop.f32.mrf.mxu0
      %v2755 = vadd.f32 %v2706, %v2754
      %v2756 = vpop.f32.mrf.mxu0
      %v2757 = vadd.f32 %v2708, %v2756
      %2758 = vmatmul.bf16.gmra.mxu0 %v408
      %v2759 = vpop.f32.mrf.mxu0
      %v2760 = vadd.f32 %v2711, %v2759
      %v2761 = vpop.f32.mrf.mxu0
      %v2762 = vadd.f32 %v2713, %v2761
      %2763 = vmatmul.bf16.gmra.mxu0 %v415
      %v2764 = vpop.f32.mrf.mxu0
      %v2765 = vadd.f32 %v2716, %v2764
      %v2766 = vpop.f32.mrf.mxu0
      %v2767 = vadd.f32 %v2718, %v2766
      %2768 = vmatmul.bf16.gmra.mxu0 %v422
      %v2769 = vpop.f32.mrf.mxu0
      %v2770 = vadd.f32 %v2721, %v2769
      %v2771 = vpop.f32.mrf.mxu0
      %v2772 = vadd.f32 %v2723, %v2771
      %2773 = vmatmul.bf16.gmra.mxu0 %v429
      %v2774 = vpop.f32.mrf.mxu0
      %v2775 = vadd.f32 %v2726, %v2774
      %v2776 = vpop.f32.mrf.mxu0
      %v2777 = vadd.f32 %v2728, %v2776
      %2778 = vmatmul.bf16.gmra.mxu0 %v436
      %v2779 = vpop.f32.mrf.mxu0
      %v2780 = vadd.f32 %v2731, %v2779
      %v2781 = vpop.f32.mrf.mxu0
      %v2782 = vadd.f32 %v2733, %v2781
      %2783 = vmatmul.bf16.gmra.mxu0 %v443
      %v2784 = vpop.f32.mrf.mxu0
      %v2785 = vadd.f32 %v2736, %v2784
      %v2786 = vpop.f32.mrf.mxu0
      %v2787 = vadd.f32 %v2738, %v2786
      %2788 = vmatmul.bf16.gmra.mxu0 %v450
      %v2789 = vpop.f32.mrf.mxu0
      %v2790 = vadd.f32 %v2741, %v2789
      %v2791 = vpop.f32.mrf.mxu0
      %v2792 = vadd.f32 %v2743, %v2791
      %2793 = vdwg.mxu0
      %2794 = vmatpush.bf16.msra.mxu0 %v1345
      %2795 = vmatpush.bf16.msra.mxu0 %v1341
      %2796 = vmatpush.bf16.msra.mxu0 %v1337
      %2797 = vmatpush.bf16.msra.mxu0 %v1333
      %2798 = vmatpush.bf16.msra.mxu0 %v1329
      %2799 = vmatpush.bf16.msra.mxu0 %v1325
      %2800 = vmatpush.bf16.msra.mxu0 %v1321
      %2801 = vmatpush.bf16.msra.mxu0 %v1317
      %2802 = vmatmul.bf16.gmra.mxu0 %v402
      %v2803 = vpop.f32.mrf.mxu0
      %v2804 = vadd.f32 %v2755, %v2803
      %v2805 = vpop.f32.mrf.mxu0
      %v2806 = vadd.f32 %v2757, %v2805
      %2807 = vmatmul.bf16.gmra.mxu0 %v409
      %v2808 = vpop.f32.mrf.mxu0
      %v2809 = vadd.f32 %v2760, %v2808
      %v2810 = vpop.f32.mrf.mxu0
      %v2811 = vadd.f32 %v2762, %v2810
      %2812 = vmatmul.bf16.gmra.mxu0 %v416
      %v2813 = vpop.f32.mrf.mxu0
      %v2814 = vadd.f32 %v2765, %v2813
      %v2815 = vpop.f32.mrf.mxu0
      %v2816 = vadd.f32 %v2767, %v2815
      %2817 = vmatmul.bf16.gmra.mxu0 %v423
      %v2818 = vpop.f32.mrf.mxu0
      %v2819 = vadd.f32 %v2770, %v2818
      %v2820 = vpop.f32.mrf.mxu0
      %v2821 = vadd.f32 %v2772, %v2820
      %2822 = vmatmul.bf16.gmra.mxu0 %v430
      %v2823 = vpop.f32.mrf.mxu0
      %v2824 = vadd.f32 %v2775, %v2823
      %v2825 = vpop.f32.mrf.mxu0
      %v2826 = vadd.f32 %v2777, %v2825
      %2827 = vmatmul.bf16.gmra.mxu0 %v437
      %v2828 = vpop.f32.mrf.mxu0
      %v2829 = vadd.f32 %v2780, %v2828
      %v2830 = vpop.f32.mrf.mxu0
      %v2831 = vadd.f32 %v2782, %v2830
      %2832 = vmatmul.bf16.gmra.mxu0 %v444
      %v2833 = vpop.f32.mrf.mxu0
      %v2834 = vadd.f32 %v2785, %v2833
      %v2835 = vpop.f32.mrf.mxu0
      %v2836 = vadd.f32 %v2787, %v2835
      %2837 = vmatmul.bf16.gmra.mxu0 %v451
      %v2838 = vpop.f32.mrf.mxu0
      %v2839 = vadd.f32 %v2790, %v2838
      %v2840 = vpop.f32.mrf.mxu0
      %v2841 = vadd.f32 %v2792, %v2840
      %2842 = vdwg.mxu0
      %2843 = vmatpush.bf16.msra.mxu0 %v1377
      %2844 = vmatpush.bf16.msra.mxu0 %v1373
      %2845 = vmatpush.bf16.msra.mxu0 %v1369
      %2846 = vmatpush.bf16.msra.mxu0 %v1365
      %2847 = vmatpush.bf16.msra.mxu0 %v1361
      %2848 = vmatpush.bf16.msra.mxu0 %v1357
      %2849 = vmatpush.bf16.msra.mxu0 %v1353
      %2850 = vmatpush.bf16.msra.mxu0 %v1349
      %2851 = vmatmul.bf16.gmra.mxu0 %v403
      %v2852 = vpop.f32.mrf.mxu0
      %v2853 = vadd.f32 %v2804, %v2852
      %v2854 = vpop.f32.mrf.mxu0
      %v2855 = vadd.f32 %v2806, %v2854
      %2856 = vmatmul.bf16.gmra.mxu0 %v410
      %v2857 = vpop.f32.mrf.mxu0
      %v2858 = vadd.f32 %v2809, %v2857
      %v2859 = vpop.f32.mrf.mxu0
      %v2860 = vadd.f32 %v2811, %v2859
      %2861 = vmatmul.bf16.gmra.mxu0 %v417
      %v2862 = vpop.f32.mrf.mxu0
      %v2863 = vadd.f32 %v2814, %v2862
      %v2864 = vpop.f32.mrf.mxu0
      %v2865 = vadd.f32 %v2816, %v2864
      %2866 = vmatmul.bf16.gmra.mxu0 %v424
      %v2867 = vpop.f32.mrf.mxu0
      %v2868 = vadd.f32 %v2819, %v2867
      %v2869 = vpop.f32.mrf.mxu0
      %v2870 = vadd.f32 %v2821, %v2869
      %2871 = vmatmul.bf16.gmra.mxu0 %v431
      %v2872 = vpop.f32.mrf.mxu0
      %v2873 = vadd.f32 %v2824, %v2872
      %v2874 = vpop.f32.mrf.mxu0
      %v2875 = vadd.f32 %v2826, %v2874
      %2876 = vmatmul.bf16.gmra.mxu0 %v438
      %v2877 = vpop.f32.mrf.mxu0
      %v2878 = vadd.f32 %v2829, %v2877
      %v2879 = vpop.f32.mrf.mxu0
      %v2880 = vadd.f32 %v2831, %v2879
      %2881 = vmatmul.bf16.gmra.mxu0 %v445
      %v2882 = vpop.f32.mrf.mxu0
      %v2883 = vadd.f32 %v2834, %v2882
      %v2884 = vpop.f32.mrf.mxu0
      %v2885 = vadd.f32 %v2836, %v2884
      %2886 = vmatmul.bf16.gmra.mxu0 %v452
      %v2887 = vpop.f32.mrf.mxu0
      %v2888 = vadd.f32 %v2839, %v2887
      %v2889 = vpop.f32.mrf.mxu0
      %v2890 = vadd.f32 %v2841, %v2889
      %2891 = vdwg.mxu0
      %2892 = vmatpush.bf16.msra.mxu0 %v1409
      %2893 = vmatpush.bf16.msra.mxu0 %v1405
      %2894 = vmatpush.bf16.msra.mxu0 %v1401
      %2895 = vmatpush.bf16.msra.mxu0 %v1397
      %2896 = vmatpush.bf16.msra.mxu0 %v1393
      %2897 = vmatpush.bf16.msra.mxu0 %v1389
      %2898 = vmatpush.bf16.msra.mxu0 %v1385
      %2899 = vmatpush.bf16.msra.mxu0 %v1381
      %2900 = vmatmul.bf16.gmra.mxu0 %v404
      %v2901 = vpop.f32.mrf.mxu0
      %v2902 = vadd.f32 %v2853, %v2901
      %v2903 = vpop.f32.mrf.mxu0
      %v2904 = vadd.f32 %v2855, %v2903
      %2905 = vmatmul.bf16.gmra.mxu0 %v411
      %v2906 = vpop.f32.mrf.mxu0
      %v2907 = vadd.f32 %v2858, %v2906
      %v2908 = vpop.f32.mrf.mxu0
      %v2909 = vadd.f32 %v2860, %v2908
      %2910 = vmatmul.bf16.gmra.mxu0 %v418
      %v2911 = vpop.f32.mrf.mxu0
      %v2912 = vadd.f32 %v2863, %v2911
      %v2913 = vpop.f32.mrf.mxu0
      %v2914 = vadd.f32 %v2865, %v2913
      %2915 = vmatmul.bf16.gmra.mxu0 %v425
      %v2916 = vpop.f32.mrf.mxu0
      %v2917 = vadd.f32 %v2868, %v2916
      %v2918 = vpop.f32.mrf.mxu0
      %v2919 = vadd.f32 %v2870, %v2918
      %2920 = vmatmul.bf16.gmra.mxu0 %v432
      %v2921 = vpop.f32.mrf.mxu0
      %v2922 = vadd.f32 %v2873, %v2921
      %v2923 = vpop.f32.mrf.mxu0
      %v2924 = vadd.f32 %v2875, %v2923
      %2925 = vmatmul.bf16.gmra.mxu0 %v439
      %v2926 = vpop.f32.mrf.mxu0
      %v2927 = vadd.f32 %v2878, %v2926
      %v2928 = vpop.f32.mrf.mxu0
      %v2929 = vadd.f32 %v2880, %v2928
      %2930 = vmatmul.bf16.gmra.mxu0 %v446
      %v2931 = vpop.f32.mrf.mxu0
      %v2932 = vadd.f32 %v2883, %v2931
      %v2933 = vpop.f32.mrf.mxu0
      %v2934 = vadd.f32 %v2885, %v2933
      %2935 = vmatmul.bf16.gmra.mxu0 %v453
      %v2936 = vpop.f32.mrf.mxu0
      %v2937 = vadd.f32 %v2888, %v2936
      %v2938 = vpop.f32.mrf.mxu0
      %v2939 = vadd.f32 %v2890, %v2938
      %2940 = vdwg.mxu0
      %2941 = vmatpush.bf16.msra.mxu0 %v1441
      %2942 = vmatpush.bf16.msra.mxu0 %v1437
      %2943 = vmatpush.bf16.msra.mxu0 %v1433
      %2944 = vmatpush.bf16.msra.mxu0 %v1429
      %2945 = vmatpush.bf16.msra.mxu0 %v1425
      %2946 = vmatpush.bf16.msra.mxu0 %v1421
      %2947 = vmatpush.bf16.msra.mxu0 %v1417
      %2948 = vmatpush.bf16.msra.mxu0 %v1413
      %2949 = vmatmul.bf16.gmra.mxu0 %v405
      %v2950 = vpop.f32.mrf.mxu0
      %v2951 = vadd.f32 %v2902, %v2950
      %v2952 = vpop.f32.mrf.mxu0
      %v2953 = vadd.f32 %v2904, %v2952
      %2954 = vmatmul.bf16.gmra.mxu0 %v412
      %v2955 = vpop.f32.mrf.mxu0
      %v2956 = vadd.f32 %v2907, %v2955
      %v2957 = vpop.f32.mrf.mxu0
      %v2958 = vadd.f32 %v2909, %v2957
      %2959 = vmatmul.bf16.gmra.mxu0 %v419
      %v2960 = vpop.f32.mrf.mxu0
      %v2961 = vadd.f32 %v2912, %v2960
      %v2962 = vpop.f32.mrf.mxu0
      %v2963 = vadd.f32 %v2914, %v2962
      %2964 = vmatmul.bf16.gmra.mxu0 %v426
      %v2965 = vpop.f32.mrf.mxu0
      %v2966 = vadd.f32 %v2917, %v2965
      %v2967 = vpop.f32.mrf.mxu0
      %v2968 = vadd.f32 %v2919, %v2967
      %2969 = vmatmul.bf16.gmra.mxu0 %v433
      %v2970 = vpop.f32.mrf.mxu0
      %v2971 = vadd.f32 %v2922, %v2970
      %v2972 = vpop.f32.mrf.mxu0
      %v2973 = vadd.f32 %v2924, %v2972
      %2974 = vmatmul.bf16.gmra.mxu0 %v440
      %v2975 = vpop.f32.mrf.mxu0
      %v2976 = vadd.f32 %v2927, %v2975
      %v2977 = vpop.f32.mrf.mxu0
      %v2978 = vadd.f32 %v2929, %v2977
      %2979 = vmatmul.bf16.gmra.mxu0 %v447
      %v2980 = vpop.f32.mrf.mxu0
      %v2981 = vadd.f32 %v2932, %v2980
      %v2982 = vpop.f32.mrf.mxu0
      %v2983 = vadd.f32 %v2934, %v2982
      %2984 = vmatmul.bf16.gmra.mxu0 %v454
      %v2985 = vpop.f32.mrf.mxu0
      %v2986 = vadd.f32 %v2937, %v2985
      %v2987 = vpop.f32.mrf.mxu0
      %v2988 = vadd.f32 %v2939, %v2987
      %2989 = vdwg.mxu0
      %2990 = vmatpush.bf16.msra.mxu0 0
      %2991 = vmatpush.bf16.msra.mxu0 0
      %2992 = vmatpush.bf16.msra.mxu0 0
      %2993 = vmatpush.bf16.msra.mxu0 0
      %2994 = vmatpush.bf16.msra.mxu0 0
      %2995 = vmatpush.bf16.msra.mxu0 0
      %2996 = vmatpush.bf16.msra.mxu0 0
      %2997 = vmatpush.bf16.msra.mxu0 %v1445
      %2998 = vmatmul.bf16.gmra.mxu0 %v1644
      %v2999 = vpop.f32.mrf.mxu0
      %v3000 = vadd.f32 %v2951, %v2999
      %v3001 = vpop.f32.mrf.mxu0
      %v3002 = vadd.f32 %v2953, %v3001
      %3003 = vmatmul.bf16.gmra.mxu0 %v1647
      %v3004 = vpop.f32.mrf.mxu0
      %v3005 = vadd.f32 %v2956, %v3004
      %v3006 = vpop.f32.mrf.mxu0
      %v3007 = vadd.f32 %v2958, %v3006
      %3008 = vmatmul.bf16.gmra.mxu0 %v1650
      %v3009 = vpop.f32.mrf.mxu0
      %v3010 = vadd.f32 %v2961, %v3009
      %v3011 = vpop.f32.mrf.mxu0
      %v3012 = vadd.f32 %v2963, %v3011
      %3013 = vmatmul.bf16.gmra.mxu0 %v1653
      %v3014 = vpop.f32.mrf.mxu0
      %v3015 = vadd.f32 %v2966, %v3014
      %v3016 = vpop.f32.mrf.mxu0
      %v3017 = vadd.f32 %v2968, %v3016
      %3018 = vmatmul.bf16.gmra.mxu0 %v1656
      %v3019 = vpop.f32.mrf.mxu0
      %v3020 = vadd.f32 %v2971, %v3019
      %v3021 = vpop.f32.mrf.mxu0
      %v3022 = vadd.f32 %v2973, %v3021
      %3023 = vmatmul.bf16.gmra.mxu0 %v1659
      %v3024 = vpop.f32.mrf.mxu0
      %v3025 = vadd.f32 %v2976, %v3024
      %v3026 = vpop.f32.mrf.mxu0
      %v3027 = vadd.f32 %v2978, %v3026
      %3028 = vmatmul.bf16.gmra.mxu0 %v1662
      %v3029 = vpop.f32.mrf.mxu0
      %v3030 = vadd.f32 %v2981, %v3029
      %v3031 = vpop.f32.mrf.mxu0
      %v3032 = vadd.f32 %v2983, %v3031
      %3033 = vmatmul.bf16.gmra.mxu0 %v1665
      %v3034 = vpop.f32.mrf.mxu0
      %v3035 = vadd.f32 %v2986, %v3034
      %v3036 = vpop.f32.mrf.mxu0
      %v3037 = vadd.f32 %v2988, %v3036
      %3038 = vdwg.mxu0
      %v3039 = vmul.f32 %v1971, 0.2
      %v3040 = vmul.f32 %v2314, 0.2
      %v3041 = vmul.f32 %v2657, 0.2
      %v3042 = vmul.f32 %v3000, 0.2
      %v3043 = vmul.f32 %v1973, 0.2
      %v3044 = vmul.f32 %v2316, 0.2
      %v3045 = vmul.f32 %v2659, 0.2
      %v3046 = vmul.f32 %v3002, 0.2
      %v3047 = vmul.f32 %v1976, 0.2
      %v3048 = vmul.f32 %v2319, 0.2
      %v3049 = vmul.f32 %v2662, 0.2
      %v3050 = vmul.f32 %v3005, 0.2
      %v3051 = vmul.f32 %v1978, 0.2
      %v3052 = vmul.f32 %v2321, 0.2
      %v3053 = vmul.f32 %v2664, 0.2
      %v3054 = vmul.f32 %v3007, 0.2
      %v3055 = vmul.f32 %v1981, 0.2
      %v3056 = vmul.f32 %v2324, 0.2
      %v3057 = vmul.f32 %v2667, 0.2
      %v3058 = vmul.f32 %v3010, 0.2
      %v3059 = vmul.f32 %v1983, 0.2
      %v3060 = vmul.f32 %v2326, 0.2
      %v3061 = vmul.f32 %v2669, 0.2
      %v3062 = vmul.f32 %v3012, 0.2
      %v3063 = vmul.f32 %v1986, 0.2
      %v3064 = vmul.f32 %v2329, 0.2
      %v3065 = vmul.f32 %v2672, 0.2
      %v3066 = vmul.f32 %v3015, 0.2
      %v3067 = vmul.f32 %v1988, 0.2
      %v3068 = vmul.f32 %v2331, 0.2
      %v3069 = vmul.f32 %v2674, 0.2
      %v3070 = vmul.f32 %v3017, 0.2
      %v3071 = vmul.f32 %v1991, 0.2
      %v3072 = vmul.f32 %v2334, 0.2
      %v3073 = vmul.f32 %v2677, 0.2
      %v3074 = vmul.f32 %v3020, 0.2
      %v3075 = vmul.f32 %v1993, 0.2
      %v3076 = vmul.f32 %v2336, 0.2
      %v3077 = vmul.f32 %v2679, 0.2
      %v3078 = vmul.f32 %v3022, 0.2
      %v3079 = vmul.f32 %v1996, 0.2
      %v3080 = vmul.f32 %v2339, 0.2
      %v3081 = vmul.f32 %v2682, 0.2
      %v3082 = vmul.f32 %v3025, 0.2
      %v3083 = vmul.f32 %v1998, 0.2
      %v3084 = vmul.f32 %v2341, 0.2
      %v3085 = vmul.f32 %v2684, 0.2
      %v3086 = vmul.f32 %v3027, 0.2
      %v3087 = vmul.f32 %v2001, 0.2
      %v3088 = vmul.f32 %v2344, 0.2
      %v3089 = vmul.f32 %v2687, 0.2
      %v3090 = vmul.f32 %v3030, 0.2
      %v3091 = vmul.f32 %v2003, 0.2
      %v3092 = vmul.f32 %v2346, 0.2
      %v3093 = vmul.f32 %v2689, 0.2
      %v3094 = vmul.f32 %v3032, 0.2
      %v3095 = vmul.f32 %v2006, 0.2
      %v3096 = vmul.f32 %v2349, 0.2
      %v3097 = vmul.f32 %v2692, 0.2
      %v3098 = vmul.f32 %v3035, 0.2
      %v3099 = vmul.f32 %v2008, 0.2
      %v3100 = vmul.f32 %v2351, 0.2
      %v3101 = vmul.f32 %v2694, 0.2
      %v3102 = vmul.f32 %v3037, 0.2
      %v3103 = vmax.f32 %v1971, %v3039
      %v3104 = vmax.f32 %v2314, %v3040
      %v3105 = vmax.f32 %v2657, %v3041
      %v3106 = vmax.f32 %v3000, %v3042
      %v3107 = vmax.f32 %v1973, %v3043
      %v3108 = vmax.f32 %v2316, %v3044
      %v3109 = vmax.f32 %v2659, %v3045
      %v3110 = vmax.f32 %v3002, %v3046
      %v3111 = vmax.f32 %v1976, %v3047
      %v3112 = vmax.f32 %v2319, %v3048
      %v3113 = vmax.f32 %v2662, %v3049
      %v3114 = vmax.f32 %v3005, %v3050
      %v3115 = vmax.f32 %v1978, %v3051
      %v3116 = vmax.f32 %v2321, %v3052
      %v3117 = vmax.f32 %v2664, %v3053
      %v3118 = vmax.f32 %v3007, %v3054
      %v3119 = vmax.f32 %v1981, %v3055
      %v3120 = vmax.f32 %v2324, %v3056
      %v3121 = vmax.f32 %v2667, %v3057
      %v3122 = vmax.f32 %v3010, %v3058
      %v3123 = vmax.f32 %v1983, %v3059
      %v3124 = vmax.f32 %v2326, %v3060
      %v3125 = vmax.f32 %v2669, %v3061
      %v3126 = vmax.f32 %v3012, %v3062
      %v3127 = vmax.f32 %v1986, %v3063
      %v3128 = vmax.f32 %v2329, %v3064
      %v3129 = vmax.f32 %v2672, %v3065
      %v3130 = vmax.f32 %v3015, %v3066
      %v3131 = vmax.f32 %v1988, %v3067
      %v3132 = vmax.f32 %v2331, %v3068
      %v3133 = vmax.f32 %v2674, %v3069
      %v3134 = vmax.f32 %v3017, %v3070
      %v3135 = vmax.f32 %v1991, %v3071
      %v3136 = vmax.f32 %v2334, %v3072
      %v3137 = vmax.f32 %v2677, %v3073
      %v3138 = vmax.f32 %v3020, %v3074
      %v3139 = vmax.f32 %v1993, %v3075
      %v3140 = vmax.f32 %v2336, %v3076
      %v3141 = vmax.f32 %v2679, %v3077
      %v3142 = vmax.f32 %v3022, %v3078
      %v3143 = vmax.f32 %v1996, %v3079
      %v3144 = vmax.f32 %v2339, %v3080
      %v3145 = vmax.f32 %v2682, %v3081
      %v3146 = vmax.f32 %v3025, %v3082
      %v3147 = vmax.f32 %v1998, %v3083
      %v3148 = vmax.f32 %v2341, %v3084
      %v3149 = vmax.f32 %v2684, %v3085
      %v3150 = vmax.f32 %v3027, %v3086
      %v3151 = vmax.f32 %v2001, %v3087
      %v3152 = vmax.f32 %v2344, %v3088
      %v3153 = vmax.f32 %v2687, %v3089
      %v3154 = vmax.f32 %v3030, %v3090
      %v3155 = vmax.f32 %v2003, %v3091
      %v3156 = vmax.f32 %v2346, %v3092
      %v3157 = vmax.f32 %v2689, %v3093
      %v3158 = vmax.f32 %v3032, %v3094
      %v3159 = vmax.f32 %v2006, %v3095
      %v3160 = vmax.f32 %v2349, %v3096
      %v3161 = vmax.f32 %v2692, %v3097
      %v3162 = vmax.f32 %v3035, %v3098
      %v3163 = vmax.f32 %v2008, %v3099
      %v3164 = vmax.f32 %v2351, %v3100
      %v3165 = vmax.f32 %v2694, %v3101
      %v3166 = vmax.f32 %v3037, %v3102
      %v3167 = vpack.c.bf16 %v3107, %v3103
      %v3168 = vpack.c.bf16 %v3108, %v3104
      %v3169 = vpack.c.bf16 %v3109, %v3105
      %v3170 = vpack.c.bf16 %v3110, %v3106
      %v3171 = vpack.c.bf16 %v3115, %v3111
      %v3172 = vpack.c.bf16 %v3116, %v3112
      %v3173 = vpack.c.bf16 %v3117, %v3113
      %v3174 = vpack.c.bf16 %v3118, %v3114
      %v3175 = vpack.c.bf16 %v3123, %v3119
      %v3176 = vpack.c.bf16 %v3124, %v3120
      %v3177 = vpack.c.bf16 %v3125, %v3121
      %v3178 = vpack.c.bf16 %v3126, %v3122
      %v3179 = vpack.c.bf16 %v3131, %v3127
      %v3180 = vpack.c.bf16 %v3132, %v3128
      %v3181 = vpack.c.bf16 %v3133, %v3129
      %v3182 = vpack.c.bf16 %v3134, %v3130
      %v3183 = vpack.c.bf16 %v3139, %v3135
      %v3184 = vpack.c.bf16 %v3140, %v3136
      %v3185 = vpack.c.bf16 %v3141, %v3137
      %v3186 = vpack.c.bf16 %v3142, %v3138
      %v3187 = vpack.c.bf16 %v3147, %v3143
      %v3188 = vpack.c.bf16 %v3148, %v3144
      %v3189 = vpack.c.bf16 %v3149, %v3145
      %v3190 = vpack.c.bf16 %v3150, %v3146
      %v3191 = vpack.c.bf16 %v3155, %v3151
      %v3192 = vpack.c.bf16 %v3156, %v3152
      %v3193 = vpack.c.bf16 %v3157, %v3153
      %v3194 = vpack.c.bf16 %v3158, %v3154
      %v3195 = vpack.c.bf16 %v3163, %v3159
      %v3196 = vpack.c.bf16 %v3164, %v3160
      %v3197 = vpack.c.bf16 %v3165, %v3161
      %v3198 = vpack.c.bf16 %v3166, %v3162
      %v3199 = vld [vmem:[%s3] sm:$0xff]
      %v3200 = vld [vmem:[%s3 + $0x8] sm:$0xff]
      %v3201 = vld [vmem:[%s3 + $0x10] sm:$0xff]
      %v3202 = vld [vmem:[%s3 + $0x18] sm:$0xff]
      %v3203 = vld [vmem:[%s3 + $0x20] sm:$0xff]
      %v3204 = vld [vmem:[%s3 + $0x28] sm:$0xff]
      %v3205 = vld [vmem:[%s3 + $0x30] sm:$0xff]
      %v3206 = vld [vmem:[%s3 + $0x38] sm:$0xff]
      %v3207 = vld [vmem:[%s3 + $0x40] sm:$0xff]
      %v3208 = vld [vmem:[%s3 + $0x48] sm:$0xff]
      %v3209 = vld [vmem:[%s3 + $0x50] sm:$0xff]
      %v3210 = vld [vmem:[%s3 + $0x58] sm:$0xff]
      %v3211 = vld [vmem:[%s3 + $0x60] sm:$0xff]
      %v3212 = vld [vmem:[%s3 + $0x68] sm:$0xff]
      %v3213 = vld [vmem:[%s3 + $0x70] sm:$0xff]
      %v3214 = vld [vmem:[%s3 + $0x78] sm:$0xff]
      %v3215 = vld [vmem:[%s3 + $0x80] sm:$0xff]
      %v3216 = vld [vmem:[%s3 + $0x88] sm:$0xff]
      %v3217 = vld [vmem:[%s3 + $0x90] sm:$0xff]
      %v3218 = vld [vmem:[%s3 + $0x98] sm:$0xff]
      %v3219 = vld [vmem:[%s3 + $0xa0] sm:$0xff]
      %v3220 = vld [vmem:[%s3 + $0xa8] sm:$0xff]
      %v3221 = vld [vmem:[%s3 + $0xb0] sm:$0xff]
      %v3222 = vld [vmem:[%s3 + $0xb8] sm:$0xff]
      %v3223 = vld [vmem:[%s3 + $0xc0] sm:$0xff]
      %v3224 = vld [vmem:[%s3 + $0xc8] sm:$0xff]
      %v3225 = vld [vmem:[%s3 + $0xd0] sm:$0xff]
      %v3226 = vld [vmem:[%s3 + $0xd8] sm:$0xff]
      %v3227 = vld [vmem:[%s3 + $0xe0] sm:$0xff]
      %v3228 = vld [vmem:[%s3 + $0xe8] sm:$0xff]
      %v3229 = vld [vmem:[%s3 + $0xf0] sm:$0xff]
      %v3230 = vld [vmem:[%s3 + $0xf8] sm:$0xff]
      %v3231 = vld [vmem:[%s3 + $0x100] sm:$0xff]
      %v3232 = vld [vmem:[%s3 + $0x108] sm:$0xff]
      %v3233 = vld [vmem:[%s3 + $0x110] sm:$0xff]
      %v3234 = vld [vmem:[%s3 + $0x118] sm:$0xff]
      %v3235 = vld [vmem:[%s3 + $0x120] sm:$0xff]
      %v3236 = vld [vmem:[%s3 + $0x128] sm:$0xff]
      %v3237 = vld [vmem:[%s3 + $0x130] sm:$0xff]
      %v3238 = vld [vmem:[%s3 + $0x138] sm:$0xff]
      %v3239 = vld [vmem:[%s3 + $0x140] sm:$0xff]
      %v3240 = vld [vmem:[%s3 + $0x148] sm:$0xff]
      %v3241 = vld [vmem:[%s3 + $0x150] sm:$0xff]
      %v3242 = vld [vmem:[%s3 + $0x158] sm:$0xff]
      %v3243 = vld [vmem:[%s3 + $0x160] sm:$0xff]
      %v3244 = vld [vmem:[%s3 + $0x168] sm:$0xff]
      %v3245 = vld [vmem:[%s3 + $0x170] sm:$0xff]
      %v3246 = vld [vmem:[%s3 + $0x178] sm:$0xff]
      %v3247 = vld [vmem:[%s3 + $0x180] sm:$0xff]
      %v3248 = vld [vmem:[%s3 + $0x188] sm:$0xff]
      %v3249 = vld [vmem:[%s3 + $0x190] sm:$0xff]
      %v3250 = vld [vmem:[%s3 + $0x198] sm:$0xff]
      %v3251 = vld [vmem:[%s3 + $0x1a0] sm:$0xff]
      %v3252 = vld [vmem:[%s3 + $0x1a8] sm:$0xff]
      %v3253 = vld [vmem:[%s3 + $0x1b0] sm:$0xff]
      %v3254 = vld [vmem:[%s3 + $0x1b8] sm:$0xff]
      %v3255 = vld [vmem:[%s3 + $0x1c0] sm:$0xff]
      %v3256 = vld [vmem:[%s3 + $0x1c8] sm:$0xff]
      %v3257 = vld [vmem:[%s3 + $0x1d0] sm:$0xff]
      %v3258 = vld [vmem:[%s3 + $0x1d8] sm:$0xff]
      %v3259 = vld [vmem:[%s3 + $0x1e0] sm:$0xff]
      %v3260 = vld [vmem:[%s3 + $0x1e8] sm:$0xff]
      %v3261 = vld [vmem:[%s3 + $0x1f0] sm:$0xff]
      %v3262 = vld [vmem:[%s3 + $0x1f8] sm:$0xff]
      %v3263 = vld [vmem:[%s4] sm:$0x3]
      %v3265 = vperm.slane %v3263, 0
      %v3266 = vperm.slane %v3263, 1
      %v3333 = vunpack.c.l.b16 %v3199
      %v3334 = vunpack.c.h.b16 %v3199
      %v3335 = vunpack.c.l.b16 %v3200
      %v3336 = vunpack.c.h.b16 %v3200
      %v3337 = vunpack.c.l.b16 %v3201
      %v3338 = vunpack.c.h.b16 %v3201
      %v3339 = vunpack.c.l.b16 %v3202
      %v3340 = vunpack.c.h.b16 %v3202
      %v3341 = vunpack.c.l.b16 %v3203
      %v3342 = vunpack.c.h.b16 %v3203
      %v3343 = vunpack.c.l.b16 %v3204
      %v3344 = vunpack.c.h.b16 %v3204
      %v3345 = vunpack.c.l.b16 %v3205
      %v3346 = vunpack.c.h.b16 %v3205
      %v3347 = vunpack.c.l.b16 %v3206
      %v3348 = vunpack.c.h.b16 %v3206
      %v3349 = vunpack.c.l.b16 %v3207
      %v3350 = vunpack.c.h.b16 %v3207
      %v3351 = vunpack.c.l.b16 %v3208
      %v3352 = vunpack.c.h.b16 %v3208
      %v3353 = vunpack.c.l.b16 %v3209
      %v3354 = vunpack.c.h.b16 %v3209
      %v3355 = vunpack.c.l.b16 %v3210
      %v3356 = vunpack.c.h.b16 %v3210
      %v3357 = vunpack.c.l.b16 %v3211
      %v3358 = vunpack.c.h.b16 %v3211
      %v3359 = vunpack.c.l.b16 %v3212
      %v3360 = vunpack.c.h.b16 %v3212
      %v3361 = vunpack.c.l.b16 %v3213
      %v3362 = vunpack.c.h.b16 %v3213
      %v3363 = vunpack.c.l.b16 %v3214
      %v3364 = vunpack.c.h.b16 %v3214
      %v3365 = vunpack.c.l.b16 %v3215
      %v3366 = vunpack.c.h.b16 %v3215
      %v3367 = vunpack.c.l.b16 %v3216
      %v3368 = vunpack.c.h.b16 %v3216
      %v3369 = vunpack.c.l.b16 %v3217
      %v3370 = vunpack.c.h.b16 %v3217
      %v3371 = vunpack.c.l.b16 %v3218
      %v3372 = vunpack.c.h.b16 %v3218
      %v3373 = vunpack.c.l.b16 %v3219
      %v3374 = vunpack.c.h.b16 %v3219
      %v3375 = vunpack.c.l.b16 %v3220
      %v3376 = vunpack.c.h.b16 %v3220
      %v3377 = vunpack.c.l.b16 %v3221
      %v3378 = vunpack.c.h.b16 %v3221
      %v3379 = vunpack.c.l.b16 %v3222
      %v3380 = vunpack.c.h.b16 %v3222
      %v3381 = vunpack.c.l.b16 %v3223
      %v3382 = vunpack.c.h.b16 %v3223
      %v3383 = vunpack.c.l.b16 %v3224
      %v3384 = vunpack.c.h.b16 %v3224
      %v3385 = vunpack.c.l.b16 %v3225
      %v3386 = vunpack.c.h.b16 %v3225
      %v3387 = vunpack.c.l.b16 %v3226
      %v3388 = vunpack.c.h.b16 %v3226
      %v3389 = vunpack.c.l.b16 %v3227
      %v3390 = vunpack.c.h.b16 %v3227
      %v3391 = vunpack.c.l.b16 %v3228
      %v3392 = vunpack.c.h.b16 %v3228
      %v3393 = vunpack.c.l.b16 %v3229
      %v3394 = vunpack.c.h.b16 %v3229
      %v3395 = vunpack.c.l.b16 %v3230
      %v3396 = vunpack.c.h.b16 %v3230
      %v3397 = vunpack.c.l.b16 %v3231
      %v3398 = vunpack.c.h.b16 %v3231
      %v3399 = vunpack.c.l.b16 %v3232
      %v3400 = vunpack.c.h.b16 %v3232
      %v3401 = vunpack.c.l.b16 %v3233
      %v3402 = vunpack.c.h.b16 %v3233
      %v3403 = vunpack.c.l.b16 %v3234
      %v3404 = vunpack.c.h.b16 %v3234
      %v3405 = vunpack.c.l.b16 %v3235
      %v3406 = vunpack.c.h.b16 %v3235
      %v3407 = vunpack.c.l.b16 %v3236
      %v3408 = vunpack.c.h.b16 %v3236
      %v3409 = vunpack.c.l.b16 %v3237
      %v3410 = vunpack.c.h.b16 %v3237
      %v3411 = vunpack.c.l.b16 %v3238
      %v3412 = vunpack.c.h.b16 %v3238
      %v3413 = vunpack.c.l.b16 %v3239
      %v3414 = vunpack.c.h.b16 %v3239
      %v3415 = vunpack.c.l.b16 %v3240
      %v3416 = vunpack.c.h.b16 %v3240
      %v3417 = vunpack.c.l.b16 %v3241
      %v3418 = vunpack.c.h.b16 %v3241
      %v3419 = vunpack.c.l.b16 %v3242
      %v3420 = vunpack.c.h.b16 %v3242
      %v3421 = vunpack.c.l.b16 %v3243
      %v3422 = vunpack.c.h.b16 %v3243
      %v3423 = vunpack.c.l.b16 %v3244
      %v3424 = vunpack.c.h.b16 %v3244
      %v3425 = vunpack.c.l.b16 %v3245
      %v3426 = vunpack.c.h.b16 %v3245
      %v3427 = vunpack.c.l.b16 %v3246
      %v3428 = vunpack.c.h.b16 %v3246
      %v3429 = vunpack.c.l.b16 %v3247
      %v3430 = vunpack.c.h.b16 %v3247
      %v3431 = vunpack.c.l.b16 %v3248
      %v3432 = vunpack.c.h.b16 %v3248
      %v3433 = vunpack.c.l.b16 %v3249
      %v3434 = vunpack.c.h.b16 %v3249
      %v3435 = vunpack.c.l.b16 %v3250
      %v3436 = vunpack.c.h.b16 %v3250
      %v3437 = vunpack.c.l.b16 %v3251
      %v3438 = vunpack.c.h.b16 %v3251
      %v3439 = vunpack.c.l.b16 %v3252
      %v3440 = vunpack.c.h.b16 %v3252
      %v3441 = vunpack.c.l.b16 %v3253
      %v3442 = vunpack.c.h.b16 %v3253
      %v3443 = vunpack.c.l.b16 %v3254
      %v3444 = vunpack.c.h.b16 %v3254
      %v3445 = vunpack.c.l.b16 %v3255
      %v3446 = vunpack.c.h.b16 %v3255
      %v3447 = vunpack.c.l.b16 %v3256
      %v3448 = vunpack.c.h.b16 %v3256
      %v3449 = vunpack.c.l.b16 %v3257
      %v3450 = vunpack.c.h.b16 %v3257
      %v3451 = vunpack.c.l.b16 %v3258
      %v3452 = vunpack.c.h.b16 %v3258
      %v3453 = vunpack.c.l.b16 %v3259
      %v3454 = vunpack.c.h.b16 %v3259
      %v3455 = vunpack.c.l.b16 %v3260
      %v3456 = vunpack.c.h.b16 %v3260
      %v3457 = vunpack.c.l.b16 %v3261
      %v3458 = vunpack.c.h.b16 %v3261
      %v3459 = vunpack.c.l.b16 %v3262
      %v3460 = vunpack.c.h.b16 %v3262
      %v3461 = vpack.c.b16 %v3335, %v3333
      %v3462 = vpack.c.b16 %v3336, %v3334
      %v3463 = vpack.c.b16 %v3339, %v3337
      %v3464 = vpack.c.b16 %v3340, %v3338
      %v3465 = vpack.c.b16 %v3343, %v3341
      %v3466 = vpack.c.b16 %v3344, %v3342
      %v3467 = vpack.c.b16 %v3347, %v3345
      %v3468 = vpack.c.b16 %v3348, %v3346
      %v3469 = vpack.c.b16 %v3351, %v3349
      %v3470 = vpack.c.b16 %v3352, %v3350
      %v3471 = vpack.c.b16 %v3355, %v3353
      %v3472 = vpack.c.b16 %v3356, %v3354
      %v3473 = vpack.c.b16 %v3359, %v3357
      %v3474 = vpack.c.b16 %v3360, %v3358
      %v3475 = vpack.c.b16 %v3363, %v3361
      %v3476 = vpack.c.b16 %v3364, %v3362
      %v3477 = vpack.c.b16 %v3367, %v3365
      %v3478 = vpack.c.b16 %v3368, %v3366
      %v3479 = vpack.c.b16 %v3371, %v3369
      %v3480 = vpack.c.b16 %v3372, %v3370
      %v3481 = vpack.c.b16 %v3375, %v3373
      %v3482 = vpack.c.b16 %v3376, %v3374
      %v3483 = vpack.c.b16 %v3379, %v3377
      %v3484 = vpack.c.b16 %v3380, %v3378
      %v3485 = vpack.c.b16 %v3383, %v3381
      %v3486 = vpack.c.b16 %v3384, %v3382
      %v3487 = vpack.c.b16 %v3387, %v3385
      %v3488 = vpack.c.b16 %v3388, %v3386
      %v3489 = vpack.c.b16 %v3391, %v3389
      %v3490 = vpack.c.b16 %v3392, %v3390
      %v3491 = vpack.c.b16 %v3395, %v3393
      %v3492 = vpack.c.b16 %v3396, %v3394
      %v3493 = vpack.c.b16 %v3399, %v3397
      %v3494 = vpack.c.b16 %v3400, %v3398
      %v3495 = vpack.c.b16 %v3403, %v3401
      %v3496 = vpack.c.b16 %v3404, %v3402
      %v3497 = vpack.c.b16 %v3407, %v3405
      %v3498 = vpack.c.b16 %v3408, %v3406
      %v3499 = vpack.c.b16 %v3411, %v3409
      %v3500 = vpack.c.b16 %v3412, %v3410
      %v3501 = vpack.c.b16 %v3415, %v3413
      %v3502 = vpack.c.b16 %v3416, %v3414
      %v3503 = vpack.c.b16 %v3419, %v3417
      %v3504 = vpack.c.b16 %v3420, %v3418
      %v3505 = vpack.c.b16 %v3423, %v3421
      %v3506 = vpack.c.b16 %v3424, %v3422
      %v3507 = vpack.c.b16 %v3427, %v3425
      %v3508 = vpack.c.b16 %v3428, %v3426
      %v3509 = vpack.c.b16 %v3431, %v3429
      %v3510 = vpack.c.b16 %v3432, %v3430
      %v3511 = vpack.c.b16 %v3435, %v3433
      %v3512 = vpack.c.b16 %v3436, %v3434
      %v3513 = vpack.c.b16 %v3439, %v3437
      %v3514 = vpack.c.b16 %v3440, %v3438
      %v3515 = vpack.c.b16 %v3443, %v3441
      %v3516 = vpack.c.b16 %v3444, %v3442
      %v3517 = vpack.c.b16 %v3447, %v3445
      %v3518 = vpack.c.b16 %v3448, %v3446
      %v3519 = vpack.c.b16 %v3451, %v3449
      %v3520 = vpack.c.b16 %v3452, %v3450
      %v3521 = vpack.c.b16 %v3455, %v3453
      %v3522 = vpack.c.b16 %v3456, %v3454
      %v3523 = vpack.c.b16 %v3459, %v3457
      %v3524 = vpack.c.b16 %v3460, %v3458
      %3589 = vmatpush.bf16.msra.mxu0 %v3475
      %3590 = vmatpush.bf16.msra.mxu0 %v3473
      %3591 = vmatpush.bf16.msra.mxu0 %v3471
      %3592 = vmatpush.bf16.msra.mxu0 %v3469
      %3593 = vmatpush.bf16.msra.mxu0 %v3467
      %3594 = vmatpush.bf16.msra.mxu0 %v3465
      %3595 = vmatpush.bf16.msra.mxu0 %v3463
      %3596 = vmatpush.bf16.msra.mxu0 %v3461
      %3597 = vmatmul.bf16.gmra.mxu0 %v3167
      %v3598 = vpop.f32.mrf.mxu0
      %v3599 = vadd.f32 %v3265, %v3598
      %v3600 = vpop.f32.mrf.mxu0
      %v3601 = vadd.f32 %v3265, %v3600
      %3602 = vmatmul.bf16.gmra.mxu0 %v3171
      %v3603 = vpop.f32.mrf.mxu0
      %v3604 = vadd.f32 %v3265, %v3603
      %v3605 = vpop.f32.mrf.mxu0
      %v3606 = vadd.f32 %v3265, %v3605
      %3607 = vmatmul.bf16.gmra.mxu0 %v3175
      %v3608 = vpop.f32.mrf.mxu0
      %v3609 = vadd.f32 %v3265, %v3608
      %v3610 = vpop.f32.mrf.mxu0
      %v3611 = vadd.f32 %v3265, %v3610
      %3612 = vmatmul.bf16.gmra.mxu0 %v3179
      %v3613 = vpop.f32.mrf.mxu0
      %v3614 = vadd.f32 %v3265, %v3613
      %v3615 = vpop.f32.mrf.mxu0
      %v3616 = vadd.f32 %v3265, %v3615
      %3617 = vmatmul.bf16.gmra.mxu0 %v3183
      %v3618 = vpop.f32.mrf.mxu0
      %v3619 = vadd.f32 %v3265, %v3618
      %v3620 = vpop.f32.mrf.mxu0
      %v3621 = vadd.f32 %v3265, %v3620
      %3622 = vmatmul.bf16.gmra.mxu0 %v3187
      %v3623 = vpop.f32.mrf.mxu0
      %v3624 = vadd.f32 %v3265, %v3623
      %v3625 = vpop.f32.mrf.mxu0
      %v3626 = vadd.f32 %v3265, %v3625
      %3627 = vmatmul.bf16.gmra.mxu0 %v3191
      %v3628 = vpop.f32.mrf.mxu0
      %v3629 = vadd.f32 %v3265, %v3628
      %v3630 = vpop.f32.mrf.mxu0
      %v3631 = vadd.f32 %v3265, %v3630
      %3632 = vmatmul.bf16.gmra.mxu0 %v3195
      %v3633 = vpop.f32.mrf.mxu0
      %v3634 = vadd.f32 %v3265, %v3633
      %v3635 = vpop.f32.mrf.mxu0
      %v3636 = vadd.f32 %v3265, %v3635
      %3637 = vdwg.mxu0
      %3638 = vmatpush.bf16.msra.mxu0 %v3491
      %3639 = vmatpush.bf16.msra.mxu0 %v3489
      %3640 = vmatpush.bf16.msra.mxu0 %v3487
      %3641 = vmatpush.bf16.msra.mxu0 %v3485
      %3642 = vmatpush.bf16.msra.mxu0 %v3483
      %3643 = vmatpush.bf16.msra.mxu0 %v3481
      %3644 = vmatpush.bf16.msra.mxu0 %v3479
      %3645 = vmatpush.bf16.msra.mxu0 %v3477
      %3646 = vmatmul.bf16.gmra.mxu0 %v3168
      %v3647 = vpop.f32.mrf.mxu0
      %v3648 = vadd.f32 %v3599, %v3647
      %v3649 = vpop.f32.mrf.mxu0
      %v3650 = vadd.f32 %v3601, %v3649
      %3651 = vmatmul.bf16.gmra.mxu0 %v3172
      %v3652 = vpop.f32.mrf.mxu0
      %v3653 = vadd.f32 %v3604, %v3652
      %v3654 = vpop.f32.mrf.mxu0
      %v3655 = vadd.f32 %v3606, %v3654
      %3656 = vmatmul.bf16.gmra.mxu0 %v3176
      %v3657 = vpop.f32.mrf.mxu0
      %v3658 = vadd.f32 %v3609, %v3657
      %v3659 = vpop.f32.mrf.mxu0
      %v3660 = vadd.f32 %v3611, %v3659
      %3661 = vmatmul.bf16.gmra.mxu0 %v3180
      %v3662 = vpop.f32.mrf.mxu0
      %v3663 = vadd.f32 %v3614, %v3662
      %v3664 = vpop.f32.mrf.mxu0
      %v3665 = vadd.f32 %v3616, %v3664
      %3666 = vmatmul.bf16.gmra.mxu0 %v3184
      %v3667 = vpop.f32.mrf.mxu0
      %v3668 = vadd.f32 %v3619, %v3667
      %v3669 = vpop.f32.mrf.mxu0
      %v3670 = vadd.f32 %v3621, %v3669
      %3671 = vmatmul.bf16.gmra.mxu0 %v3188
      %v3672 = vpop.f32.mrf.mxu0
      %v3673 = vadd.f32 %v3624, %v3672
      %v3674 = vpop.f32.mrf.mxu0
      %v3675 = vadd.f32 %v3626, %v3674
      %3676 = vmatmul.bf16.gmra.mxu0 %v3192
      %v3677 = vpop.f32.mrf.mxu0
      %v3678 = vadd.f32 %v3629, %v3677
      %v3679 = vpop.f32.mrf.mxu0
      %v3680 = vadd.f32 %v3631, %v3679
      %3681 = vmatmul.bf16.gmra.mxu0 %v3196
      %v3682 = vpop.f32.mrf.mxu0
      %v3683 = vadd.f32 %v3634, %v3682
      %v3684 = vpop.f32.mrf.mxu0
      %v3685 = vadd.f32 %v3636, %v3684
      %3686 = vdwg.mxu0
      %3687 = vmatpush.bf16.msra.mxu0 %v3507
      %3688 = vmatpush.bf16.msra.mxu0 %v3505
      %3689 = vmatpush.bf16.msra.mxu0 %v3503
      %3690 = vmatpush.bf16.msra.mxu0 %v3501
      %3691 = vmatpush.bf16.msra.mxu0 %v3499
      %3692 = vmatpush.bf16.msra.mxu0 %v3497
      %3693 = vmatpush.bf16.msra.mxu0 %v3495
      %3694 = vmatpush.bf16.msra.mxu0 %v3493
      %3695 = vmatmul.bf16.gmra.mxu0 %v3169
      %v3696 = vpop.f32.mrf.mxu0
      %v3697 = vadd.f32 %v3648, %v3696
      %v3698 = vpop.f32.mrf.mxu0
      %v3699 = vadd.f32 %v3650, %v3698
      %3700 = vmatmul.bf16.gmra.mxu0 %v3173
      %v3701 = vpop.f32.mrf.mxu0
      %v3702 = vadd.f32 %v3653, %v3701
      %v3703 = vpop.f32.mrf.mxu0
      %v3704 = vadd.f32 %v3655, %v3703
      %3705 = vmatmul.bf16.gmra.mxu0 %v3177
      %v3706 = vpop.f32.mrf.mxu0
      %v3707 = vadd.f32 %v3658, %v3706
      %v3708 = vpop.f32.mrf.mxu0
      %v3709 = vadd.f32 %v3660, %v3708
      %3710 = vmatmul.bf16.gmra.mxu0 %v3181
      %v3711 = vpop.f32.mrf.mxu0
      %v3712 = vadd.f32 %v3663, %v3711
      %v3713 = vpop.f32.mrf.mxu0
      %v3714 = vadd.f32 %v3665, %v3713
      %3715 = vmatmul.bf16.gmra.mxu0 %v3185
      %v3716 = vpop.f32.mrf.mxu0
      %v3717 = vadd.f32 %v3668, %v3716
      %v3718 = vpop.f32.mrf.mxu0
      %v3719 = vadd.f32 %v3670, %v3718
      %3720 = vmatmul.bf16.gmra.mxu0 %v3189
      %v3721 = vpop.f32.mrf.mxu0
      %v3722 = vadd.f32 %v3673, %v3721
      %v3723 = vpop.f32.mrf.mxu0
      %v3724 = vadd.f32 %v3675, %v3723
      %3725 = vmatmul.bf16.gmra.mxu0 %v3193
      %v3726 = vpop.f32.mrf.mxu0
      %v3727 = vadd.f32 %v3678, %v3726
      %v3728 = vpop.f32.mrf.mxu0
      %v3729 = vadd.f32 %v3680, %v3728
      %3730 = vmatmul.bf16.gmra.mxu0 %v3197
      %v3731 = vpop.f32.mrf.mxu0
      %v3732 = vadd.f32 %v3683, %v3731
      %v3733 = vpop.f32.mrf.mxu0
      %v3734 = vadd.f32 %v3685, %v3733
      %3735 = vdwg.mxu0
      %3736 = vmatpush.bf16.msra.mxu0 %v3523
      %3737 = vmatpush.bf16.msra.mxu0 %v3521
      %3738 = vmatpush.bf16.msra.mxu0 %v3519
      %3739 = vmatpush.bf16.msra.mxu0 %v3517
      %3740 = vmatpush.bf16.msra.mxu0 %v3515
      %3741 = vmatpush.bf16.msra.mxu0 %v3513
      %3742 = vmatpush.bf16.msra.mxu0 %v3511
      %3743 = vmatpush.bf16.msra.mxu0 %v3509
      %3744 = vmatmul.bf16.gmra.mxu0 %v3170
      %v3745 = vpop.f32.mrf.mxu0
      %v3746 = vadd.f32 %v3697, %v3745
      %v3747 = vpop.f32.mrf.mxu0
      %v3748 = vadd.f32 %v3699, %v3747
      %3749 = vmatmul.bf16.gmra.mxu0 %v3174
      %v3750 = vpop.f32.mrf.mxu0
      %v3751 = vadd.f32 %v3702, %v3750
      %v3752 = vpop.f32.mrf.mxu0
      %v3753 = vadd.f32 %v3704, %v3752
      %3754 = vmatmul.bf16.gmra.mxu0 %v3178
      %v3755 = vpop.f32.mrf.mxu0
      %v3756 = vadd.f32 %v3707, %v3755
      %v3757 = vpop.f32.mrf.mxu0
      %v3758 = vadd.f32 %v3709, %v3757
      %3759 = vmatmul.bf16.gmra.mxu0 %v3182
      %v3760 = vpop.f32.mrf.mxu0
      %v3761 = vadd.f32 %v3712, %v3760
      %v3762 = vpop.f32.mrf.mxu0
      %v3763 = vadd.f32 %v3714, %v3762
      %3764 = vmatmul.bf16.gmra.mxu0 %v3186
      %v3765 = vpop.f32.mrf.mxu0
      %v3766 = vadd.f32 %v3717, %v3765
      %v3767 = vpop.f32.mrf.mxu0
      %v3768 = vadd.f32 %v3719, %v3767
      %3769 = vmatmul.bf16.gmra.mxu0 %v3190
      %v3770 = vpop.f32.mrf.mxu0
      %v3771 = vadd.f32 %v3722, %v3770
      %v3772 = vpop.f32.mrf.mxu0
      %v3773 = vadd.f32 %v3724, %v3772
      %3774 = vmatmul.bf16.gmra.mxu0 %v3194
      %v3775 = vpop.f32.mrf.mxu0
      %v3776 = vadd.f32 %v3727, %v3775
      %v3777 = vpop.f32.mrf.mxu0
      %v3778 = vadd.f32 %v3729, %v3777
      %3779 = vmatmul.bf16.gmra.mxu0 %v3198
      %v3780 = vpop.f32.mrf.mxu0
      %v3781 = vadd.f32 %v3732, %v3780
      %v3782 = vpop.f32.mrf.mxu0
      %v3783 = vadd.f32 %v3734, %v3782
      %3784 = vdwg.mxu0
      %3785 = vmatpush.bf16.msra.mxu0 %v3476
      %3786 = vmatpush.bf16.msra.mxu0 %v3474
      %3787 = vmatpush.bf16.msra.mxu0 %v3472
      %3788 = vmatpush.bf16.msra.mxu0 %v3470
      %3789 = vmatpush.bf16.msra.mxu0 %v3468
      %3790 = vmatpush.bf16.msra.mxu0 %v3466
      %3791 = vmatpush.bf16.msra.mxu0 %v3464
      %3792 = vmatpush.bf16.msra.mxu0 %v3462
      %3793 = vmatmul.bf16.gmra.mxu0 %v3167
      %v3794 = vpop.f32.mrf.mxu0
      %v3795 = vadd.f32 %v3266, %v3794
      %v3796 = vpop.f32.mrf.mxu0
      %v3797 = vadd.f32 %v3266, %v3796
      %3798 = vmatmul.bf16.gmra.mxu0 %v3171
      %v3799 = vpop.f32.mrf.mxu0
      %v3800 = vadd.f32 %v3266, %v3799
      %v3801 = vpop.f32.mrf.mxu0
      %v3802 = vadd.f32 %v3266, %v3801
      %3803 = vmatmul.bf16.gmra.mxu0 %v3175
      %v3804 = vpop.f32.mrf.mxu0
      %v3805 = vadd.f32 %v3266, %v3804
      %v3806 = vpop.f32.mrf.mxu0
      %v3807 = vadd.f32 %v3266, %v3806
      %3808 = vmatmul.bf16.gmra.mxu0 %v3179
      %v3809 = vpop.f32.mrf.mxu0
      %v3810 = vadd.f32 %v3266, %v3809
      %v3811 = vpop.f32.mrf.mxu0
      %v3812 = vadd.f32 %v3266, %v3811
      %3813 = vmatmul.bf16.gmra.mxu0 %v3183
      %v3814 = vpop.f32.mrf.mxu0
      %v3815 = vadd.f32 %v3266, %v3814
      %v3816 = vpop.f32.mrf.mxu0
      %v3817 = vadd.f32 %v3266, %v3816
      %3818 = vmatmul.bf16.gmra.mxu0 %v3187
      %v3819 = vpop.f32.mrf.mxu0
      %v3820 = vadd.f32 %v3266, %v3819
      %v3821 = vpop.f32.mrf.mxu0
      %v3822 = vadd.f32 %v3266, %v3821
      %3823 = vmatmul.bf16.gmra.mxu0 %v3191
      %v3824 = vpop.f32.mrf.mxu0
      %v3825 = vadd.f32 %v3266, %v3824
      %v3826 = vpop.f32.mrf.mxu0
      %v3827 = vadd.f32 %v3266, %v3826
      %3828 = vmatmul.bf16.gmra.mxu0 %v3195
      %v3829 = vpop.f32.mrf.mxu0
      %v3830 = vadd.f32 %v3266, %v3829
      %v3831 = vpop.f32.mrf.mxu0
      %v3832 = vadd.f32 %v3266, %v3831
      %3833 = vdwg.mxu0
      %3834 = vmatpush.bf16.msra.mxu0 %v3492
      %3835 = vmatpush.bf16.msra.mxu0 %v3490
      %3836 = vmatpush.bf16.msra.mxu0 %v3488
      %3837 = vmatpush.bf16.msra.mxu0 %v3486
      %3838 = vmatpush.bf16.msra.mxu0 %v3484
      %3839 = vmatpush.bf16.msra.mxu0 %v3482
      %3840 = vmatpush.bf16.msra.mxu0 %v3480
      %3841 = vmatpush.bf16.msra.mxu0 %v3478
      %3842 = vmatmul.bf16.gmra.mxu0 %v3168
      %v3843 = vpop.f32.mrf.mxu0
      %v3844 = vadd.f32 %v3795, %v3843
      %v3845 = vpop.f32.mrf.mxu0
      %v3846 = vadd.f32 %v3797, %v3845
      %3847 = vmatmul.bf16.gmra.mxu0 %v3172
      %v3848 = vpop.f32.mrf.mxu0
      %v3849 = vadd.f32 %v3800, %v3848
      %v3850 = vpop.f32.mrf.mxu0
      %v3851 = vadd.f32 %v3802, %v3850
      %3852 = vmatmul.bf16.gmra.mxu0 %v3176
      %v3853 = vpop.f32.mrf.mxu0
      %v3854 = vadd.f32 %v3805, %v3853
      %v3855 = vpop.f32.mrf.mxu0
      %v3856 = vadd.f32 %v3807, %v3855
      %3857 = vmatmul.bf16.gmra.mxu0 %v3180
      %v3858 = vpop.f32.mrf.mxu0
      %v3859 = vadd.f32 %v3810, %v3858
      %v3860 = vpop.f32.mrf.mxu0
      %v3861 = vadd.f32 %v3812, %v3860
      %3862 = vmatmul.bf16.gmra.mxu0 %v3184
      %v3863 = vpop.f32.mrf.mxu0
      %v3864 = vadd.f32 %v3815, %v3863
      %v3865 = vpop.f32.mrf.mxu0
      %v3866 = vadd.f32 %v3817, %v3865
      %3867 = vmatmul.bf16.gmra.mxu0 %v3188
      %v3868 = vpop.f32.mrf.mxu0
      %v3869 = vadd.f32 %v3820, %v3868
      %v3870 = vpop.f32.mrf.mxu0
      %v3871 = vadd.f32 %v3822, %v3870
      %3872 = vmatmul.bf16.gmra.mxu0 %v3192
      %v3873 = vpop.f32.mrf.mxu0
      %v3874 = vadd.f32 %v3825, %v3873
      %v3875 = vpop.f32.mrf.mxu0
      %v3876 = vadd.f32 %v3827, %v3875
      %3877 = vmatmul.bf16.gmra.mxu0 %v3196
      %v3878 = vpop.f32.mrf.mxu0
      %v3879 = vadd.f32 %v3830, %v3878
      %v3880 = vpop.f32.mrf.mxu0
      %v3881 = vadd.f32 %v3832, %v3880
      %3882 = vdwg.mxu0
      %3883 = vmatpush.bf16.msra.mxu0 %v3508
      %3884 = vmatpush.bf16.msra.mxu0 %v3506
      %3885 = vmatpush.bf16.msra.mxu0 %v3504
      %3886 = vmatpush.bf16.msra.mxu0 %v3502
      %3887 = vmatpush.bf16.msra.mxu0 %v3500
      %3888 = vmatpush.bf16.msra.mxu0 %v3498
      %3889 = vmatpush.bf16.msra.mxu0 %v3496
      %3890 = vmatpush.bf16.msra.mxu0 %v3494
      %3891 = vmatmul.bf16.gmra.mxu0 %v3169
      %v3892 = vpop.f32.mrf.mxu0
      %v3893 = vadd.f32 %v3844, %v3892
      %v3894 = vpop.f32.mrf.mxu0
      %v3895 = vadd.f32 %v3846, %v3894
      %3896 = vmatmul.bf16.gmra.mxu0 %v3173
      %v3897 = vpop.f32.mrf.mxu0
      %v3898 = vadd.f32 %v3849, %v3897
      %v3899 = vpop.f32.mrf.mxu0
      %v3900 = vadd.f32 %v3851, %v3899
      %3901 = vmatmul.bf16.gmra.mxu0 %v3177
      %v3902 = vpop.f32.mrf.mxu0
      %v3903 = vadd.f32 %v3854, %v3902
      %v3904 = vpop.f32.mrf.mxu0
      %v3905 = vadd.f32 %v3856, %v3904
      %3906 = vmatmul.bf16.gmra.mxu0 %v3181
      %v3907 = vpop.f32.mrf.mxu0
      %v3908 = vadd.f32 %v3859, %v3907
      %v3909 = vpop.f32.mrf.mxu0
      %v3910 = vadd.f32 %v3861, %v3909
      %3911 = vmatmul.bf16.gmra.mxu0 %v3185
      %v3912 = vpop.f32.mrf.mxu0
      %v3913 = vadd.f32 %v3864, %v3912
      %v3914 = vpop.f32.mrf.mxu0
      %v3915 = vadd.f32 %v3866, %v3914
      %3916 = vmatmul.bf16.gmra.mxu0 %v3189
      %v3917 = vpop.f32.mrf.mxu0
      %v3918 = vadd.f32 %v3869, %v3917
      %v3919 = vpop.f32.mrf.mxu0
      %v3920 = vadd.f32 %v3871, %v3919
      %3921 = vmatmul.bf16.gmra.mxu0 %v3193
      %v3922 = vpop.f32.mrf.mxu0
      %v3923 = vadd.f32 %v3874, %v3922
      %v3924 = vpop.f32.mrf.mxu0
      %v3925 = vadd.f32 %v3876, %v3924
      %3926 = vmatmul.bf16.gmra.mxu0 %v3197
      %v3927 = vpop.f32.mrf.mxu0
      %v3928 = vadd.f32 %v3879, %v3927
      %v3929 = vpop.f32.mrf.mxu0
      %v3930 = vadd.f32 %v3881, %v3929
      %3931 = vdwg.mxu0
      %3932 = vmatpush.bf16.msra.mxu0 %v3524
      %3933 = vmatpush.bf16.msra.mxu0 %v3522
      %3934 = vmatpush.bf16.msra.mxu0 %v3520
      %3935 = vmatpush.bf16.msra.mxu0 %v3518
      %3936 = vmatpush.bf16.msra.mxu0 %v3516
      %3937 = vmatpush.bf16.msra.mxu0 %v3514
      %3938 = vmatpush.bf16.msra.mxu0 %v3512
      %3939 = vmatpush.bf16.msra.mxu0 %v3510
      %3940 = vmatmul.bf16.gmra.mxu0 %v3170
      %v3941 = vpop.f32.mrf.mxu0
      %v3942 = vadd.f32 %v3893, %v3941
      %v3943 = vpop.f32.mrf.mxu0
      %v3944 = vadd.f32 %v3895, %v3943
      %3945 = vmatmul.bf16.gmra.mxu0 %v3174
      %v3946 = vpop.f32.mrf.mxu0
      %v3947 = vadd.f32 %v3898, %v3946
      %v3948 = vpop.f32.mrf.mxu0
      %v3949 = vadd.f32 %v3900, %v3948
      %3950 = vmatmul.bf16.gmra.mxu0 %v3178
      %v3951 = vpop.f32.mrf.mxu0
      %v3952 = vadd.f32 %v3903, %v3951
      %v3953 = vpop.f32.mrf.mxu0
      %v3954 = vadd.f32 %v3905, %v3953
      %3955 = vmatmul.bf16.gmra.mxu0 %v3182
      %v3956 = vpop.f32.mrf.mxu0
      %v3957 = vadd.f32 %v3908, %v3956
      %v3958 = vpop.f32.mrf.mxu0
      %v3959 = vadd.f32 %v3910, %v3958
      %3960 = vmatmul.bf16.gmra.mxu0 %v3186
      %v3961 = vpop.f32.mrf.mxu0
      %v3962 = vadd.f32 %v3913, %v3961
      %v3963 = vpop.f32.mrf.mxu0
      %v3964 = vadd.f32 %v3915, %v3963
      %3965 = vmatmul.bf16.gmra.mxu0 %v3190
      %v3966 = vpop.f32.mrf.mxu0
      %v3967 = vadd.f32 %v3918, %v3966
      %v3968 = vpop.f32.mrf.mxu0
      %v3969 = vadd.f32 %v3920, %v3968
      %3970 = vmatmul.bf16.gmra.mxu0 %v3194
      %v3971 = vpop.f32.mrf.mxu0
      %v3972 = vadd.f32 %v3923, %v3971
      %v3973 = vpop.f32.mrf.mxu0
      %v3974 = vadd.f32 %v3925, %v3973
      %3975 = vmatmul.bf16.gmra.mxu0 %v3198
      %v3976 = vpop.f32.mrf.mxu0
      %v3977 = vadd.f32 %v3928, %v3976
      %v3978 = vpop.f32.mrf.mxu0
      %v3979 = vadd.f32 %v3930, %v3978
      %3980 = vdwg.mxu0
      %v3981 = vmul.f32 %v3746, 0.2
      %v3982 = vmul.f32 %v3942, 0.2
      %v3983 = vmul.f32 %v3748, 0.2
      %v3984 = vmul.f32 %v3944, 0.2
      %v3985 = vmul.f32 %v3751, 0.2
      %v3986 = vmul.f32 %v3947, 0.2
      %v3987 = vmul.f32 %v3753, 0.2
      %v3988 = vmul.f32 %v3949, 0.2
      %v3989 = vmul.f32 %v3756, 0.2
      %v3990 = vmul.f32 %v3952, 0.2
      %v3991 = vmul.f32 %v3758, 0.2
      %v3992 = vmul.f32 %v3954, 0.2
      %v3993 = vmul.f32 %v3761, 0.2
      %v3994 = vmul.f32 %v3957, 0.2
      %v3995 = vmul.f32 %v3763, 0.2
      %v3996 = vmul.f32 %v3959, 0.2
      %v3997 = vmul.f32 %v3766, 0.2
      %v3998 = vmul.f32 %v3962, 0.2
      %v3999 = vmul.f32 %v3768, 0.2
      %v4000 = vmul.f32 %v3964, 0.2
      %v4001 = vmul.f32 %v3771, 0.2
      %v4002 = vmul.f32 %v3967, 0.2
      %v4003 = vmul.f32 %v3773, 0.2
      %v4004 = vmul.f32 %v3969, 0.2
      %v4005 = vmul.f32 %v3776, 0.2
      %v4006 = vmul.f32 %v3972, 0.2
      %v4007 = vmul.f32 %v3778, 0.2
      %v4008 = vmul.f32 %v3974, 0.2
      %v4009 = vmul.f32 %v3781, 0.2
      %v4010 = vmul.f32 %v3977, 0.2
      %v4011 = vmul.f32 %v3783, 0.2
      %v4012 = vmul.f32 %v3979, 0.2
      %v4013 = vmax.f32 %v3746, %v3981
      %v4014 = vmax.f32 %v3942, %v3982
      %v4015 = vmax.f32 %v3748, %v3983
      %v4016 = vmax.f32 %v3944, %v3984
      %v4017 = vmax.f32 %v3751, %v3985
      %v4018 = vmax.f32 %v3947, %v3986
      %v4019 = vmax.f32 %v3753, %v3987
      %v4020 = vmax.f32 %v3949, %v3988
      %v4021 = vmax.f32 %v3756, %v3989
      %v4022 = vmax.f32 %v3952, %v3990
      %v4023 = vmax.f32 %v3758, %v3991
      %v4024 = vmax.f32 %v3954, %v3992
      %v4025 = vmax.f32 %v3761, %v3993
      %v4026 = vmax.f32 %v3957, %v3994
      %v4027 = vmax.f32 %v3763, %v3995
      %v4028 = vmax.f32 %v3959, %v3996
      %v4029 = vmax.f32 %v3766, %v3997
      %v4030 = vmax.f32 %v3962, %v3998
      %v4031 = vmax.f32 %v3768, %v3999
      %v4032 = vmax.f32 %v3964, %v4000
      %v4033 = vmax.f32 %v3771, %v4001
      %v4034 = vmax.f32 %v3967, %v4002
      %v4035 = vmax.f32 %v3773, %v4003
      %v4036 = vmax.f32 %v3969, %v4004
      %v4037 = vmax.f32 %v3776, %v4005
      %v4038 = vmax.f32 %v3972, %v4006
      %v4039 = vmax.f32 %v3778, %v4007
      %v4040 = vmax.f32 %v3974, %v4008
      %v4041 = vmax.f32 %v3781, %v4009
      %v4042 = vmax.f32 %v3977, %v4010
      %v4043 = vmax.f32 %v3783, %v4011
      %v4044 = vmax.f32 %v3979, %v4012
      %v4045 = vpack.c.bf16 %v4015, %v4013
      %v4046 = vpack.c.bf16 %v4016, %v4014
      %v4047 = vpack.c.bf16 %v4019, %v4017
      %v4048 = vpack.c.bf16 %v4020, %v4018
      %v4049 = vpack.c.bf16 %v4023, %v4021
      %v4050 = vpack.c.bf16 %v4024, %v4022
      %v4051 = vpack.c.bf16 %v4027, %v4025
      %v4052 = vpack.c.bf16 %v4028, %v4026
      %v4053 = vpack.c.bf16 %v4031, %v4029
      %v4054 = vpack.c.bf16 %v4032, %v4030
      %v4055 = vpack.c.bf16 %v4035, %v4033
      %v4056 = vpack.c.bf16 %v4036, %v4034
      %v4057 = vpack.c.bf16 %v4039, %v4037
      %v4058 = vpack.c.bf16 %v4040, %v4038
      %v4059 = vpack.c.bf16 %v4043, %v4041
      %v4060 = vpack.c.bf16 %v4044, %v4042
      %v4061 = vld [vmem:[%s5] sm:$0xf]
      %v4062 = vld [vmem:[%s5 + $0x4] sm:$0xf]
      %v4063 = vld [vmem:[%s5 + $0x8] sm:$0xf]
      %v4064 = vld [vmem:[%s5 + $0xc] sm:$0xf]
      %v4065 = vld [vmem:[%s5 + $0x10] sm:$0xf]
      %v4066 = vld [vmem:[%s5 + $0x14] sm:$0xf]
      %v4067 = vld [vmem:[%s5 + $0x18] sm:$0xf]
      %v4068 = vld [vmem:[%s5 + $0x1c] sm:$0xf]
      %v4069 = vld [vmem:[%s5 + $0x20] sm:$0xf]
      %v4070 = vld [vmem:[%s5 + $0x24] sm:$0xf]
      %v4071 = vld [vmem:[%s5 + $0x28] sm:$0xf]
      %v4072 = vld [vmem:[%s5 + $0x2c] sm:$0xf]
      %v4073 = vld [vmem:[%s5 + $0x30] sm:$0xf]
      %v4074 = vld [vmem:[%s5 + $0x34] sm:$0xf]
      %v4075 = vld [vmem:[%s5 + $0x38] sm:$0xf]
      %v4076 = vld [vmem:[%s5 + $0x3c] sm:$0xf]
      %v4077 = vld [vmem:[%s5 + $0x40] sm:$0xf]
      %v4078 = vld [vmem:[%s5 + $0x44] sm:$0xf]
      %v4079 = vld [vmem:[%s5 + $0x48] sm:$0xf]
      %v4080 = vld [vmem:[%s5 + $0x4c] sm:$0xf]
      %v4081 = vld [vmem:[%s5 + $0x50] sm:$0xf]
      %v4082 = vld [vmem:[%s5 + $0x54] sm:$0xf]
      %v4083 = vld [vmem:[%s5 + $0x58] sm:$0xf]
      %v4084 = vld [vmem:[%s5 + $0x5c] sm:$0xf]
      %v4085 = vld [vmem:[%s5 + $0x60] sm:$0xf]
      %v4086 = vld [vmem:[%s5 + $0x64] sm:$0xf]
      %v4087 = vld [vmem:[%s5 + $0x68] sm:$0xf]
      %v4088 = vld [vmem:[%s5 + $0x6c] sm:$0xf]
      %v4089 = vld [vmem:[%s5 + $0x70] sm:$0xf]
      %v4090 = vld [vmem:[%s5 + $0x74] sm:$0xf]
      %v4091 = vld [vmem:[%s5 + $0x78] sm:$0xf]
      %v4092 = vld [vmem:[%s5 + $0x7c] sm:$0xf]
      %v4125 = vunpack.c.l.b16 %v4061
      %v4126 = vunpack.c.l.b16 %v4062
      %v4127 = vunpack.c.l.b16 %v4063
      %v4128 = vunpack.c.l.b16 %v4064
      %v4129 = vunpack.c.l.b16 %v4065
      %v4130 = vunpack.c.l.b16 %v4066
      %v4131 = vunpack.c.l.b16 %v4067
      %v4132 = vunpack.c.l.b16 %v4068
      %v4133 = vunpack.c.l.b16 %v4069
      %v4134 = vunpack.c.l.b16 %v4070
      %v4135 = vunpack.c.l.b16 %v4071
      %v4136 = vunpack.c.l.b16 %v4072
      %v4137 = vunpack.c.l.b16 %v4073
      %v4138 = vunpack.c.l.b16 %v4074
      %v4139 = vunpack.c.l.b16 %v4075
      %v4140 = vunpack.c.l.b16 %v4076
      %v4141 = vunpack.c.l.b16 %v4077
      %v4142 = vunpack.c.l.b16 %v4078
      %v4143 = vunpack.c.l.b16 %v4079
      %v4144 = vunpack.c.l.b16 %v4080
      %v4145 = vunpack.c.l.b16 %v4081
      %v4146 = vunpack.c.l.b16 %v4082
      %v4147 = vunpack.c.l.b16 %v4083
      %v4148 = vunpack.c.l.b16 %v4084
      %v4149 = vunpack.c.l.b16 %v4085
      %v4150 = vunpack.c.l.b16 %v4086
      %v4151 = vunpack.c.l.b16 %v4087
      %v4152 = vunpack.c.l.b16 %v4088
      %v4153 = vunpack.c.l.b16 %v4089
      %v4154 = vunpack.c.l.b16 %v4090
      %v4155 = vunpack.c.l.b16 %v4091
      %v4156 = vunpack.c.l.b16 %v4092
      %v4157 = vpack.c.b16 %v4126, %v4125
      %v4158 = vpack.c.b16 %v4128, %v4127
      %v4159 = vpack.c.b16 %v4130, %v4129
      %v4160 = vpack.c.b16 %v4132, %v4131
      %v4161 = vpack.c.b16 %v4134, %v4133
      %v4162 = vpack.c.b16 %v4136, %v4135
      %v4163 = vpack.c.b16 %v4138, %v4137
      %v4164 = vpack.c.b16 %v4140, %v4139
      %v4165 = vpack.c.b16 %v4142, %v4141
      %v4166 = vpack.c.b16 %v4144, %v4143
      %v4167 = vpack.c.b16 %v4146, %v4145
      %v4168 = vpack.c.b16 %v4148, %v4147
      %v4169 = vpack.c.b16 %v4150, %v4149
      %v4170 = vpack.c.b16 %v4152, %v4151
      %v4171 = vpack.c.b16 %v4154, %v4153
      %v4172 = vpack.c.b16 %v4156, %v4155
      %4189 = vmatpush.bf16.msra.mxu0 %v4164
      %4190 = vmatpush.bf16.msra.mxu0 %v4163
      %4191 = vmatpush.bf16.msra.mxu0 %v4162
      %4192 = vmatpush.bf16.msra.mxu0 %v4161
      %4193 = vmatpush.bf16.msra.mxu0 %v4160
      %4194 = vmatpush.bf16.msra.mxu0 %v4159
      %4195 = vmatpush.bf16.msra.mxu0 %v4158
      %4196 = vmatpush.bf16.msra.mxu0 %v4157
      %4197 = vmatmul.bf16.gmra.mxu0 %v4045
      %v4198 = vpop.f32.mrf.mxu0
      %v4199 = vadd.f32 0.0, %v4198
      %v4200 = vpop.f32.mrf.mxu0
      %v4201 = vadd.f32 0.0, %v4200
      %4202 = vmatmul.bf16.gmra.mxu0 %v4047
      %v4203 = vpop.f32.mrf.mxu0
      %v4204 = vadd.f32 0.0, %v4203
      %v4205 = vpop.f32.mrf.mxu0
      %v4206 = vadd.f32 0.0, %v4205
      %4207 = vmatmul.bf16.gmra.mxu0 %v4049
      %v4208 = vpop.f32.mrf.mxu0
      %v4209 = vadd.f32 0.0, %v4208
      %v4210 = vpop.f32.mrf.mxu0
      %v4211 = vadd.f32 0.0, %v4210
      %4212 = vmatmul.bf16.gmra.mxu0 %v4051
      %v4213 = vpop.f32.mrf.mxu0
      %v4214 = vadd.f32 0.0, %v4213
      %v4215 = vpop.f32.mrf.mxu0
      %v4216 = vadd.f32 0.0, %v4215
      %4217 = vmatmul.bf16.gmra.mxu0 %v4053
      %v4218 = vpop.f32.mrf.mxu0
      %v4219 = vadd.f32 0.0, %v4218
      %v4220 = vpop.f32.mrf.mxu0
      %v4221 = vadd.f32 0.0, %v4220
      %4222 = vmatmul.bf16.gmra.mxu0 %v4055
      %v4223 = vpop.f32.mrf.mxu0
      %v4224 = vadd.f32 0.0, %v4223
      %v4225 = vpop.f32.mrf.mxu0
      %v4226 = vadd.f32 0.0, %v4225
      %4227 = vmatmul.bf16.gmra.mxu0 %v4057
      %v4228 = vpop.f32.mrf.mxu0
      %v4229 = vadd.f32 0.0, %v4228
      %v4230 = vpop.f32.mrf.mxu0
      %v4231 = vadd.f32 0.0, %v4230
      %4232 = vmatmul.bf16.gmra.mxu0 %v4059
      %v4233 = vpop.f32.mrf.mxu0
      %v4234 = vadd.f32 0.0, %v4233
      %v4235 = vpop.f32.mrf.mxu0
      %v4236 = vadd.f32 0.0, %v4235
      %4237 = vdwg.mxu0
      %4238 = vmatpush.bf16.msra.mxu0 %v4172
      %4239 = vmatpush.bf16.msra.mxu0 %v4171
      %4240 = vmatpush.bf16.msra.mxu0 %v4170
      %4241 = vmatpush.bf16.msra.mxu0 %v4169
      %4242 = vmatpush.bf16.msra.mxu0 %v4168
      %4243 = vmatpush.bf16.msra.mxu0 %v4167
      %4244 = vmatpush.bf16.msra.mxu0 %v4166
      %4245 = vmatpush.bf16.msra.mxu0 %v4165
      %4246 = vmatmul.bf16.gmra.mxu0 %v4046
      %v4247 = vpop.f32.mrf.mxu0
      %v4248 = vadd.f32 %v4199, %v4247
      %v4249 = vpop.f32.mrf.mxu0
      %v4250 = vadd.f32 %v4201, %v4249
      %4251 = vmatmul.bf16.gmra.mxu0 %v4048
      %v4252 = vpop.f32.mrf.mxu0
      %v4253 = vadd.f32 %v4204, %v4252
      %v4254 = vpop.f32.mrf.mxu0
      %v4255 = vadd.f32 %v4206, %v4254
      %4256 = vmatmul.bf16.gmra.mxu0 %v4050
      %v4257 = vpop.f32.mrf.mxu0
      %v4258 = vadd.f32 %v4209, %v4257
      %v4259 = vpop.f32.mrf.mxu0
      %v4260 = vadd.f32 %v4211, %v4259
      %4261 = vmatmul.bf16.gmra.mxu0 %v4052
      %v4262 = vpop.f32.mrf.mxu0
      %v4263 = vadd.f32 %v4214, %v4262
      %v4264 = vpop.f32.mrf.mxu0
      %v4265 = vadd.f32 %v4216, %v4264
      %4266 = vmatmul.bf16.gmra.mxu0 %v4054
      %v4267 = vpop.f32.mrf.mxu0
      %v4268 = vadd.f32 %v4219, %v4267
      %v4269 = vpop.f32.mrf.mxu0
      %v4270 = vadd.f32 %v4221, %v4269
      %4271 = vmatmul.bf16.gmra.mxu0 %v4056
      %v4272 = vpop.f32.mrf.mxu0
      %v4273 = vadd.f32 %v4224, %v4272
      %v4274 = vpop.f32.mrf.mxu0
      %v4275 = vadd.f32 %v4226, %v4274
      %4276 = vmatmul.bf16.gmra.mxu0 %v4058
      %v4277 = vpop.f32.mrf.mxu0
      %v4278 = vadd.f32 %v4229, %v4277
      %v4279 = vpop.f32.mrf.mxu0
      %v4280 = vadd.f32 %v4231, %v4279
      %4281 = vmatmul.bf16.gmra.mxu0 %v4060
      %v4282 = vpop.f32.mrf.mxu0
      %v4283 = vadd.f32 %v4234, %v4282
      %v4284 = vpop.f32.mrf.mxu0
      %v4285 = vadd.f32 %v4236, %v4284
      %4286 = vdwg.mxu0
      %v4287 = vld [vmem:[#allocation2] sm:$0x1]
      %v4289 = vperm.slane %v4287, 0
      %v4291 = vadd.f32 %v4248, %v4289
      %v4292 = vadd.f32 %v4250, %v4289
      %v4293 = vadd.f32 %v4253, %v4289
      %v4294 = vadd.f32 %v4255, %v4289
      %v4295 = vadd.f32 %v4258, %v4289
      %v4296 = vadd.f32 %v4260, %v4289
      %v4297 = vadd.f32 %v4263, %v4289
      %v4298 = vadd.f32 %v4265, %v4289
      %v4299 = vadd.f32 %v4268, %v4289
      %v4300 = vadd.f32 %v4270, %v4289
      %v4301 = vadd.f32 %v4273, %v4289
      %v4302 = vadd.f32 %v4275, %v4289
      %v4303 = vadd.f32 %v4278, %v4289
      %v4304 = vadd.f32 %v4280, %v4289
      %v4305 = vadd.f32 %v4283, %v4289
      %v4306 = vadd.f32 %v4285, %v4289
      %v4307 = vsub.f32 0.0, %v4291
      %v4308 = vsub.f32 0.0, %v4292
      %v4309 = vsub.f32 0.0, %v4293
      %v4310 = vsub.f32 0.0, %v4294
      %v4311 = vsub.f32 0.0, %v4295
      %v4312 = vsub.f32 0.0, %v4296
      %v4313 = vsub.f32 0.0, %v4297
      %v4314 = vsub.f32 0.0, %v4298
      %v4315 = vsub.f32 0.0, %v4299
      %v4316 = vsub.f32 0.0, %v4300
      %v4317 = vsub.f32 0.0, %v4301
      %v4318 = vsub.f32 0.0, %v4302
      %v4319 = vsub.f32 0.0, %v4303
      %v4320 = vsub.f32 0.0, %v4304
      %v4321 = vsub.f32 0.0, %v4305
      %v4322 = vsub.f32 0.0, %v4306
      %v4323 = vmul.f32 %v4307, 1.442695
      %v4324 = vpow.pop %v4323
      %v4325 = vmul.f32 %v4308, 1.442695
      %v4326 = vpow.pop %v4325
      %v4327 = vmul.f32 %v4309, 1.442695
      %v4328 = vpow.pop %v4327
      %v4329 = vmul.f32 %v4310, 1.442695
      %v4330 = vpow.pop %v4329
      %v4331 = vmul.f32 %v4311, 1.442695
      %v4332 = vpow.pop %v4331
      %v4333 = vmul.f32 %v4312, 1.442695
      %v4334 = vpow.pop %v4333
      %v4335 = vmul.f32 %v4313, 1.442695
      %v4336 = vpow.pop %v4335
      %v4337 = vmul.f32 %v4314, 1.442695
      %v4338 = vpow.pop %v4337
      %v4339 = vmul.f32 %v4315, 1.442695
      %v4340 = vpow.pop %v4339
      %v4341 = vmul.f32 %v4316, 1.442695
      %v4342 = vpow.pop %v4341
      %v4343 = vmul.f32 %v4317, 1.442695
      %v4344 = vpow.pop %v4343
      %v4345 = vmul.f32 %v4318, 1.442695
      %v4346 = vpow.pop %v4345
      %v4347 = vmul.f32 %v4319, 1.442695
      %v4348 = vpow.pop %v4347
      %v4349 = vmul.f32 %v4320, 1.442695
      %v4350 = vpow.pop %v4349
      %v4351 = vmul.f32 %v4321, 1.442695
      %v4352 = vpow.pop %v4351
      %v4353 = vmul.f32 %v4322, 1.442695
      %v4354 = vpow.pop %v4353
      %v4355 = vadd.f32 %v4324, 1.0
      %v4356 = vadd.f32 %v4326, 1.0
      %v4357 = vadd.f32 %v4328, 1.0
      %v4358 = vadd.f32 %v4330, 1.0
      %v4359 = vadd.f32 %v4332, 1.0
      %v4360 = vadd.f32 %v4334, 1.0
      %v4361 = vadd.f32 %v4336, 1.0
      %v4362 = vadd.f32 %v4338, 1.0
      %v4363 = vadd.f32 %v4340, 1.0
      %v4364 = vadd.f32 %v4342, 1.0
      %v4365 = vadd.f32 %v4344, 1.0
      %v4366 = vadd.f32 %v4346, 1.0
      %v4367 = vadd.f32 %v4348, 1.0
      %v4368 = vadd.f32 %v4350, 1.0
      %v4369 = vadd.f32 %v4352, 1.0
      %v4370 = vadd.f32 %v4354, 1.0
      %v4371 = vrcp.pop %v4355
      %v4372 = vmul.f32 %v4355, %v4371
      %v4373 = vsub.f32 1.0, %v4372
      %v4374 = vmul.f32 %v4371, %v4373
      %v4375 = vadd.f32 %v4371, %v4374
      %vm4376 = vweird.f32 %v4355
      %vm4377 = vweird.f32 %v4371
      %vm4378 = vmor %vm4376, %vm4377
      %v4379 = vsel %vm4378, %v4371, %v4375
      %v4380 = vand.u32 2147483647, %v4355
      %vm4381 = vcmp.eq.f32.partialorder %v4380, 8.507059e+37
      %v4382 = vand.u32 %v4355, 2147483648
      %v4383 = vor.u32 1.1754944e-38, %v4382
      %v4384 = vsel %vm4381, %v4383, %v4379
      %v4385 = vrcp.pop %v4356
      %v4386 = vmul.f32 %v4356, %v4385
      %v4387 = vsub.f32 1.0, %v4386
      %v4388 = vmul.f32 %v4385, %v4387
      %v4389 = vadd.f32 %v4385, %v4388
      %vm4390 = vweird.f32 %v4356
      %vm4391 = vweird.f32 %v4385
      %vm4392 = vmor %vm4390, %vm4391
      %v4393 = vsel %vm4392, %v4385, %v4389
      %v4394 = vand.u32 2147483647, %v4356
      %vm4395 = vcmp.eq.f32.partialorder %v4394, 8.507059e+37
      %v4396 = vand.u32 %v4356, 2147483648
      %v4397 = vor.u32 1.1754944e-38, %v4396
      %v4398 = vsel %vm4395, %v4397, %v4393
      %v4399 = vrcp.pop %v4357
      %v4400 = vmul.f32 %v4357, %v4399
      %v4401 = vsub.f32 1.0, %v4400
      %v4402 = vmul.f32 %v4399, %v4401
      %v4403 = vadd.f32 %v4399, %v4402
      %vm4404 = vweird.f32 %v4357
      %vm4405 = vweird.f32 %v4399
      %vm4406 = vmor %vm4404, %vm4405
      %v4407 = vsel %vm4406, %v4399, %v4403
      %v4408 = vand.u32 2147483647, %v4357
      %vm4409 = vcmp.eq.f32.partialorder %v4408, 8.507059e+37
      %v4410 = vand.u32 %v4357, 2147483648
      %v4411 = vor.u32 1.1754944e-38, %v4410
      %v4412 = vsel %vm4409, %v4411, %v4407
      %v4413 = vrcp.pop %v4358
      %v4414 = vmul.f32 %v4358, %v4413
      %v4415 = vsub.f32 1.0, %v4414
      %v4416 = vmul.f32 %v4413, %v4415
      %v4417 = vadd.f32 %v4413, %v4416
      %vm4418 = vweird.f32 %v4358
      %vm4419 = vweird.f32 %v4413
      %vm4420 = vmor %vm4418, %vm4419
      %v4421 = vsel %vm4420, %v4413, %v4417
      %v4422 = vand.u32 2147483647, %v4358
      %vm4423 = vcmp.eq.f32.partialorder %v4422, 8.507059e+37
      %v4424 = vand.u32 %v4358, 2147483648
      %v4425 = vor.u32 1.1754944e-38, %v4424
      %v4426 = vsel %vm4423, %v4425, %v4421
      %v4427 = vrcp.pop %v4359
      %v4428 = vmul.f32 %v4359, %v4427
      %v4429 = vsub.f32 1.0, %v4428
      %v4430 = vmul.f32 %v4427, %v4429
      %v4431 = vadd.f32 %v4427, %v4430
      %vm4432 = vweird.f32 %v4359
      %vm4433 = vweird.f32 %v4427
      %vm4434 = vmor %vm4432, %vm4433
      %v4435 = vsel %vm4434, %v4427, %v4431
      %v4436 = vand.u32 2147483647, %v4359
      %vm4437 = vcmp.eq.f32.partialorder %v4436, 8.507059e+37
      %v4438 = vand.u32 %v4359, 2147483648
      %v4439 = vor.u32 1.1754944e-38, %v4438
      %v4440 = vsel %vm4437, %v4439, %v4435
      %v4441 = vrcp.pop %v4360
      %v4442 = vmul.f32 %v4360, %v4441
      %v4443 = vsub.f32 1.0, %v4442
      %v4444 = vmul.f32 %v4441, %v4443
      %v4445 = vadd.f32 %v4441, %v4444
      %vm4446 = vweird.f32 %v4360
      %vm4447 = vweird.f32 %v4441
      %vm4448 = vmor %vm4446, %vm4447
      %v4449 = vsel %vm4448, %v4441, %v4445
      %v4450 = vand.u32 2147483647, %v4360
      %vm4451 = vcmp.eq.f32.partialorder %v4450, 8.507059e+37
      %v4452 = vand.u32 %v4360, 2147483648
      %v4453 = vor.u32 1.1754944e-38, %v4452
      %v4454 = vsel %vm4451, %v4453, %v4449
      %v4455 = vrcp.pop %v4361
      %v4456 = vmul.f32 %v4361, %v4455
      %v4457 = vsub.f32 1.0, %v4456
      %v4458 = vmul.f32 %v4455, %v4457
      %v4459 = vadd.f32 %v4455, %v4458
      %vm4460 = vweird.f32 %v4361
      %vm4461 = vweird.f32 %v4455
      %vm4462 = vmor %vm4460, %vm4461
      %v4463 = vsel %vm4462, %v4455, %v4459
      %v4464 = vand.u32 2147483647, %v4361
      %vm4465 = vcmp.eq.f32.partialorder %v4464, 8.507059e+37
      %v4466 = vand.u32 %v4361, 2147483648
      %v4467 = vor.u32 1.1754944e-38, %v4466
      %v4468 = vsel %vm4465, %v4467, %v4463
      %v4469 = vrcp.pop %v4362
      %v4470 = vmul.f32 %v4362, %v4469
      %v4471 = vsub.f32 1.0, %v4470
      %v4472 = vmul.f32 %v4469, %v4471
      %v4473 = vadd.f32 %v4469, %v4472
      %vm4474 = vweird.f32 %v4362
      %vm4475 = vweird.f32 %v4469
      %vm4476 = vmor %vm4474, %vm4475
      %v4477 = vsel %vm4476, %v4469, %v4473
      %v4478 = vand.u32 2147483647, %v4362
      %vm4479 = vcmp.eq.f32.partialorder %v4478, 8.507059e+37
      %v4480 = vand.u32 %v4362, 2147483648
      %v4481 = vor.u32 1.1754944e-38, %v4480
      %v4482 = vsel %vm4479, %v4481, %v4477
      %v4483 = vrcp.pop %v4363
      %v4484 = vmul.f32 %v4363, %v4483
      %v4485 = vsub.f32 1.0, %v4484
      %v4486 = vmul.f32 %v4483, %v4485
      %v4487 = vadd.f32 %v4483, %v4486
      %vm4488 = vweird.f32 %v4363
      %vm4489 = vweird.f32 %v4483
      %vm4490 = vmor %vm4488, %vm4489
      %v4491 = vsel %vm4490, %v4483, %v4487
      %v4492 = vand.u32 2147483647, %v4363
      %vm4493 = vcmp.eq.f32.partialorder %v4492, 8.507059e+37
      %v4494 = vand.u32 %v4363, 2147483648
      %v4495 = vor.u32 1.1754944e-38, %v4494
      %v4496 = vsel %vm4493, %v4495, %v4491
      %v4497 = vrcp.pop %v4364
      %v4498 = vmul.f32 %v4364, %v4497
      %v4499 = vsub.f32 1.0, %v4498
      %v4500 = vmul.f32 %v4497, %v4499
      %v4501 = vadd.f32 %v4497, %v4500
      %vm4502 = vweird.f32 %v4364
      %vm4503 = vweird.f32 %v4497
      %vm4504 = vmor %vm4502, %vm4503
      %v4505 = vsel %vm4504, %v4497, %v4501
      %v4506 = vand.u32 2147483647, %v4364
      %vm4507 = vcmp.eq.f32.partialorder %v4506, 8.507059e+37
      %v4508 = vand.u32 %v4364, 2147483648
      %v4509 = vor.u32 1.1754944e-38, %v4508
      %v4510 = vsel %vm4507, %v4509, %v4505
      %v4511 = vrcp.pop %v4365
      %v4512 = vmul.f32 %v4365, %v4511
      %v4513 = vsub.f32 1.0, %v4512
      %v4514 = vmul.f32 %v4511, %v4513
      %v4515 = vadd.f32 %v4511, %v4514
      %vm4516 = vweird.f32 %v4365
      %vm4517 = vweird.f32 %v4511
      %vm4518 = vmor %vm4516, %vm4517
      %v4519 = vsel %vm4518, %v4511, %v4515
      %v4520 = vand.u32 2147483647, %v4365
      %vm4521 = vcmp.eq.f32.partialorder %v4520, 8.507059e+37
      %v4522 = vand.u32 %v4365, 2147483648
      %v4523 = vor.u32 1.1754944e-38, %v4522
      %v4524 = vsel %vm4521, %v4523, %v4519
      %v4525 = vrcp.pop %v4366
      %v4526 = vmul.f32 %v4366, %v4525
      %v4527 = vsub.f32 1.0, %v4526
      %v4528 = vmul.f32 %v4525, %v4527
      %v4529 = vadd.f32 %v4525, %v4528
      %vm4530 = vweird.f32 %v4366
      %vm4531 = vweird.f32 %v4525
      %vm4532 = vmor %vm4530, %vm4531
      %v4533 = vsel %vm4532, %v4525, %v4529
      %v4534 = vand.u32 2147483647, %v4366
      %vm4535 = vcmp.eq.f32.partialorder %v4534, 8.507059e+37
      %v4536 = vand.u32 %v4366, 2147483648
      %v4537 = vor.u32 1.1754944e-38, %v4536
      %v4538 = vsel %vm4535, %v4537, %v4533
      %v4539 = vrcp.pop %v4367
      %v4540 = vmul.f32 %v4367, %v4539
      %v4541 = vsub.f32 1.0, %v4540
      %v4542 = vmul.f32 %v4539, %v4541
      %v4543 = vadd.f32 %v4539, %v4542
      %vm4544 = vweird.f32 %v4367
      %vm4545 = vweird.f32 %v4539
      %vm4546 = vmor %vm4544, %vm4545
      %v4547 = vsel %vm4546, %v4539, %v4543
      %v4548 = vand.u32 2147483647, %v4367
      %vm4549 = vcmp.eq.f32.partialorder %v4548, 8.507059e+37
      %v4550 = vand.u32 %v4367, 2147483648
      %v4551 = vor.u32 1.1754944e-38, %v4550
      %v4552 = vsel %vm4549, %v4551, %v4547
      %v4553 = vrcp.pop %v4368
      %v4554 = vmul.f32 %v4368, %v4553
      %v4555 = vsub.f32 1.0, %v4554
      %v4556 = vmul.f32 %v4553, %v4555
      %v4557 = vadd.f32 %v4553, %v4556
      %vm4558 = vweird.f32 %v4368
      %vm4559 = vweird.f32 %v4553
      %vm4560 = vmor %vm4558, %vm4559
      %v4561 = vsel %vm4560, %v4553, %v4557
      %v4562 = vand.u32 2147483647, %v4368
      %vm4563 = vcmp.eq.f32.partialorder %v4562, 8.507059e+37
      %v4564 = vand.u32 %v4368, 2147483648
      %v4565 = vor.u32 1.1754944e-38, %v4564
      %v4566 = vsel %vm4563, %v4565, %v4561
      %v4567 = vrcp.pop %v4369
      %v4568 = vmul.f32 %v4369, %v4567
      %v4569 = vsub.f32 1.0, %v4568
      %v4570 = vmul.f32 %v4567, %v4569
      %v4571 = vadd.f32 %v4567, %v4570
      %vm4572 = vweird.f32 %v4369
      %vm4573 = vweird.f32 %v4567
      %vm4574 = vmor %vm4572, %vm4573
      %v4575 = vsel %vm4574, %v4567, %v4571
      %v4576 = vand.u32 2147483647, %v4369
      %vm4577 = vcmp.eq.f32.partialorder %v4576, 8.507059e+37
      %v4578 = vand.u32 %v4369, 2147483648
      %v4579 = vor.u32 1.1754944e-38, %v4578
      %v4580 = vsel %vm4577, %v4579, %v4575
      %v4581 = vrcp.pop %v4370
      %v4582 = vmul.f32 %v4370, %v4581
      %v4583 = vsub.f32 1.0, %v4582
      %v4584 = vmul.f32 %v4581, %v4583
      %v4585 = vadd.f32 %v4581, %v4584
      %vm4586 = vweird.f32 %v4370
      %vm4587 = vweird.f32 %v4581
      %vm4588 = vmor %vm4586, %vm4587
      %v4589 = vsel %vm4588, %v4581, %v4585
      %v4590 = vand.u32 2147483647, %v4370
      %vm4591 = vcmp.eq.f32.partialorder %v4590, 8.507059e+37
      %v4592 = vand.u32 %v4370, 2147483648
      %v4593 = vor.u32 1.1754944e-38, %v4592
      %v4594 = vsel %vm4591, %v4593, %v4589
      %vm4595 = vcmask 7168
      %4596 = vst.msk [vmem:[%s285] sm:$0xff] %vm4595, %v4384
      %4597 = vst.msk [vmem:[%s285 + $0x8] sm:$0xff] %vm4595, %v4398
      %4598 = vst.msk [vmem:[%s285 + $0x10] sm:$0xff] %vm4595, %v4412
      %4599 = vst.msk [vmem:[%s285 + $0x18] sm:$0xff] %vm4595, %v4426
      %4600 = vst.msk [vmem:[%s285 + $0x20] sm:$0xff] %vm4595, %v4440
      %4601 = vst.msk [vmem:[%s285 + $0x28] sm:$0xff] %vm4595, %v4454
      %4602 = vst.msk [vmem:[%s285 + $0x30] sm:$0xff] %vm4595, %v4468
      %4603 = vst.msk [vmem:[%s285 + $0x38] sm:$0xff] %vm4595, %v4482
      %4604 = vst.msk [vmem:[%s285 + $0x40] sm:$0xff] %vm4595, %v4496
      %4605 = vst.msk [vmem:[%s285 + $0x48] sm:$0xff] %vm4595, %v4510
      %4606 = vst.msk [vmem:[%s285 + $0x50] sm:$0xff] %vm4595, %v4524
      %4607 = vst.msk [vmem:[%s285 + $0x58] sm:$0xff] %vm4595, %v4538
      %4608 = vst.msk [vmem:[%s285 + $0x60] sm:$0xff] %vm4595, %v4552
      %4609 = vst.msk [vmem:[%s285 + $0x68] sm:$0xff] %vm4595, %v4566
      %4610 = vst.msk [vmem:[%s285 + $0x70] sm:$0xff] %vm4595, %v4580
      %4611 = vst.msk [vmem:[%s285 + $0x78] sm:$0xff] %vm4595, %v4594
      %s4612 = smul.u32 16, %s20
      %p4613 = scmp.lt.s32.totalorder %s4612, 63
      %s4614 = scalar_select %p4613, %s4612, 63
      %s4615 = smul.addr %s4614, 8
      %s4616 = scalar_lea.vmem %s7, %s4615
      // Predicated region
      $region49: #{tpu_custom_call.1} parent=47 // pred_check
        %p4617 = pneg %p190
      $region50: #{tpu_custom_call.1} parent=47 // pred_check_branch
        %4619 = sbr.rel (%p4617) target = $region52
      $region51: #{tpu_custom_call.1} parent=47 // pred_region
        %s4620 = smul.u32 16, %s20
      $region52: #{tpu_custom_call.1} parent=47 // pred_fallthru
        _
    $region48: #{tpu_custom_call.1} parent=5 // pred_fallthru
      _
    %p4621 = scmp.le.s32.totalorder 2, %s15
    // Predicated region
    $region53: #{tpu_custom_call.1} parent=5 // pred_check
      %p4622 = pneg %p4621
    $region54: #{tpu_custom_call.1} parent=5 // pred_check_branch
      %4624 = sbr.rel (%p4622) target = $region56
    $region55: #{tpu_custom_call.1} parent=5 // pred_region
      %s4625 = ssub.s32 %s15, 2
      // Predicated region
      $region57: #{tpu_custom_call.1} parent=55 // pred_check
        %p4626 = pneg %p196
      $region58: #{tpu_custom_call.1} parent=55 // pred_check_branch
        %4628 = sbr.rel (%p4626) target = $region60
      $region59: #{tpu_custom_call.1} parent=55 // pred_region
        %s4629 = smul.u32 16, %s21
        %p4630 = scmp.lt.s32.totalorder %s4629, 63
        %s4631 = scalar_select %p4630, %s4629, 63
        %s4632 = smul.addr %s4631, 8
        %s4633 = scalar_lea.vmem %s7, %s4632
      $region60: #{tpu_custom_call.1} parent=55 // pred_fallthru
        _
    $region56: #{tpu_custom_call.1} parent=5 // pred_fallthru
      _
  $region6: #{tpu_custom_call.1} parent=0 // loop_footer
    %s19 = sadd.s32 1, %s15
  $region7: #{tpu_custom_call.1} parent=0 // loop_footer_branch
    %14 = sbr.rel target = $region3
  $region8: #{tpu_custom_call.1} parent=0 // loop_exit
    _

</llo_original>
